<compile_context>
chip_gen: v7x
topology: tpu7x:2x2x1
jax: 0.10.0
libtpu: 0.0.40
codegen_flags: <defaults>
</compile_context>

<pallas_src>
import functools

import numpy as np
import jax
import jax.numpy as jnp
from jax import lax
from jax.experimental import pallas as pl
from jax.experimental.pallas import tpu as pltpu


def _log_sigmoid(x):
    # numerically stable log(sigmoid(x)); exp/log only (both lower to the EUP)
    return jnp.minimum(x, 0.0) - jnp.log(1.0 + jnp.exp(-jnp.abs(x)))


# ----------------------------------------------------------------------------
# Pallas kernel: chunked GLA recurrence + RMSNorm over head_dim
# grid = (B, Hkv, T // (K_INNER*CT)); transposed (Dv, Dk) state carried over c
# ----------------------------------------------------------------------------
def gla_chunk_kernel(q_ref, k_ref, v_ref, g_ref, o_ref, stateT_ref,
                     *, scale, gate_norm, eps, n_rep, chunk, k_inner):
    c = pl.program_id(2)

    @pl.when(c == 0)
    def _():
        stateT_ref[...] = jnp.zeros_like(stateT_ref)

    CT = chunk
    D = k_ref.shape[-1]

    # causal mask: built once per grid step, reused for the L@g prefix-sum and
    # (tiled along rows) for masking the head-stacked score matrix.
    row = lax.broadcasted_iota(jnp.int32, (CT, CT), 0)
    col = lax.broadcasted_iota(jnp.int32, (CT, CT), 1)
    L = (row >= col).astype(jnp.float32)                             # (CT, CT)
    L_t = jnp.concatenate([L] * n_rep, axis=0) if n_rep > 1 else L   # (M, CT)

    for s in range(k_inner):                       # static unroll over sub-chunks
        t0 = s * CT
        q_all = q_ref[t0:t0 + CT, :]                                 # (CT, n_rep*D) bf16
        k = jnp.maximum(k_ref[t0:t0 + CT, :].astype(jnp.float32), 0.0)
        v = v_ref[t0:t0 + CT, :]                                     # bf16 MXU operand
        g = _log_sigmoid(g_ref[t0:t0 + CT, :].astype(jnp.float32)) * (1.0 / gate_norm)

        # inclusive cumulative log-decay along time (kept f32 for accuracy)
        A = jnp.dot(L, g, preferred_element_type=jnp.float32)        # (CT, D)
        A = jnp.maximum(A, -60.0)   # guard: keep exp(-A) finite for extreme gates
        eA = jnp.exp(A)
        inv_eA = pl.reciprocal(eA, approx=True)     # feeds bf16 operands only
        eA_last = eA[CT - 1:CT, :]                                   # (1, Dk)

        ke_f = k * inv_eA
        k_e = ke_f.astype(jnp.bfloat16)                              # (CT, Dk)
        k2 = (ke_f * eA_last).astype(jnp.bfloat16)                   # k*exp(A_last-A)

        # stack the n_rep query heads of this kv group along rows (M = n_rep*CT)
        q_heads = []
        for h in range(n_rep):
            qh = jnp.maximum(q_all[:, h * D:(h + 1) * D].astype(jnp.float32), 0.0)
            q_heads.append(qh * scale * eA)
        q_e = (jnp.concatenate(q_heads, axis=0) if n_rep > 1
               else q_heads[0]).astype(jnp.bfloat16)                 # (M, Dk)

        S_T = stateT_ref[...]                                        # (Dv, Dk) f32
        S_T_bf = S_T.astype(jnp.bfloat16)

        # inter-chunk: q_e @ S == q_e @ S_T^T   (contract last-with-last)
        o_inter = lax.dot_general(q_e, S_T_bf, (((1,), (1,)), ((), ())),
                                  preferred_element_type=jnp.float32)   # (M, Dv)
        # intra-chunk (causal): (q_e @ k_e^T) masked, then @ v
        scores = lax.dot_general(q_e, k_e, (((1,), (1,)), ((), ())),
                                 preferred_element_type=jnp.float32)    # (M, CT)
        scores = (scores * L_t).astype(jnp.bfloat16)
        o_intra = jnp.dot(scores, v, preferred_element_type=jnp.float32)
        o = o_inter + o_intra                                            # (M, Dv)

        # state update (transposed): S_T <- S_T * exp(A_last)[k] + v^T @ k2
        kvT = lax.dot_general(v, k2, (((0,), (0,)), ((), ())),
                              preferred_element_type=jnp.float32)        # (Dv, Dk)
        stateT_ref[...] = S_T * eA_last + kvT

        # g_norm: RMSNorm over head_dim (all-ones weight applied outside)
        var = jnp.mean(o * o, axis=-1, keepdims=True)
        o_n = o * lax.rsqrt(var + eps)

        for h in range(n_rep):
            o_ref[t0:t0 + CT, h * D:(h + 1) * D] = (
                o_n[h * CT:(h + 1) * CT, :].astype(o_ref.dtype))


def gla_pallas(q, k, v, gk, *, num_heads, num_kv_heads, head_dim, chunk,
               k_inner, scale, gate_norm, eps):
    """q: (B, T, H*D); k/v/gk: (B, T, Hkv*D) -> (B, T, H*D), RMSNorm'd."""
    B, T, _ = q.shape
    D, H, Hkv = head_dim, num_heads, num_kv_heads
    assert H % Hkv == 0
    n_rep = H // Hkv
    assert D % 128 == 0, "head_dim must be a multiple of 128 for lane-dense tiles"
    # TODO(synk): head_dim < 128 would need packing several heads per lane tile.
    CT = chunk
    assert CT % 8 == 0
    step = CT * k_inner

    T_pad = pl.cdiv(T, step) * step
    if T_pad != T:
        # TODO(synk): mask the tail chunk in-kernel instead of a host-side pad.
        pad = ((0, 0), (0, T_pad - T), (0, 0))
        q, k, v, gk = (jnp.pad(t, pad) for t in (q, k, v, gk))
    n_steps = T_pad // step

    kern = functools.partial(gla_chunk_kernel, scale=scale, gate_norm=gate_norm,
                             eps=eps, n_rep=n_rep, chunk=CT, k_inner=k_inner)
    q_spec = pl.BlockSpec((None, step, n_rep * D), lambda b, g, c: (b, c, g))
    kv_spec = pl.BlockSpec((None, step, D), lambda b, g, c: (b, c, g))

    out = pl.pallas_call(
        kern,
        out_shape=jax.ShapeDtypeStruct((B, T_pad, H * D), q.dtype),
        grid=(B, Hkv, n_steps),
        in_specs=[q_spec, kv_spec, kv_spec, kv_spec],
        out_specs=q_spec,
        scratch_shapes=[pltpu.VMEM((D, D), jnp.float32)],
        compiler_params=pltpu.CompilerParams(
            dimension_semantics=("parallel", "parallel", "arbitrary"),
            vmem_limit_bytes=32 * 1024 * 1024),
    )(q, k, v, gk)
    return out[:, :T, :] if T_pad != T else out


# ----------------------------------------------------------------------------
# Pure-JAX reference of the GLA recurrence (fused_recurrent semantics)
# ----------------------------------------------------------------------------
def gla_reference_recurrent(q, k, v, gk, *, scale, gate_norm):
    # q, k, v, gk: (B, H, T, D), pre-activation, float32
    q = jnp.maximum(q, 0.0) * scale
    k = jnp.maximum(k, 0.0)
    g = _log_sigmoid(gk) / gate_norm
    B, H, T, D = q.shape

    def step(S, xs):
        q_t, k_t, v_t, g_t = xs                                   # (B, H, D)
        S = S * jnp.exp(g_t)[..., None] + k_t[..., None] * v_t[..., None, :]
        o_t = jnp.einsum('bhk,bhkv->bhv', q_t, S)
        return S, o_t

    xs = tuple(jnp.moveaxis(a, 2, 0) for a in (q, k, v, g))
    S0 = jnp.zeros((B, H, D, D), jnp.float32)
    _, o = lax.scan(step, S0, xs)
    return jnp.moveaxis(o, 0, 2)                                  # (B, H, T, D)


# ----------------------------------------------------------------------------
# Parameter init (xavier_uniform, gain = 2**-2.5; biases zero; RMSNorm ones)
# ----------------------------------------------------------------------------
def init_params(key, hidden_size, num_heads, num_kv_heads, head_dim,
                gate_low_rank_dim):
    gain = 2.0 ** (-2.5)

    def xavier(k, out_f, in_f):
        bound = gain * float(np.sqrt(6.0 / (in_f + out_f)))
        return jax.random.uniform(k, (out_f, in_f), jnp.float32, -bound, bound)

    ks = jax.random.split(key, 6)
    return {
        "q_proj": xavier(ks[0], num_heads * head_dim, hidden_size),
        "k_proj": xavier(ks[1], num_kv_heads * head_dim, hidden_size),
        "v_proj": xavier(ks[2], num_kv_heads * head_dim, hidden_size),
        "o_proj": xavier(ks[3], hidden_size, num_heads * head_dim),
        "gk_w0": xavier(ks[4], gate_low_rank_dim, hidden_size),
        "gk_w1": xavier(ks[5], num_kv_heads * head_dim, gate_low_rank_dim),
        "gk_b1": jnp.zeros((num_kv_heads * head_dim,), jnp.float32),
        "g_norm_weight": jnp.ones((head_dim,), jnp.float32),
    }


# ----------------------------------------------------------------------------
# MainAttention.forward (attention_mask=None, use_cache=False, mode='chunk')
# ----------------------------------------------------------------------------
def main_attention_forward(params, hidden_states, *, num_heads, num_kv_heads,
                           head_dim, chunk=128, k_inner=2, gate_norm=16.0,
                           eps=1e-6, use_pallas=True,
                           stream_dtype=jnp.bfloat16):
    B, T, _ = hidden_states.shape
    n_rep = num_heads // num_kv_heads
    x = hidden_states.astype(jnp.float32)

    q = x @ params["q_proj"].T                                     # (B, T, H*D)
    k = x @ params["k_proj"].T                                     # (B, T, KV*D)
    v = x @ params["v_proj"].T
    gk = (x @ params["gk_w0"].T) @ params["gk_w1"].T + params["gk_b1"]

    # Stream the GLA inputs at reduced precision (halves HBM traffic into the
    # kernel).  Both the Pallas path and the reference path see the SAME
    # rounded values so the correctness check isolates the kernel math.
    if stream_dtype is not None:
        q, k, v, gk = (t.astype(stream_dtype) for t in (q, k, v, gk))

    scale = head_dim ** -0.5

    if use_pallas:
        # no head-split transposes, no GQA repeat: handled by BlockSpec maps
        o = gla_pallas(q, k, v, gk, num_heads=num_heads,
                       num_kv_heads=num_kv_heads, head_dim=head_dim,
                       chunk=chunk, k_inner=k_inner, scale=scale,
                       gate_norm=gate_norm, eps=eps)
        o = o.astype(jnp.float32)                                  # (B, T, H*D)
    else:
        def split_heads(t, h):
            return (t.astype(jnp.float32)
                     .reshape(B, T, h, head_dim).transpose(0, 2, 1, 3))
        qh = split_heads(q, num_heads)
        kh = split_heads(k, num_kv_heads)
        vh = split_heads(v, num_kv_heads)
        gh = split_heads(gk, num_kv_heads)
        if n_rep > 1:
            kh, vh, gh = (jnp.repeat(t, n_rep, axis=1) for t in (kh, vh, gh))
        oh = gla_reference_recurrent(qh, kh, vh, gh,
                                     scale=scale, gate_norm=gate_norm)
        var = jnp.mean(oh * oh, axis=-1, keepdims=True)
        oh = oh * lax.rsqrt(var + eps)
        if stream_dtype is not None:        # parity with kernel output dtype
            oh = oh.astype(stream_dtype).astype(jnp.float32)
        o = oh.transpose(0, 2, 1, 3).reshape(B, T, num_heads * head_dim)

    o = o * jnp.tile(params["g_norm_weight"], num_heads)           # RMSNorm weight
    return o @ params["o_proj"].T                                  # (B, T, hidden)
    # TODO(synk): past_key_value cache update / fused_recurrent decode path not
    #             modeled (stateless forward, attention_mask=None path only).


if __name__ == "__main__":
    B, T = 2, 512
    hidden_size = 256
    num_heads, num_kv_heads, head_dim = 4, 2, 128
    gate_low_rank_dim = 16
    chunk, k_inner = 128, 2

    key = jax.random.PRNGKey(0)
    kp, kx = jax.random.split(key)
    params = init_params(kp, hidden_size, num_heads, num_kv_heads, head_dim,
                         gate_low_rank_dim)
    x = jax.random.normal(kx, (B, T, hidden_size), jnp.float32)

    fwd = functools.partial(main_attention_forward, num_heads=num_heads,
                            num_kv_heads=num_kv_heads, head_dim=head_dim,
                            chunk=chunk, k_inner=k_inner)

    out = jax.jit(lambda p, h: fwd(p, h, use_pallas=True))(params, x)
    out = jax.block_until_ready(out)

    ref = jax.jit(lambda p, h: fwd(p, h, use_pallas=False))(params, x)
    ref = jax.block_until_ready(ref)

    # tolerance covers bf16-streamed I/O plus bf16 MXU operands (f32 accumulate)
    np.testing.assert_allclose(np.asarray(out), np.asarray(ref),
                               rtol=2e-2, atol=2e-2)
    print("KERNEL_OK")
</pallas_src>

<mosaic_0001>
module attributes {stable_mosaic.version = 11 : i64} {
  func.func @gla_chunk_kernel(%arg0: i32, %arg1: i32, %arg2: i32, %arg3: memref<1x256x256xbf16, #tpu.memory_space<vmem>>, %arg4: memref<1x256x128xbf16, #tpu.memory_space<vmem>>, %arg5: memref<1x256x128xbf16, #tpu.memory_space<vmem>>, %arg6: memref<1x256x128xbf16, #tpu.memory_space<vmem>>, %arg7: memref<1x256x256xbf16, #tpu.memory_space<vmem>>, %arg8: memref<128x128xf32, #tpu.memory_space<vmem>>) attributes {dimension_semantics = [#tpu.dimension_semantics<parallel>, #tpu.dimension_semantics<parallel>, #tpu.dimension_semantics<arbitrary>], iteration_bounds = array<i64: 2, 2, 2>, scalar_prefetch = 0 : i64, scratch_operands = 1 : i64, tpu.core_type = #tpu.core_type<tc>, window_params = [{transform_indices = @transform_0, window_bounds = array<i64: 1, 256, 256>}, {transform_indices = @transform_1, window_bounds = array<i64: 1, 256, 128>}, {transform_indices = @transform_2, window_bounds = array<i64: 1, 256, 128>}, {transform_indices = @transform_3, window_bounds = array<i64: 1, 256, 128>}, {transform_indices = @transform_4, window_bounds = array<i64: 1, 256, 256>}]} {
    %c0_i32 = arith.constant 0 : i32
    %0 = arith.cmpi eq, %arg2, %c0_i32 : i32
    %1 = arith.extui %0 : i1 to i32
    %c0_i32_0 = arith.constant 0 : i32
    %2 = arith.cmpi ne, %1, %c0_i32_0 : i32
    scf.if %2 {
      %cst_78 = arith.constant 0.000000e+00 : f32
      %177 = vector.broadcast %cst_78 : f32 to vector<128x128xf32>
      %c0_79 = arith.constant 0 : index
      %c0_80 = arith.constant 0 : index
      %178 = vector.load %arg8[%c0_79, %c0_80] : memref<128x128xf32, #tpu.memory_space<vmem>>, vector<128x128xf32>
      tpu.vector_store %arg8[%c0_79, %c0_80], %177 {strides = array<i32>} : memref<128x128xf32, #tpu.memory_space<vmem>>, vector<128x128xf32>,
    } else {
    }
    %3 = tpu.iota {dimensions = array<i32: 0>} : vector<128x128xi32>
    %4 = tpu.iota {dimensions = array<i32: 1>} : vector<128x128xi32>
    %5 = arith.cmpi sge, %3, %4 : vector<128x128xi32>
    %6 = arith.extui %5 : vector<128x128xi1> to vector<128x128xi32>
    %7 = arith.sitofp %6 : vector<128x128xi32> to vector<128x128xf32>
    %8 = tpu.concatenate %7, %7 in 0 : vector<128x128xf32>, vector<128x128xf32> -> vector<256x128xf32>
    %c0 = arith.constant 0 : index
    %c0_1 = arith.constant 0 : index
    %c0_2 = arith.constant 0 : index
    %9 = vector.load %arg3[%c0, %c0_1, %c0_2] : memref<1x256x256xbf16, #tpu.memory_space<vmem>>, vector<1x128x256xbf16>
    %10 = vector.shape_cast %9 : vector<1x128x256xbf16> to vector<128x256xbf16>
    %c0_3 = arith.constant 0 : index
    %c0_4 = arith.constant 0 : index
    %c0_5 = arith.constant 0 : index
    %11 = vector.load %arg4[%c0_3, %c0_4, %c0_5] : memref<1x256x128xbf16, #tpu.memory_space<vmem>>, vector<1x128x128xbf16>
    %12 = vector.shape_cast %11 : vector<1x128x128xbf16> to vector<128x128xbf16>
    %13 = arith.extf %12 : vector<128x128xbf16> to vector<128x128xf32>
    %cst = arith.constant 0.000000e+00 : f32
    %14 = vector.broadcast %cst : f32 to vector<128x128xf32>
    %15 = arith.maximumf %13, %14 : vector<128x128xf32>
    %c0_6 = arith.constant 0 : index
    %c0_7 = arith.constant 0 : index
    %c0_8 = arith.constant 0 : index
    %16 = vector.load %arg5[%c0_6, %c0_7, %c0_8] : memref<1x256x128xbf16, #tpu.memory_space<vmem>>, vector<1x128x128xbf16>
    %17 = vector.shape_cast %16 : vector<1x128x128xbf16> to vector<128x128xbf16>
    %c0_9 = arith.constant 0 : index
    %c0_10 = arith.constant 0 : index
    %c0_11 = arith.constant 0 : index
    %18 = vector.load %arg6[%c0_9, %c0_10, %c0_11] : memref<1x256x128xbf16, #tpu.memory_space<vmem>>, vector<1x128x128xbf16>
    %19 = vector.shape_cast %18 : vector<1x128x128xbf16> to vector<128x128xbf16>
    %20 = arith.extf %19 : vector<128x128xbf16> to vector<128x128xf32>
    %cst_12 = arith.constant 0.000000e+00 : f32
    %21 = vector.broadcast %cst_12 : f32 to vector<128x128xf32>
    %22 = arith.minimumf %20, %21 : vector<128x128xf32>
    %23 = math.absf %20 : vector<128x128xf32>
    %cst_13 = arith.constant 0.000000e+00 : f32
    %24 = vector.broadcast %cst_13 : f32 to vector<128x128xf32>
    %25 = arith.subf %24, %23 : vector<128x128xf32>
    %26 = math.exp %25 : vector<128x128xf32>
    %cst_14 = arith.constant 1.000000e+00 : f32
    %27 = vector.broadcast %cst_14 : f32 to vector<128x128xf32>
    %28 = arith.addf %27, %26 : vector<128x128xf32>
    %29 = math.log %28 : vector<128x128xf32>
    %30 = arith.subf %22, %29 : vector<128x128xf32>
    %cst_15 = arith.constant 6.250000e-02 : f32
    %31 = vector.broadcast %cst_15 : f32 to vector<128x128xf32>
    %32 = arith.mulf %30, %31 : vector<128x128xf32>
    %cst_16 = arith.constant dense<0.000000e+00> : vector<128x128xf32>
    %33 = tpu.matmul %7, %32, %cst_16 {dimension_numbers = #tpu.dot_dimension_numbers<[1], [0], [0], [1], [0, 0, 1, 1], [], []>} : vector<128x128xf32>, vector<128x128xf32>, vector<128x128xf32> -> vector<128x128xf32>
    %cst_17 = arith.constant -6.000000e+01 : f32
    %34 = vector.broadcast %cst_17 : f32 to vector<128x128xf32>
    %35 = arith.maximumf %33, %34 : vector<128x128xf32>
    %36 = math.exp %35 : vector<128x128xf32>
    %37 = tpu.reciprocal %36 {approx = true} : vector<128x128xf32> -> vector<128x128xf32>
    %38 = vector.extract_strided_slice %36 {offsets = [127, 0], sizes = [1, 128], strides = [1, 1]} : vector<128x128xf32> to vector<1x128xf32>
    %39 = arith.mulf %15, %37 : vector<128x128xf32>
    %40 = arith.truncf %39 : vector<128x128xf32> to vector<128x128xbf16>
    %41 = vector.broadcast %38 : vector<1x128xf32> to vector<128x128xf32>
    %42 = arith.mulf %39, %41 : vector<128x128xf32>
    %43 = arith.truncf %42 : vector<128x128xf32> to vector<128x128xbf16>
    %44 = vector.extract_strided_slice %10 {offsets = [0, 0], sizes = [128, 128], strides = [1, 1]} : vector<128x256xbf16> to vector<128x128xbf16>
    %45 = arith.extf %44 : vector<128x128xbf16> to vector<128x128xf32>
    %cst_18 = arith.constant 0.000000e+00 : f32
    %46 = vector.broadcast %cst_18 : f32 to vector<128x128xf32>
    %47 = arith.maximumf %45, %46 : vector<128x128xf32>
    %cst_19 = arith.constant 0.0883883461 : f32
    %48 = vector.broadcast %cst_19 : f32 to vector<128x128xf32>
    %49 = arith.mulf %47, %48 : vector<128x128xf32>
    %50 = arith.mulf %49, %36 : vector<128x128xf32>
    %51 = vector.extract_strided_slice %10 {offsets = [0, 128], sizes = [128, 128], strides = [1, 1]} : vector<128x256xbf16> to vector<128x128xbf16>
    %52 = arith.extf %51 : vector<128x128xbf16> to vector<128x128xf32>
    %cst_20 = arith.constant 0.000000e+00 : f32
    %53 = vector.broadcast %cst_20 : f32 to vector<128x128xf32>
    %54 = arith.maximumf %52, %53 : vector<128x128xf32>
    %cst_21 = arith.constant 0.0883883461 : f32
    %55 = vector.broadcast %cst_21 : f32 to vector<128x128xf32>
    %56 = arith.mulf %54, %55 : vector<128x128xf32>
    %57 = arith.mulf %56, %36 : vector<128x128xf32>
    %58 = tpu.concatenate %50, %57 in 0 : vector<128x128xf32>, vector<128x128xf32> -> vector<256x128xf32>
    %59 = arith.truncf %58 : vector<256x128xf32> to vector<256x128xbf16>
    %c0_22 = arith.constant 0 : index
    %c0_23 = arith.constant 0 : index
    %60 = vector.load %arg8[%c0_22, %c0_23] : memref<128x128xf32, #tpu.memory_space<vmem>>, vector<128x128xf32>
    %61 = arith.truncf %60 : vector<128x128xf32> to vector<128x128xbf16>
    %cst_24 = arith.constant dense<0.000000e+00> : vector<256x128xf32>
    %62 = tpu.matmul %59, %61, %cst_24 {dimension_numbers = #tpu.dot_dimension_numbers<[1], [1], [0], [0], [0, 0, 1, 0], [], []>} : vector<256x128xbf16>, vector<128x128xbf16>, vector<256x128xf32> -> vector<256x128xf32>
    %cst_25 = arith.constant dense<0.000000e+00> : vector<256x128xf32>
    %63 = tpu.matmul %59, %40, %cst_25 {dimension_numbers = #tpu.dot_dimension_numbers<[1], [1], [0], [0], [0, 0, 1, 0], [], []>} : vector<256x128xbf16>, vector<128x128xbf16>, vector<256x128xf32> -> vector<256x128xf32>
    %64 = arith.mulf %63, %8 : vector<256x128xf32>
    %65 = arith.truncf %64 : vector<256x128xf32> to vector<256x128xbf16>
    %cst_26 = arith.constant dense<0.000000e+00> : vector<256x128xf32>
    %66 = tpu.matmul %65, %17, %cst_26 {dimension_numbers = #tpu.dot_dimension_numbers<[1], [0], [0], [1], [0, 0, 1, 1], [], []>} : vector<256x128xbf16>, vector<128x128xbf16>, vector<256x128xf32> -> vector<256x128xf32>
    %67 = arith.addf %62, %66 : vector<256x128xf32>
    %cst_27 = arith.constant dense<0.000000e+00> : vector<128x128xf32>
    %68 = tpu.matmul %17, %43, %cst_27 {dimension_numbers = #tpu.dot_dimension_numbers<[0], [0], [1], [1], [0, 1, 1, 1], [], []>} : vector<128x128xbf16>, vector<128x128xbf16>, vector<128x128xf32> -> vector<128x128xf32>
    %69 = vector.broadcast %38 : vector<1x128xf32> to vector<128x128xf32>
    %70 = arith.mulf %60, %69 : vector<128x128xf32>
    %71 = arith.addf %70, %68 : vector<128x128xf32>
    %c0_28 = arith.constant 0 : index
    %c0_29 = arith.constant 0 : index
    %72 = vector.load %arg8[%c0_28, %c0_29] : memref<128x128xf32, #tpu.memory_space<vmem>>, vector<128x128xf32>
    tpu.vector_store %arg8[%c0_28, %c0_29], %71 {strides = array<i32>} : memref<128x128xf32, #tpu.memory_space<vmem>>, vector<128x128xf32>,
    %73 = arith.mulf %67, %67 : vector<256x128xf32>
    %cst_30 = arith.constant dense<0.000000e+00> : vector<256xf32>
    %74 = vector.multi_reduction <add>, %73, %cst_30 [1] : vector<256x128xf32> to vector<256xf32>
    %75 = vector.shape_cast %74 : vector<256xf32> to vector<256x1xf32>
    %cst_31 = arith.constant 1.280000e+02 : f32
    %76 = vector.broadcast %cst_31 : f32 to vector<256x1xf32>
    %77 = arith.divf %75, %76 : vector<256x1xf32>
    %cst_32 = arith.constant 9.99999997E-7 : f32
    %78 = vector.broadcast %cst_32 : f32 to vector<256x1xf32>
    %79 = arith.addf %77, %78 : vector<256x1xf32>
    %80 = math.rsqrt %79 : vector<256x1xf32>
    %81 = vector.broadcast %80 : vector<256x1xf32> to vector<256x128xf32>
    %82 = arith.mulf %67, %81 : vector<256x128xf32>
    %83 = vector.extract_strided_slice %82 {offsets = [0, 0], sizes = [128, 128], strides = [1, 1]} : vector<256x128xf32> to vector<128x128xf32>
    %84 = arith.truncf %83 : vector<128x128xf32> to vector<128x128xbf16>
    %c0_33 = arith.constant 0 : index
    %c0_34 = arith.constant 0 : index
    %c0_35 = arith.constant 0 : index
    %85 = vector.load %arg7[%c0_33, %c0_34, %c0_35] : memref<1x256x256xbf16, #tpu.memory_space<vmem>>, vector<1x128x128xbf16>
    %86 = vector.shape_cast %85 : vector<1x128x128xbf16> to vector<128x128xbf16>
    %87 = vector.shape_cast %84 : vector<128x128xbf16> to vector<1x128x128xbf16>
    tpu.vector_store %arg7[%c0_33, %c0_34, %c0_35], %87 {strides = array<i32>} : memref<1x256x256xbf16, #tpu.memory_space<vmem>>, vector<1x128x128xbf16>,
    %88 = vector.extract_strided_slice %82 {offsets = [128, 0], sizes = [128, 128], strides = [1, 1]} : vector<256x128xf32> to vector<128x128xf32>
    %89 = arith.truncf %88 : vector<128x128xf32> to vector<128x128xbf16>
    %c0_36 = arith.constant 0 : index
    %c0_37 = arith.constant 0 : index
    %c128 = arith.constant 128 : index
    %90 = vector.load %arg7[%c0_36, %c0_37, %c128] : memref<1x256x256xbf16, #tpu.memory_space<vmem>>, vector<1x128x128xbf16>
    %91 = vector.shape_cast %90 : vector<1x128x128xbf16> to vector<128x128xbf16>
    %92 = vector.shape_cast %89 : vector<128x128xbf16> to vector<1x128x128xbf16>
    tpu.vector_store %arg7[%c0_36, %c0_37, %c128], %92 {strides = array<i32>} : memref<1x256x256xbf16, #tpu.memory_space<vmem>>, vector<1x128x128xbf16>,
    %c0_38 = arith.constant 0 : index
    %c128_39 = arith.constant 128 : index
    %c0_40 = arith.constant 0 : index
    %93 = vector.load %arg3[%c0_38, %c128_39, %c0_40] : memref<1x256x256xbf16, #tpu.memory_space<vmem>>, vector<1x128x256xbf16>
    %94 = vector.shape_cast %93 : vector<1x128x256xbf16> to vector<128x256xbf16>
    %c0_41 = arith.constant 0 : index
    %c128_42 = arith.constant 128 : index
    %c0_43 = arith.constant 0 : index
    %95 = vector.load %arg4[%c0_41, %c128_42, %c0_43] : memref<1x256x128xbf16, #tpu.memory_space<vmem>>, vector<1x128x128xbf16>
    %96 = vector.shape_cast %95 : vector<1x128x128xbf16> to vector<128x128xbf16>
    %97 = arith.extf %96 : vector<128x128xbf16> to vector<128x128xf32>
    %cst_44 = arith.constant 0.000000e+00 : f32
    %98 = vector.broadcast %cst_44 : f32 to vector<128x128xf32>
    %99 = arith.maximumf %97, %98 : vector<128x128xf32>
    %c0_45 = arith.constant 0 : index
    %c128_46 = arith.constant 128 : index
    %c0_47 = arith.constant 0 : index
    %100 = vector.load %arg5[%c0_45, %c128_46, %c0_47] : memref<1x256x128xbf16, #tpu.memory_space<vmem>>, vector<1x128x128xbf16>
    %101 = vector.shape_cast %100 : vector<1x128x128xbf16> to vector<128x128xbf16>
    %c0_48 = arith.constant 0 : index
    %c128_49 = arith.constant 128 : index
    %c0_50 = arith.constant 0 : index
    %102 = vector.load %arg6[%c0_48, %c128_49, %c0_50] : memref<1x256x128xbf16, #tpu.memory_space<vmem>>, vector<1x128x128xbf16>
    %103 = vector.shape_cast %102 : vector<1x128x128xbf16> to vector<128x128xbf16>
    %104 = arith.extf %103 : vector<128x128xbf16> to vector<128x128xf32>
    %cst_51 = arith.constant 0.000000e+00 : f32
    %105 = vector.broadcast %cst_51 : f32 to vector<128x128xf32>
    %106 = arith.minimumf %104, %105 : vector<128x128xf32>
    %107 = math.absf %104 : vector<128x128xf32>
    %cst_52 = arith.constant 0.000000e+00 : f32
    %108 = vector.broadcast %cst_52 : f32 to vector<128x128xf32>
    %109 = arith.subf %108, %107 : vector<128x128xf32>
    %110 = math.exp %109 : vector<128x128xf32>
    %cst_53 = arith.constant 1.000000e+00 : f32
    %111 = vector.broadcast %cst_53 : f32 to vector<128x128xf32>
    %112 = arith.addf %111, %110 : vector<128x128xf32>
    %113 = math.log %112 : vector<128x128xf32>
    %114 = arith.subf %106, %113 : vector<128x128xf32>
    %cst_54 = arith.constant 6.250000e-02 : f32
    %115 = vector.broadcast %cst_54 : f32 to vector<128x128xf32>
    %116 = arith.mulf %114, %115 : vector<128x128xf32>
    %cst_55 = arith.constant dense<0.000000e+00> : vector<128x128xf32>
    %117 = tpu.matmul %7, %116, %cst_55 {dimension_numbers = #tpu.dot_dimension_numbers<[1], [0], [0], [1], [0, 0, 1, 1], [], []>} : vector<128x128xf32>, vector<128x128xf32>, vector<128x128xf32> -> vector<128x128xf32>
    %cst_56 = arith.constant -6.000000e+01 : f32
    %118 = vector.broadcast %cst_56 : f32 to vector<128x128xf32>
    %119 = arith.maximumf %117, %118 : vector<128x128xf32>
    %120 = math.exp %119 : vector<128x128xf32>
    %121 = tpu.reciprocal %120 {approx = true} : vector<128x128xf32> -> vector<128x128xf32>
    %122 = vector.extract_strided_slice %120 {offsets = [127, 0], sizes = [1, 128], strides = [1, 1]} : vector<128x128xf32> to vector<1x128xf32>
    %123 = arith.mulf %99, %121 : vector<128x128xf32>
    %124 = arith.truncf %123 : vector<128x128xf32> to vector<128x128xbf16>
    %125 = vector.broadcast %122 : vector<1x128xf32> to vector<128x128xf32>
    %126 = arith.mulf %123, %125 : vector<128x128xf32>
    %127 = arith.truncf %126 : vector<128x128xf32> to vector<128x128xbf16>
    %128 = vector.extract_strided_slice %94 {offsets = [0, 0], sizes = [128, 128], strides = [1, 1]} : vector<128x256xbf16> to vector<128x128xbf16>
    %129 = arith.extf %128 : vector<128x128xbf16> to vector<128x128xf32>
    %cst_57 = arith.constant 0.000000e+00 : f32
    %130 = vector.broadcast %cst_57 : f32 to vector<128x128xf32>
    %131 = arith.maximumf %129, %130 : vector<128x128xf32>
    %cst_58 = arith.constant 0.0883883461 : f32
    %132 = vector.broadcast %cst_58 : f32 to vector<128x128xf32>
    %133 = arith.mulf %131, %132 : vector<128x128xf32>
    %134 = arith.mulf %133, %120 : vector<128x128xf32>
    %135 = vector.extract_strided_slice %94 {offsets = [0, 128], sizes = [128, 128], strides = [1, 1]} : vector<128x256xbf16> to vector<128x128xbf16>
    %136 = arith.extf %135 : vector<128x128xbf16> to vector<128x128xf32>
    %cst_59 = arith.constant 0.000000e+00 : f32
    %137 = vector.broadcast %cst_59 : f32 to vector<128x128xf32>
    %138 = arith.maximumf %136, %137 : vector<128x128xf32>
    %cst_60 = arith.constant 0.0883883461 : f32
    %139 = vector.broadcast %cst_60 : f32 to vector<128x128xf32>
    %140 = arith.mulf %138, %139 : vector<128x128xf32>
    %141 = arith.mulf %140, %120 : vector<128x128xf32>
    %142 = tpu.concatenate %134, %141 in 0 : vector<128x128xf32>, vector<128x128xf32> -> vector<256x128xf32>
    %143 = arith.truncf %142 : vector<256x128xf32> to vector<256x128xbf16>
    %c0_61 = arith.constant 0 : index
    %c0_62 = arith.constant 0 : index
    %144 = vector.load %arg8[%c0_61, %c0_62] : memref<128x128xf32, #tpu.memory_space<vmem>>, vector<128x128xf32>
    %145 = arith.truncf %144 : vector<128x128xf32> to vector<128x128xbf16>
    %cst_63 = arith.constant dense<0.000000e+00> : vector<256x128xf32>
    %146 = tpu.matmul %143, %145, %cst_63 {dimension_numbers = #tpu.dot_dimension_numbers<[1], [1], [0], [0], [0, 0, 1, 0], [], []>} : vector<256x128xbf16>, vector<128x128xbf16>, vector<256x128xf32> -> vector<256x128xf32>
    %cst_64 = arith.constant dense<0.000000e+00> : vector<256x128xf32>
    %147 = tpu.matmul %143, %124, %cst_64 {dimension_numbers = #tpu.dot_dimension_numbers<[1], [1], [0], [0], [0, 0, 1, 0], [], []>} : vector<256x128xbf16>, vector<128x128xbf16>, vector<256x128xf32> -> vector<256x128xf32>
    %148 = arith.mulf %147, %8 : vector<256x128xf32>
    %149 = arith.truncf %148 : vector<256x128xf32> to vector<256x128xbf16>
    %cst_65 = arith.constant dense<0.000000e+00> : vector<256x128xf32>
    %150 = tpu.matmul %149, %101, %cst_65 {dimension_numbers = #tpu.dot_dimension_numbers<[1], [0], [0], [1], [0, 0, 1, 1], [], []>} : vector<256x128xbf16>, vector<128x128xbf16>, vector<256x128xf32> -> vector<256x128xf32>
    %151 = arith.addf %146, %150 : vector<256x128xf32>
    %cst_66 = arith.constant dense<0.000000e+00> : vector<128x128xf32>
    %152 = tpu.matmul %101, %127, %cst_66 {dimension_numbers = #tpu.dot_dimension_numbers<[0], [0], [1], [1], [0, 1, 1, 1], [], []>} : vector<128x128xbf16>, vector<128x128xbf16>, vector<128x128xf32> -> vector<128x128xf32>
    %153 = vector.broadcast %122 : vector<1x128xf32> to vector<128x128xf32>
    %154 = arith.mulf %144, %153 : vector<128x128xf32>
    %155 = arith.addf %154, %152 : vector<128x128xf32>
    %c0_67 = arith.constant 0 : index
    %c0_68 = arith.constant 0 : index
    %156 = vector.load %arg8[%c0_67, %c0_68] : memref<128x128xf32, #tpu.memory_space<vmem>>, vector<128x128xf32>
    tpu.vector_store %arg8[%c0_67, %c0_68], %155 {strides = array<i32>} : memref<128x128xf32, #tpu.memory_space<vmem>>, vector<128x128xf32>,
    %157 = arith.mulf %151, %151 : vector<256x128xf32>
    %cst_69 = arith.constant dense<0.000000e+00> : vector<256xf32>
    %158 = vector.multi_reduction <add>, %157, %cst_69 [1] : vector<256x128xf32> to vector<256xf32>
    %159 = vector.shape_cast %158 : vector<256xf32> to vector<256x1xf32>
    %cst_70 = arith.constant 1.280000e+02 : f32
    %160 = vector.broadcast %cst_70 : f32 to vector<256x1xf32>
    %161 = arith.divf %159, %160 : vector<256x1xf32>
    %cst_71 = arith.constant 9.99999997E-7 : f32
    %162 = vector.broadcast %cst_71 : f32 to vector<256x1xf32>
    %163 = arith.addf %161, %162 : vector<256x1xf32>
    %164 = math.rsqrt %163 : vector<256x1xf32>
    %165 = vector.broadcast %164 : vector<256x1xf32> to vector<256x128xf32>
    %166 = arith.mulf %151, %165 : vector<256x128xf32>
    %167 = vector.extract_strided_slice %166 {offsets = [0, 0], sizes = [128, 128], strides = [1, 1]} : vector<256x128xf32> to vector<128x128xf32>
    %168 = arith.truncf %167 : vector<128x128xf32> to vector<128x128xbf16>
    %c0_72 = arith.constant 0 : index
    %c128_73 = arith.constant 128 : index
    %c0_74 = arith.constant 0 : index
    %169 = vector.load %arg7[%c0_72, %c128_73, %c0_74] : memref<1x256x256xbf16, #tpu.memory_space<vmem>>, vector<1x128x128xbf16>
    %170 = vector.shape_cast %169 : vector<1x128x128xbf16> to vector<128x128xbf16>
    %171 = vector.shape_cast %168 : vector<128x128xbf16> to vector<1x128x128xbf16>
    tpu.vector_store %arg7[%c0_72, %c128_73, %c0_74], %171 {strides = array<i32>} : memref<1x256x256xbf16, #tpu.memory_space<vmem>>, vector<1x128x128xbf16>,
    %172 = vector.extract_strided_slice %166 {offsets = [128, 0], sizes = [128, 128], strides = [1, 1]} : vector<256x128xf32> to vector<128x128xf32>
    %173 = arith.truncf %172 : vector<128x128xf32> to vector<128x128xbf16>
    %c0_75 = arith.constant 0 : index
    %c128_76 = arith.constant 128 : index
    %c128_77 = arith.constant 128 : index
    %174 = vector.load %arg7[%c0_75, %c128_76, %c128_77] : memref<1x256x256xbf16, #tpu.memory_space<vmem>>, vector<1x128x128xbf16>
    %175 = vector.shape_cast %174 : vector<1x128x128xbf16> to vector<128x128xbf16>
    %176 = vector.shape_cast %173 : vector<128x128xbf16> to vector<1x128x128xbf16>
    tpu.vector_store %arg7[%c0_75, %c128_76, %c128_77], %176 {strides = array<i32>} : memref<1x256x256xbf16, #tpu.memory_space<vmem>>, vector<1x128x128xbf16>,
    return
  }
  func.func @transform_0(%arg0: i32, %arg1: i32, %arg2: i32) -> (i32, i32, i32) {
    %c0_i32 = arith.constant 0 : i32
    return %arg0, %arg2, %arg1 : i32, i32, i32
  }
  func.func @transform_1(%arg0: i32, %arg1: i32, %arg2: i32) -> (i32, i32, i32) {
    %c0_i32 = arith.constant 0 : i32
    return %arg0, %arg2, %arg1 : i32, i32, i32
  }
  func.func @transform_2(%arg0: i32, %arg1: i32, %arg2: i32) -> (i32, i32, i32) {
    %c0_i32 = arith.constant 0 : i32
    return %arg0, %arg2, %arg1 : i32, i32, i32
  }
  func.func @transform_3(%arg0: i32, %arg1: i32, %arg2: i32) -> (i32, i32, i32) {
    %c0_i32 = arith.constant 0 : i32
    return %arg0, %arg2, %arg1 : i32, i32, i32
  }
  func.func @transform_4(%arg0: i32, %arg1: i32, %arg2: i32) -> (i32, i32, i32) {
    %c0_i32 = arith.constant 0 : i32
    return %arg0, %arg2, %arg1 : i32, i32, i32
  }
}

</mosaic_0001>

<llo_original>
// kernel: _lambda_.1
$region0: #{_lambda_.1}
  #allocation0 [shape = 'u32[]', space=smem, size = 0x4, offset = 0x4, fixed_abs, tag = 'smem constant byte address 0x4 - core index']
  #allocation1 [shape = 'u32[144,128]{1,0:T(1,128)}', space=vmem, size = 0x12000, scoped, tag = 'internal scratch']
  #allocation2 [shape = 'f32[128,128]{1,0:T(8,128)}', space=vmem, size = 0x10000, scoped, tag = 'scratch operand']
  %s0 = inlined_call_operand.vmem [shape: bf16[2,512,512], index: 0, kind: input, shape index: {}]
  %s1 = inlined_call_operand.vmem [shape: bf16[2,512,256], index: 1, kind: input, shape index: {}]
  %s2 = inlined_call_operand.vmem [shape: bf16[2,512,256], index: 2, kind: input, shape index: {}]
  %s3 = inlined_call_operand.vmem [shape: bf16[2,512,256], index: 3, kind: input, shape index: {}]
  %s4 = inlined_call_operand.vmem [shape: bf16[2,512,512], index: 4, kind: output, shape index: {}]
  %s5 = sld [smem:[#allocation0]]
  $region233: #{_lambda_.1} parent=0
    _
  %s7 = ssub.s32 1, %s5
  %s8 = scalar_select 0, %s7, %s5
  $region1: #{_lambda_.1} parent=0
    #allocation3 [shape = 'u8[262144]{0}', space=vmem, size = 0x40000, scoped, tag = 'input window, operand 0']
    #allocation4 [shape = 'u8[131072]{0}', space=vmem, size = 0x20000, scoped, tag = 'input window, operand 1']
    #allocation5 [shape = 'u8[131072]{0}', space=vmem, size = 0x20000, scoped, tag = 'input window, operand 2']
    #allocation6 [shape = 'u8[131072]{0}', space=vmem, size = 0x20000, scoped, tag = 'input window, operand 3']
    #allocation7 [shape = 'u8[262144]{0}', space=vmem, size = 0x40000, scoped, tag = 'output window, operand 0']
    loop: start=0, step=1, limit=10
    $region2: #{_lambda_.1} parent=1 // loop_pre_header
      _
    $region3: #{_lambda_.1} parent=1 // loop_header
      %s10 = sphi 0, %s14
      %p11 = scmp.ge.s32.totalorder %s10, 10
      %s17 = sphi 0, %s36
      %s18 = sphi 0, %s32
      %s19 = sphi 0, %s28
      %s20 = sphi 0, %s17
      %s21 = sphi 0, %s18
      %s22 = sphi 0, %s19
      %s23 = sphi 0, %s20
      %s24 = sphi 0, %s21
      %s25 = sphi 0, %s22
      %s43 = sphi 0, %s45
      %s46 = sphi 0, %s43
      %s47 = sphi 0, %s46
      %s63 = sphi 0, %s47
      %s73 = sphi 0, %s75
      %s76 = sphi 0, %s73
      %s77 = sphi 0, %s76
      %s93 = sphi 0, %s77
      %s103 = sphi 0, %s105
      %s106 = sphi 0, %s103
      %s107 = sphi 0, %s106
      %s123 = sphi 0, %s107
      %s133 = sphi 0, %s135
      %s136 = sphi 0, %s133
      %s137 = sphi 0, %s136
      %s153 = sphi 0, %s137
      %s163 = sphi 0, %s165
      %s166 = sphi 0, %s163
      %s167 = sphi 0, %s166
      %s183 = sphi 0, %s167
    $region4: #{_lambda_.1} parent=1 // loop_header_branch
      %13 = sbr.rel (%p11) target = $region8
    $region5: #{_lambda_.1} parent=1 // loop_body
      %s15 = ssub.s32 %s10, 1
      %s16 = ssub.s32 %s10, 2
      %s26 = sadd.s32 1, %s19
      %p27 = scmp.ge.s32.totalorder %s26, 2
      %s28 = scalar_select %p27, 0, %s26
      %s29 = sadd.s32 1, %s18
      %s30 = scalar_select %p27, %s29, %s18
      %p31 = scmp.ge.s32.totalorder %s30, 2
      %s32 = scalar_select %p31, 0, %s30
      %s33 = sadd.s32 1, %s17
      %s34 = scalar_select %p31, %s33, %s17
      %p35 = scmp.ge.s32.totalorder %s34, 2
      %s36 = scalar_select %p35, 0, %s34
      %s37 = ssub.s32 %s17, %s36
      %s38 = ssub.s32 %s19, %s28
      %s39 = sor.u32 %s37, %s38
      %s40 = ssub.s32 %s18, %s32
      %s41 = sor.u32 %s39, %s40
      %p42 = scmp.eq.s32.totalorder %s41, 0
      %s44 = sadd.s32 %s43, 1
      %s45 = scalar_select %p42, %s43, %s44
      %p48 = pneg %p42
      %p49 = scmp.eq.s32.totalorder %s10, 7
      %p50 = por %p48, %p49
      %p51 = scmp.ne.s32.totalorder %s43, %s46
      %p52 = scmp.eq.s32.totalorder %s10, 0
      %p53 = por %p51, %p52
      %p54 = scmp.ne.s32.totalorder %s43, %s46
      %p55 = scmp.eq.s32.totalorder %s15, 7
      %p56 = por %p54, %p55
      %p57 = scmp.ne.s32.totalorder %s46, %s47
      %p58 = scmp.eq.s32.totalorder %s15, 0
      %p59 = por %p57, %p58
      %p60 = scmp.ne.s32.totalorder %s46, %s47
      %p61 = scmp.eq.s32.totalorder %s16, 7
      %p62 = por %p60, %p61
      %p64 = scmp.ne.s32.totalorder %s47, %s63
      %p65 = scmp.eq.s32.totalorder %s16, 0
      %p66 = por %p64, %p65
      %s67 = ssub.s32 %s17, %s36
      %s68 = ssub.s32 %s19, %s28
      %s69 = sor.u32 %s67, %s68
      %s70 = ssub.s32 %s18, %s32
      %s71 = sor.u32 %s69, %s70
      %p72 = scmp.eq.s32.totalorder %s71, 0
      %s74 = sadd.s32 %s73, 1
      %s75 = scalar_select %p72, %s73, %s74
      %p78 = pneg %p72
      %p79 = scmp.eq.s32.totalorder %s10, 7
      %p80 = por %p78, %p79
      %p81 = scmp.ne.s32.totalorder %s73, %s76
      %p82 = scmp.eq.s32.totalorder %s10, 0
      %p83 = por %p81, %p82
      %p84 = scmp.ne.s32.totalorder %s73, %s76
      %p85 = scmp.eq.s32.totalorder %s15, 7
      %p86 = por %p84, %p85
      %p87 = scmp.ne.s32.totalorder %s76, %s77
      %p88 = scmp.eq.s32.totalorder %s15, 0
      %p89 = por %p87, %p88
      %p90 = scmp.ne.s32.totalorder %s76, %s77
      %p91 = scmp.eq.s32.totalorder %s16, 7
      %p92 = por %p90, %p91
      %p94 = scmp.ne.s32.totalorder %s77, %s93
      %p95 = scmp.eq.s32.totalorder %s16, 0
      %p96 = por %p94, %p95
      %s97 = ssub.s32 %s17, %s36
      %s98 = ssub.s32 %s19, %s28
      %s99 = sor.u32 %s97, %s98
      %s100 = ssub.s32 %s18, %s32
      %s101 = sor.u32 %s99, %s100
      %p102 = scmp.eq.s32.totalorder %s101, 0
      %s104 = sadd.s32 %s103, 1
      %s105 = scalar_select %p102, %s103, %s104
      %p108 = pneg %p102
      %p109 = scmp.eq.s32.totalorder %s10, 7
      %p110 = por %p108, %p109
      %p111 = scmp.ne.s32.totalorder %s103, %s106
      %p112 = scmp.eq.s32.totalorder %s10, 0
      %p113 = por %p111, %p112
      %p114 = scmp.ne.s32.totalorder %s103, %s106
      %p115 = scmp.eq.s32.totalorder %s15, 7
      %p116 = por %p114, %p115
      %p117 = scmp.ne.s32.totalorder %s106, %s107
      %p118 = scmp.eq.s32.totalorder %s15, 0
      %p119 = por %p117, %p118
      %p120 = scmp.ne.s32.totalorder %s106, %s107
      %p121 = scmp.eq.s32.totalorder %s16, 7
      %p122 = por %p120, %p121
      %p124 = scmp.ne.s32.totalorder %s107, %s123
      %p125 = scmp.eq.s32.totalorder %s16, 0
      %p126 = por %p124, %p125
      %s127 = ssub.s32 %s17, %s36
      %s128 = ssub.s32 %s19, %s28
      %s129 = sor.u32 %s127, %s128
      %s130 = ssub.s32 %s18, %s32
      %s131 = sor.u32 %s129, %s130
      %p132 = scmp.eq.s32.totalorder %s131, 0
      %s134 = sadd.s32 %s133, 1
      %s135 = scalar_select %p132, %s133, %s134
      %p138 = pneg %p132
      %p139 = scmp.eq.s32.totalorder %s10, 7
      %p140 = por %p138, %p139
      %p141 = scmp.ne.s32.totalorder %s133, %s136
      %p142 = scmp.eq.s32.totalorder %s10, 0
      %p143 = por %p141, %p142
      %p144 = scmp.ne.s32.totalorder %s133, %s136
      %p145 = scmp.eq.s32.totalorder %s15, 7
      %p146 = por %p144, %p145
      %p147 = scmp.ne.s32.totalorder %s136, %s137
      %p148 = scmp.eq.s32.totalorder %s15, 0
      %p149 = por %p147, %p148
      %p150 = scmp.ne.s32.totalorder %s136, %s137
      %p151 = scmp.eq.s32.totalorder %s16, 7
      %p152 = por %p150, %p151
      %p154 = scmp.ne.s32.totalorder %s137, %s153
      %p155 = scmp.eq.s32.totalorder %s16, 0
      %p156 = por %p154, %p155
      %s157 = ssub.s32 %s17, %s36
      %s158 = ssub.s32 %s19, %s28
      %s159 = sor.u32 %s157, %s158
      %s160 = ssub.s32 %s18, %s32
      %s161 = sor.u32 %s159, %s160
      %p162 = scmp.eq.s32.totalorder %s161, 0
      %s164 = sadd.s32 %s163, 1
      %s165 = scalar_select %p162, %s163, %s164
      %p168 = pneg %p162
      %p169 = scmp.eq.s32.totalorder %s10, 7
      %p170 = por %p168, %p169
      %p171 = scmp.ne.s32.totalorder %s163, %s166
      %p172 = scmp.eq.s32.totalorder %s10, 0
      %p173 = por %p171, %p172
      %p174 = scmp.ne.s32.totalorder %s163, %s166
      %p175 = scmp.eq.s32.totalorder %s15, 7
      %p176 = por %p174, %p175
      %p177 = scmp.ne.s32.totalorder %s166, %s167
      %p178 = scmp.eq.s32.totalorder %s15, 0
      %p179 = por %p177, %p178
      %p180 = scmp.ne.s32.totalorder %s166, %s167
      %p181 = scmp.eq.s32.totalorder %s16, 7
      %p182 = por %p180, %p181
      %p184 = scmp.ne.s32.totalorder %s167, %s183
      %p185 = scmp.eq.s32.totalorder %s16, 0
      %p186 = por %p184, %p185
      %p187 = scmp.le.s32.totalorder 1, %s10
      %p188 = scmp.lt.s32.totalorder %s10, 9
      %p189 = pnand %p187, %p188
      %p190 = pneg %p189
      // Predicated region
      $region9: #{_lambda_.1} parent=5 // pred_check
        _
      $region10: #{_lambda_.1} parent=5 // pred_check_branch
        %192 = sbr.rel (%p189) target = $region12
      $region11: #{_lambda_.1} parent=5 // pred_region
        %s193 = ssub.s32 %s10, 1
      $region12: #{_lambda_.1} parent=5 // pred_fallthru
        _
      %p194 = scmp.lt.s32.totalorder %s10, 8
      // Predicated region
      $region13: #{_lambda_.1} parent=5 // pred_check
        %p195 = pneg %p194
      $region14: #{_lambda_.1} parent=5 // pred_check_branch
        %197 = sbr.rel (%p195) target = $region16
      $region15: #{_lambda_.1} parent=5 // pred_region
        // Predicated region
        $region17: #{_lambda_.1} parent=15 // pred_check
          %p198 = pneg %p53
        $region18: #{_lambda_.1} parent=15 // pred_check_branch
          %200 = sbr.rel (%p198) target = $region20
        $region19: #{_lambda_.1} parent=15 // pred_region
          %s201 = sand.u32 %s43, 1
          %s202 = sand.u32 %s43, 1
          %s203 = smul.addr %s202, 256
          %s204 = scalar_lea.vmem [#allocation3], %s203
          %s205 = smul.u32 32, %s19
          %s206 = smul.u32 2, %s18
          %s207 = smul.addr %s205, 4
          %s208 = sadd.s32 %s206, %s207
          %s209 = smul.addr %s17, 256
          %s210 = sadd.s32 %s208, %s209
          %s211 = smul.addr %s210, 4
          %s212 = scalar_lea.vmem %s0, %s211
          // Predicated region
          $region21: #{_lambda_.1} parent=19 // pred_check
            _
          $region22: #{_lambda_.1} parent=19 // pred_check_branch
            %214 = sbr.rel (0) target = $region24
          $region23: #{_lambda_.1} parent=19 // pred_region
            // Predicated region
            $region25: #{_lambda_.1} parent=23 // pred_check
              _
            $region26: #{_lambda_.1} parent=23 // pred_check_branch
              %216 = sbr.rel (0) target = $region28
            $region27: #{_lambda_.1} parent=23 // pred_region
              // Predicated region
              $region40: #{_lambda_.1} parent=27 // pred_check
                _
              $region41: #{_lambda_.1} parent=27 // pred_check_branch
                %293 = sbr.rel (0) target = $region43
              $region42: #{_lambda_.1} parent=27 // pred_region
                loop: start=0, step=1, limit=1
                $region44: #{_lambda_.1} parent=42 // loop_pre_header
                  _
                $region45: #{_lambda_.1} parent=42 // loop_header
                  %s295 = sphi 0, %s299
                  %p296 = scmp.ge.s32.totalorder %s295, 1
                  %s300 = sphi %s212, %s212
                  %s301 = sphi %s204, %s204
                $region46: #{_lambda_.1} parent=42 // loop_header_branch
                  %298 = sbr.rel (%p296) target = $region50
                $region47: #{_lambda_.1} parent=42 // loop_body
                  %v302 = vld [vmem:[%s300] sm:$0xff]
                  %303 = vst [vmem:[%s301] sm:$0xff] %v302
                  %v304 = vld [vmem:[%s300 + $0x10] sm:$0xff]
                  %305 = vst [vmem:[%s301 + $0x8] sm:$0xff] %v304
                  %v306 = vld [vmem:[%s300 + $0x20] sm:$0xff]
                  %307 = vst [vmem:[%s301 + $0x10] sm:$0xff] %v306
                  %v308 = vld [vmem:[%s300 + $0x30] sm:$0xff]
                  %309 = vst [vmem:[%s301 + $0x18] sm:$0xff] %v308
                  %v310 = vld [vmem:[%s300 + $0x40] sm:$0xff]
                  %311 = vst [vmem:[%s301 + $0x20] sm:$0xff] %v310
                  %v312 = vld [vmem:[%s300 + $0x50] sm:$0xff]
                  %313 = vst [vmem:[%s301 + $0x28] sm:$0xff] %v312
                  %v314 = vld [vmem:[%s300 + $0x60] sm:$0xff]
                  %315 = vst [vmem:[%s301 + $0x30] sm:$0xff] %v314
                  %v316 = vld [vmem:[%s300 + $0x70] sm:$0xff]
                  %317 = vst [vmem:[%s301 + $0x38] sm:$0xff] %v316
                  %v318 = vld [vmem:[%s300 + $0x80] sm:$0xff]
                  %319 = vst [vmem:[%s301 + $0x40] sm:$0xff] %v318
                  %v320 = vld [vmem:[%s300 + $0x90] sm:$0xff]
                  %321 = vst [vmem:[%s301 + $0x48] sm:$0xff] %v320
                  %v322 = vld [vmem:[%s300 + $0xa0] sm:$0xff]
                  %323 = vst [vmem:[%s301 + $0x50] sm:$0xff] %v322
                  %v324 = vld [vmem:[%s300 + $0xb0] sm:$0xff]
                  %325 = vst [vmem:[%s301 + $0x58] sm:$0xff] %v324
                  %v326 = vld [vmem:[%s300 + $0xc0] sm:$0xff]
                  %327 = vst [vmem:[%s301 + $0x60] sm:$0xff] %v326
                  %v328 = vld [vmem:[%s300 + $0xd0] sm:$0xff]
                  %329 = vst [vmem:[%s301 + $0x68] sm:$0xff] %v328
                  %v330 = vld [vmem:[%s300 + $0xe0] sm:$0xff]
                  %331 = vst [vmem:[%s301 + $0x70] sm:$0xff] %v330
                  %v332 = vld [vmem:[%s300 + $0xf0] sm:$0xff]
                  %333 = vst [vmem:[%s301 + $0x78] sm:$0xff] %v332
                  %v334 = vld [vmem:[%s300 + $0x100] sm:$0xff]
                  %335 = vst [vmem:[%s301 + $0x80] sm:$0xff] %v334
                  %v336 = vld [vmem:[%s300 + $0x110] sm:$0xff]
                  %337 = vst [vmem:[%s301 + $0x88] sm:$0xff] %v336
                  %v338 = vld [vmem:[%s300 + $0x120] sm:$0xff]
                  %339 = vst [vmem:[%s301 + $0x90] sm:$0xff] %v338
                  %v340 = vld [vmem:[%s300 + $0x130] sm:$0xff]
                  %341 = vst [vmem:[%s301 + $0x98] sm:$0xff] %v340
                  %v342 = vld [vmem:[%s300 + $0x140] sm:$0xff]
                  %343 = vst [vmem:[%s301 + $0xa0] sm:$0xff] %v342
                  %v344 = vld [vmem:[%s300 + $0x150] sm:$0xff]
                  %345 = vst [vmem:[%s301 + $0xa8] sm:$0xff] %v344
                  %v346 = vld [vmem:[%s300 + $0x160] sm:$0xff]
                  %347 = vst [vmem:[%s301 + $0xb0] sm:$0xff] %v346
                  %v348 = vld [vmem:[%s300 + $0x170] sm:$0xff]
                  %349 = vst [vmem:[%s301 + $0xb8] sm:$0xff] %v348
                  %v350 = vld [vmem:[%s300 + $0x180] sm:$0xff]
                  %351 = vst [vmem:[%s301 + $0xc0] sm:$0xff] %v350
                  %v352 = vld [vmem:[%s300 + $0x190] sm:$0xff]
                  %353 = vst [vmem:[%s301 + $0xc8] sm:$0xff] %v352
                  %v354 = vld [vmem:[%s300 + $0x1a0] sm:$0xff]
                  %355 = vst [vmem:[%s301 + $0xd0] sm:$0xff] %v354
                  %v356 = vld [vmem:[%s300 + $0x1b0] sm:$0xff]
                  %357 = vst [vmem:[%s301 + $0xd8] sm:$0xff] %v356
                  %v358 = vld [vmem:[%s300 + $0x1c0] sm:$0xff]
                  %359 = vst [vmem:[%s301 + $0xe0] sm:$0xff] %v358
                  %v360 = vld [vmem:[%s300 + $0x1d0] sm:$0xff]
                  %361 = vst [vmem:[%s301 + $0xe8] sm:$0xff] %v360
                  %v362 = vld [vmem:[%s300 + $0x1e0] sm:$0xff]
                  %363 = vst [vmem:[%s301 + $0xf0] sm:$0xff] %v362
                  %v364 = vld [vmem:[%s300 + $0x1f0] sm:$0xff]
                  %365 = vst [vmem:[%s301 + $0xf8] sm:$0xff] %v364
                $region48: #{_lambda_.1} parent=42 // loop_footer
                  %s299 = sadd.s32 1, %s295
                $region49: #{_lambda_.1} parent=42 // loop_footer_branch
                  %294 = sbr.rel target = $region45
                $region50: #{_lambda_.1} parent=42 // loop_exit
                  _
              $region43: #{_lambda_.1} parent=27 // pred_fallthru
                _
              // Predicated region
              $region51: #{_lambda_.1} parent=27 // pred_check
                _
              $region52: #{_lambda_.1} parent=27 // pred_check_branch
                %367 = sbr.rel target = $region54
              $region53: #{_lambda_.1} parent=27 // pred_region
                _
              $region54: #{_lambda_.1} parent=27 // pred_fallthru
                _
            $region28: #{_lambda_.1} parent=23 // pred_fallthru
              _
            // Predicated region
            $region29: #{_lambda_.1} parent=23 // pred_check
              _
            $region30: #{_lambda_.1} parent=23 // pred_check_branch
              %218 = sbr.rel target = $region32
            $region31: #{_lambda_.1} parent=23 // pred_region
              loop: start=0, step=1, limit=1
              $region33: #{_lambda_.1} parent=31 // loop_pre_header
                _
              $region34: #{_lambda_.1} parent=31 // loop_header
                %s221 = sphi 0, %s225
                %p222 = scmp.ge.s32.totalorder %s221, 1
                %s226 = sphi %s212, %s212
                %s227 = sphi %s204, %s204
              $region35: #{_lambda_.1} parent=31 // loop_header_branch
                %224 = sbr.rel (%p222) target = $region39
              $region36: #{_lambda_.1} parent=31 // loop_body
                %v228 = vld [vmem:[%s226] sm:$0xff]
                %229 = vst [vmem:[%s227] sm:$0xff] %v228
                %v230 = vld [vmem:[%s226 + $0x10] sm:$0xff]
                %231 = vst [vmem:[%s227 + $0x8] sm:$0xff] %v230
                %v232 = vld [vmem:[%s226 + $0x20] sm:$0xff]
                %233 = vst [vmem:[%s227 + $0x10] sm:$0xff] %v232
                %v234 = vld [vmem:[%s226 + $0x30] sm:$0xff]
                %235 = vst [vmem:[%s227 + $0x18] sm:$0xff] %v234
                %v236 = vld [vmem:[%s226 + $0x40] sm:$0xff]
                %237 = vst [vmem:[%s227 + $0x20] sm:$0xff] %v236
                %v238 = vld [vmem:[%s226 + $0x50] sm:$0xff]
                %239 = vst [vmem:[%s227 + $0x28] sm:$0xff] %v238
                %v240 = vld [vmem:[%s226 + $0x60] sm:$0xff]
                %241 = vst [vmem:[%s227 + $0x30] sm:$0xff] %v240
                %v242 = vld [vmem:[%s226 + $0x70] sm:$0xff]
                %243 = vst [vmem:[%s227 + $0x38] sm:$0xff] %v242
                %v244 = vld [vmem:[%s226 + $0x80] sm:$0xff]
                %245 = vst [vmem:[%s227 + $0x40] sm:$0xff] %v244
                %v246 = vld [vmem:[%s226 + $0x90] sm:$0xff]
                %247 = vst [vmem:[%s227 + $0x48] sm:$0xff] %v246
                %v248 = vld [vmem:[%s226 + $0xa0] sm:$0xff]
                %249 = vst [vmem:[%s227 + $0x50] sm:$0xff] %v248
                %v250 = vld [vmem:[%s226 + $0xb0] sm:$0xff]
                %251 = vst [vmem:[%s227 + $0x58] sm:$0xff] %v250
                %v252 = vld [vmem:[%s226 + $0xc0] sm:$0xff]
                %253 = vst [vmem:[%s227 + $0x60] sm:$0xff] %v252
                %v254 = vld [vmem:[%s226 + $0xd0] sm:$0xff]
                %255 = vst [vmem:[%s227 + $0x68] sm:$0xff] %v254
                %v256 = vld [vmem:[%s226 + $0xe0] sm:$0xff]
                %257 = vst [vmem:[%s227 + $0x70] sm:$0xff] %v256
                %v258 = vld [vmem:[%s226 + $0xf0] sm:$0xff]
                %259 = vst [vmem:[%s227 + $0x78] sm:$0xff] %v258
                %v260 = vld [vmem:[%s226 + $0x100] sm:$0xff]
                %261 = vst [vmem:[%s227 + $0x80] sm:$0xff] %v260
                %v262 = vld [vmem:[%s226 + $0x110] sm:$0xff]
                %263 = vst [vmem:[%s227 + $0x88] sm:$0xff] %v262
                %v264 = vld [vmem:[%s226 + $0x120] sm:$0xff]
                %265 = vst [vmem:[%s227 + $0x90] sm:$0xff] %v264
                %v266 = vld [vmem:[%s226 + $0x130] sm:$0xff]
                %267 = vst [vmem:[%s227 + $0x98] sm:$0xff] %v266
                %v268 = vld [vmem:[%s226 + $0x140] sm:$0xff]
                %269 = vst [vmem:[%s227 + $0xa0] sm:$0xff] %v268
                %v270 = vld [vmem:[%s226 + $0x150] sm:$0xff]
                %271 = vst [vmem:[%s227 + $0xa8] sm:$0xff] %v270
                %v272 = vld [vmem:[%s226 + $0x160] sm:$0xff]
                %273 = vst [vmem:[%s227 + $0xb0] sm:$0xff] %v272
                %v274 = vld [vmem:[%s226 + $0x170] sm:$0xff]
                %275 = vst [vmem:[%s227 + $0xb8] sm:$0xff] %v274
                %v276 = vld [vmem:[%s226 + $0x180] sm:$0xff]
                %277 = vst [vmem:[%s227 + $0xc0] sm:$0xff] %v276
                %v278 = vld [vmem:[%s226 + $0x190] sm:$0xff]
                %279 = vst [vmem:[%s227 + $0xc8] sm:$0xff] %v278
                %v280 = vld [vmem:[%s226 + $0x1a0] sm:$0xff]
                %281 = vst [vmem:[%s227 + $0xd0] sm:$0xff] %v280
                %v282 = vld [vmem:[%s226 + $0x1b0] sm:$0xff]
                %283 = vst [vmem:[%s227 + $0xd8] sm:$0xff] %v282
                %v284 = vld [vmem:[%s226 + $0x1c0] sm:$0xff]
                %285 = vst [vmem:[%s227 + $0xe0] sm:$0xff] %v284
                %v286 = vld [vmem:[%s226 + $0x1d0] sm:$0xff]
                %287 = vst [vmem:[%s227 + $0xe8] sm:$0xff] %v286
                %v288 = vld [vmem:[%s226 + $0x1e0] sm:$0xff]
                %289 = vst [vmem:[%s227 + $0xf0] sm:$0xff] %v288
                %v290 = vld [vmem:[%s226 + $0x1f0] sm:$0xff]
                %291 = vst [vmem:[%s227 + $0xf8] sm:$0xff] %v290
              $region37: #{_lambda_.1} parent=31 // loop_footer
                %s225 = sadd.s32 1, %s221
              $region38: #{_lambda_.1} parent=31 // loop_footer_branch
                %220 = sbr.rel target = $region34
              $region39: #{_lambda_.1} parent=31 // loop_exit
                _
            $region32: #{_lambda_.1} parent=23 // pred_fallthru
              _
          $region24: #{_lambda_.1} parent=19 // pred_fallthru
            _
          %368 = vnop
        $region20: #{_lambda_.1} parent=15 // pred_fallthru
          _
        // Predicated region
        $region55: #{_lambda_.1} parent=15 // pred_check
          %p369 = pneg %p83
        $region56: #{_lambda_.1} parent=15 // pred_check_branch
          %371 = sbr.rel (%p369) target = $region58
        $region57: #{_lambda_.1} parent=15 // pred_region
          %s372 = sand.u32 %s73, 1
          %s373 = sand.u32 %s73, 1
          %s374 = smul.addr %s373, 128
          %s375 = scalar_lea.vmem [#allocation4], %s374
          %s376 = smul.u32 32, %s19
          %s377 = smul.addr %s376, 2
          %s378 = sadd.s32 %s18, %s377
          %s379 = smul.addr %s17, 128
          %s380 = sadd.s32 %s378, %s379
          %s381 = smul.addr %s380, 4
          %s382 = scalar_lea.vmem %s1, %s381
          // Predicated region
          $region59: #{_lambda_.1} parent=57 // pred_check
            _
          $region60: #{_lambda_.1} parent=57 // pred_check_branch
            %384 = sbr.rel (0) target = $region62
          $region61: #{_lambda_.1} parent=57 // pred_region
            // Predicated region
            $region63: #{_lambda_.1} parent=61 // pred_check
              _
            $region64: #{_lambda_.1} parent=61 // pred_check_branch
              %386 = sbr.rel target = $region66
            $region65: #{_lambda_.1} parent=61 // pred_region
              // Predicated region
              $region78: #{_lambda_.1} parent=65 // pred_check
                _
              $region79: #{_lambda_.1} parent=65 // pred_check_branch
                %463 = sbr.rel (0) target = $region81
              $region80: #{_lambda_.1} parent=65 // pred_region
                loop: start=0, step=1, limit=1
                $region82: #{_lambda_.1} parent=80 // loop_pre_header
                  _
                $region83: #{_lambda_.1} parent=80 // loop_header
                  %s465 = sphi 0, %s469
                  %p466 = scmp.ge.s32.totalorder %s465, 1
                  %s470 = sphi %s382, %s382
                  %s471 = sphi %s375, %s375
                $region84: #{_lambda_.1} parent=80 // loop_header_branch
                  %468 = sbr.rel (%p466) target = $region88
                $region85: #{_lambda_.1} parent=80 // loop_body
                  _
                $region86: #{_lambda_.1} parent=80 // loop_footer
                  %s469 = sadd.s32 1, %s465
                $region87: #{_lambda_.1} parent=80 // loop_footer_branch
                  %464 = sbr.rel target = $region83
                $region88: #{_lambda_.1} parent=80 // loop_exit
                  _
                loop: start=0, step=1, limit=1
                $region89: #{_lambda_.1} parent=80 // loop_pre_header
                  _
                $region90: #{_lambda_.1} parent=80 // loop_header
                  %s474 = sphi 0, %s478
                  %p475 = scmp.ge.s32.totalorder %s474, 1
                  %s479 = sphi %s382, %s382
                  %s480 = sphi %s375, %s375
                $region91: #{_lambda_.1} parent=80 // loop_header_branch
                  %477 = sbr.rel (%p475) target = $region95
                $region92: #{_lambda_.1} parent=80 // loop_body
                  %v481 = vld [vmem:[%s479] sm:$0xf]
                  %482 = vst [vmem:[%s480] sm:$0xf] %v481
                  %v483 = vld [vmem:[%s479 + $0x8] sm:$0xf]
                  %484 = vst [vmem:[%s480 + $0x4] sm:$0xf] %v483
                  %v485 = vld [vmem:[%s479 + $0x10] sm:$0xf]
                  %486 = vst [vmem:[%s480 + $0x8] sm:$0xf] %v485
                  %v487 = vld [vmem:[%s479 + $0x18] sm:$0xf]
                  %488 = vst [vmem:[%s480 + $0xc] sm:$0xf] %v487
                  %v489 = vld [vmem:[%s479 + $0x20] sm:$0xf]
                  %490 = vst [vmem:[%s480 + $0x10] sm:$0xf] %v489
                  %v491 = vld [vmem:[%s479 + $0x28] sm:$0xf]
                  %492 = vst [vmem:[%s480 + $0x14] sm:$0xf] %v491
                  %v493 = vld [vmem:[%s479 + $0x30] sm:$0xf]
                  %494 = vst [vmem:[%s480 + $0x18] sm:$0xf] %v493
                  %v495 = vld [vmem:[%s479 + $0x38] sm:$0xf]
                  %496 = vst [vmem:[%s480 + $0x1c] sm:$0xf] %v495
                  %v497 = vld [vmem:[%s479 + $0x40] sm:$0xf]
                  %498 = vst [vmem:[%s480 + $0x20] sm:$0xf] %v497
                  %v499 = vld [vmem:[%s479 + $0x48] sm:$0xf]
                  %500 = vst [vmem:[%s480 + $0x24] sm:$0xf] %v499
                  %v501 = vld [vmem:[%s479 + $0x50] sm:$0xf]
                  %502 = vst [vmem:[%s480 + $0x28] sm:$0xf] %v501
                  %v503 = vld [vmem:[%s479 + $0x58] sm:$0xf]
                  %504 = vst [vmem:[%s480 + $0x2c] sm:$0xf] %v503
                  %v505 = vld [vmem:[%s479 + $0x60] sm:$0xf]
                  %506 = vst [vmem:[%s480 + $0x30] sm:$0xf] %v505
                  %v507 = vld [vmem:[%s479 + $0x68] sm:$0xf]
                  %508 = vst [vmem:[%s480 + $0x34] sm:$0xf] %v507
                  %v509 = vld [vmem:[%s479 + $0x70] sm:$0xf]
                  %510 = vst [vmem:[%s480 + $0x38] sm:$0xf] %v509
                  %v511 = vld [vmem:[%s479 + $0x78] sm:$0xf]
                  %512 = vst [vmem:[%s480 + $0x3c] sm:$0xf] %v511
                  %v513 = vld [vmem:[%s479 + $0x80] sm:$0xf]
                  %514 = vst [vmem:[%s480 + $0x40] sm:$0xf] %v513
                  %v515 = vld [vmem:[%s479 + $0x88] sm:$0xf]
                  %516 = vst [vmem:[%s480 + $0x44] sm:$0xf] %v515
                  %v517 = vld [vmem:[%s479 + $0x90] sm:$0xf]
                  %518 = vst [vmem:[%s480 + $0x48] sm:$0xf] %v517
                  %v519 = vld [vmem:[%s479 + $0x98] sm:$0xf]
                  %520 = vst [vmem:[%s480 + $0x4c] sm:$0xf] %v519
                  %v521 = vld [vmem:[%s479 + $0xa0] sm:$0xf]
                  %522 = vst [vmem:[%s480 + $0x50] sm:$0xf] %v521
                  %v523 = vld [vmem:[%s479 + $0xa8] sm:$0xf]
                  %524 = vst [vmem:[%s480 + $0x54] sm:$0xf] %v523
                  %v525 = vld [vmem:[%s479 + $0xb0] sm:$0xf]
                  %526 = vst [vmem:[%s480 + $0x58] sm:$0xf] %v525
                  %v527 = vld [vmem:[%s479 + $0xb8] sm:$0xf]
                  %528 = vst [vmem:[%s480 + $0x5c] sm:$0xf] %v527
                  %v529 = vld [vmem:[%s479 + $0xc0] sm:$0xf]
                  %530 = vst [vmem:[%s480 + $0x60] sm:$0xf] %v529
                  %v531 = vld [vmem:[%s479 + $0xc8] sm:$0xf]
                  %532 = vst [vmem:[%s480 + $0x64] sm:$0xf] %v531
                  %v533 = vld [vmem:[%s479 + $0xd0] sm:$0xf]
                  %534 = vst [vmem:[%s480 + $0x68] sm:$0xf] %v533
                  %v535 = vld [vmem:[%s479 + $0xd8] sm:$0xf]
                  %536 = vst [vmem:[%s480 + $0x6c] sm:$0xf] %v535
                  %v537 = vld [vmem:[%s479 + $0xe0] sm:$0xf]
                  %538 = vst [vmem:[%s480 + $0x70] sm:$0xf] %v537
                  %v539 = vld [vmem:[%s479 + $0xe8] sm:$0xf]
                  %540 = vst [vmem:[%s480 + $0x74] sm:$0xf] %v539
                  %v541 = vld [vmem:[%s479 + $0xf0] sm:$0xf]
                  %542 = vst [vmem:[%s480 + $0x78] sm:$0xf] %v541
                  %v543 = vld [vmem:[%s479 + $0xf8] sm:$0xf]
                  %544 = vst [vmem:[%s480 + $0x7c] sm:$0xf] %v543
                $region93: #{_lambda_.1} parent=80 // loop_footer
                  %s478 = sadd.s32 1, %s474
                $region94: #{_lambda_.1} parent=80 // loop_footer_branch
                  %473 = sbr.rel target = $region90
                $region95: #{_lambda_.1} parent=80 // loop_exit
                  _
              $region81: #{_lambda_.1} parent=65 // pred_fallthru
                _
            $region66: #{_lambda_.1} parent=61 // pred_fallthru
              _
            // Predicated region
            $region67: #{_lambda_.1} parent=61 // pred_check
              _
            $region68: #{_lambda_.1} parent=61 // pred_check_branch
              %388 = sbr.rel (0) target = $region70
            $region69: #{_lambda_.1} parent=61 // pred_region
              loop: start=0, step=1, limit=1
              $region71: #{_lambda_.1} parent=69 // loop_pre_header
                _
              $region72: #{_lambda_.1} parent=69 // loop_header
                %s391 = sphi 0, %s395
                %p392 = scmp.ge.s32.totalorder %s391, 1
                %s396 = sphi %s382, %s382
                %s397 = sphi %s375, %s375
              $region73: #{_lambda_.1} parent=69 // loop_header_branch
                %394 = sbr.rel (%p392) target = $region77
              $region74: #{_lambda_.1} parent=69 // loop_body
                %v398 = vld [vmem:[%s396] sm:$0xf]
                %399 = vst [vmem:[%s397] sm:$0xf] %v398
                %v400 = vld [vmem:[%s396 + $0x8] sm:$0xf]
                %401 = vst [vmem:[%s397 + $0x4] sm:$0xf] %v400
                %v402 = vld [vmem:[%s396 + $0x10] sm:$0xf]
                %403 = vst [vmem:[%s397 + $0x8] sm:$0xf] %v402
                %v404 = vld [vmem:[%s396 + $0x18] sm:$0xf]
                %405 = vst [vmem:[%s397 + $0xc] sm:$0xf] %v404
                %v406 = vld [vmem:[%s396 + $0x20] sm:$0xf]
                %407 = vst [vmem:[%s397 + $0x10] sm:$0xf] %v406
                %v408 = vld [vmem:[%s396 + $0x28] sm:$0xf]
                %409 = vst [vmem:[%s397 + $0x14] sm:$0xf] %v408
                %v410 = vld [vmem:[%s396 + $0x30] sm:$0xf]
                %411 = vst [vmem:[%s397 + $0x18] sm:$0xf] %v410
                %v412 = vld [vmem:[%s396 + $0x38] sm:$0xf]
                %413 = vst [vmem:[%s397 + $0x1c] sm:$0xf] %v412
                %v414 = vld [vmem:[%s396 + $0x40] sm:$0xf]
                %415 = vst [vmem:[%s397 + $0x20] sm:$0xf] %v414
                %v416 = vld [vmem:[%s396 + $0x48] sm:$0xf]
                %417 = vst [vmem:[%s397 + $0x24] sm:$0xf] %v416
                %v418 = vld [vmem:[%s396 + $0x50] sm:$0xf]
                %419 = vst [vmem:[%s397 + $0x28] sm:$0xf] %v418
                %v420 = vld [vmem:[%s396 + $0x58] sm:$0xf]
                %421 = vst [vmem:[%s397 + $0x2c] sm:$0xf] %v420
                %v422 = vld [vmem:[%s396 + $0x60] sm:$0xf]
                %423 = vst [vmem:[%s397 + $0x30] sm:$0xf] %v422
                %v424 = vld [vmem:[%s396 + $0x68] sm:$0xf]
                %425 = vst [vmem:[%s397 + $0x34] sm:$0xf] %v424
                %v426 = vld [vmem:[%s396 + $0x70] sm:$0xf]
                %427 = vst [vmem:[%s397 + $0x38] sm:$0xf] %v426
                %v428 = vld [vmem:[%s396 + $0x78] sm:$0xf]
                %429 = vst [vmem:[%s397 + $0x3c] sm:$0xf] %v428
                %v430 = vld [vmem:[%s396 + $0x80] sm:$0xf]
                %431 = vst [vmem:[%s397 + $0x40] sm:$0xf] %v430
                %v432 = vld [vmem:[%s396 + $0x88] sm:$0xf]
                %433 = vst [vmem:[%s397 + $0x44] sm:$0xf] %v432
                %v434 = vld [vmem:[%s396 + $0x90] sm:$0xf]
                %435 = vst [vmem:[%s397 + $0x48] sm:$0xf] %v434
                %v436 = vld [vmem:[%s396 + $0x98] sm:$0xf]
                %437 = vst [vmem:[%s397 + $0x4c] sm:$0xf] %v436
                %v438 = vld [vmem:[%s396 + $0xa0] sm:$0xf]
                %439 = vst [vmem:[%s397 + $0x50] sm:$0xf] %v438
                %v440 = vld [vmem:[%s396 + $0xa8] sm:$0xf]
                %441 = vst [vmem:[%s397 + $0x54] sm:$0xf] %v440
                %v442 = vld [vmem:[%s396 + $0xb0] sm:$0xf]
                %443 = vst [vmem:[%s397 + $0x58] sm:$0xf] %v442
                %v444 = vld [vmem:[%s396 + $0xb8] sm:$0xf]
                %445 = vst [vmem:[%s397 + $0x5c] sm:$0xf] %v444
                %v446 = vld [vmem:[%s396 + $0xc0] sm:$0xf]
                %447 = vst [vmem:[%s397 + $0x60] sm:$0xf] %v446
                %v448 = vld [vmem:[%s396 + $0xc8] sm:$0xf]
                %449 = vst [vmem:[%s397 + $0x64] sm:$0xf] %v448
                %v450 = vld [vmem:[%s396 + $0xd0] sm:$0xf]
                %451 = vst [vmem:[%s397 + $0x68] sm:$0xf] %v450
                %v452 = vld [vmem:[%s396 + $0xd8] sm:$0xf]
                %453 = vst [vmem:[%s397 + $0x6c] sm:$0xf] %v452
                %v454 = vld [vmem:[%s396 + $0xe0] sm:$0xf]
                %455 = vst [vmem:[%s397 + $0x70] sm:$0xf] %v454
                %v456 = vld [vmem:[%s396 + $0xe8] sm:$0xf]
                %457 = vst [vmem:[%s397 + $0x74] sm:$0xf] %v456
                %v458 = vld [vmem:[%s396 + $0xf0] sm:$0xf]
                %459 = vst [vmem:[%s397 + $0x78] sm:$0xf] %v458
                %v460 = vld [vmem:[%s396 + $0xf8] sm:$0xf]
                %461 = vst [vmem:[%s397 + $0x7c] sm:$0xf] %v460
              $region75: #{_lambda_.1} parent=69 // loop_footer
                %s395 = sadd.s32 1, %s391
              $region76: #{_lambda_.1} parent=69 // loop_footer_branch
                %390 = sbr.rel target = $region72
              $region77: #{_lambda_.1} parent=69 // loop_exit
                _
            $region70: #{_lambda_.1} parent=61 // pred_fallthru
              _
          $region62: #{_lambda_.1} parent=57 // pred_fallthru
            _
          %545 = vnop
        $region58: #{_lambda_.1} parent=15 // pred_fallthru
          _
        // Predicated region
        $region96: #{_lambda_.1} parent=15 // pred_check
          %p546 = pneg %p113
        $region97: #{_lambda_.1} parent=15 // pred_check_branch
          %548 = sbr.rel (%p546) target = $region99
        $region98: #{_lambda_.1} parent=15 // pred_region
          %s549 = sand.u32 %s103, 1
          %s550 = sand.u32 %s103, 1
          %s551 = smul.addr %s550, 128
          %s552 = scalar_lea.vmem [#allocation5], %s551
          %s553 = smul.u32 32, %s19
          %s554 = smul.addr %s553, 2
          %s555 = sadd.s32 %s18, %s554
          %s556 = smul.addr %s17, 128
          %s557 = sadd.s32 %s555, %s556
          %s558 = smul.addr %s557, 4
          %s559 = scalar_lea.vmem %s2, %s558
          // Predicated region
          $region100: #{_lambda_.1} parent=98 // pred_check
            _
          $region101: #{_lambda_.1} parent=98 // pred_check_branch
            %561 = sbr.rel (0) target = $region103
          $region102: #{_lambda_.1} parent=98 // pred_region
            // Predicated region
            $region104: #{_lambda_.1} parent=102 // pred_check
              _
            $region105: #{_lambda_.1} parent=102 // pred_check_branch
              %563 = sbr.rel target = $region107
            $region106: #{_lambda_.1} parent=102 // pred_region
              // Predicated region
              $region119: #{_lambda_.1} parent=106 // pred_check
                _
              $region120: #{_lambda_.1} parent=106 // pred_check_branch
                %640 = sbr.rel (0) target = $region122
              $region121: #{_lambda_.1} parent=106 // pred_region
                loop: start=0, step=1, limit=1
                $region123: #{_lambda_.1} parent=121 // loop_pre_header
                  _
                $region124: #{_lambda_.1} parent=121 // loop_header
                  %s642 = sphi 0, %s646
                  %p643 = scmp.ge.s32.totalorder %s642, 1
                  %s647 = sphi %s559, %s559
                  %s648 = sphi %s552, %s552
                $region125: #{_lambda_.1} parent=121 // loop_header_branch
                  %645 = sbr.rel (%p643) target = $region129
                $region126: #{_lambda_.1} parent=121 // loop_body
                  _
                $region127: #{_lambda_.1} parent=121 // loop_footer
                  %s646 = sadd.s32 1, %s642
                $region128: #{_lambda_.1} parent=121 // loop_footer_branch
                  %641 = sbr.rel target = $region124
                $region129: #{_lambda_.1} parent=121 // loop_exit
                  _
                loop: start=0, step=1, limit=1
                $region130: #{_lambda_.1} parent=121 // loop_pre_header
                  _
                $region131: #{_lambda_.1} parent=121 // loop_header
                  %s651 = sphi 0, %s655
                  %p652 = scmp.ge.s32.totalorder %s651, 1
                  %s656 = sphi %s559, %s559
                  %s657 = sphi %s552, %s552
                $region132: #{_lambda_.1} parent=121 // loop_header_branch
                  %654 = sbr.rel (%p652) target = $region136
                $region133: #{_lambda_.1} parent=121 // loop_body
                  %v658 = vld [vmem:[%s656] sm:$0xf]
                  %659 = vst [vmem:[%s657] sm:$0xf] %v658
                  %v660 = vld [vmem:[%s656 + $0x8] sm:$0xf]
                  %661 = vst [vmem:[%s657 + $0x4] sm:$0xf] %v660
                  %v662 = vld [vmem:[%s656 + $0x10] sm:$0xf]
                  %663 = vst [vmem:[%s657 + $0x8] sm:$0xf] %v662
                  %v664 = vld [vmem:[%s656 + $0x18] sm:$0xf]
                  %665 = vst [vmem:[%s657 + $0xc] sm:$0xf] %v664
                  %v666 = vld [vmem:[%s656 + $0x20] sm:$0xf]
                  %667 = vst [vmem:[%s657 + $0x10] sm:$0xf] %v666
                  %v668 = vld [vmem:[%s656 + $0x28] sm:$0xf]
                  %669 = vst [vmem:[%s657 + $0x14] sm:$0xf] %v668
                  %v670 = vld [vmem:[%s656 + $0x30] sm:$0xf]
                  %671 = vst [vmem:[%s657 + $0x18] sm:$0xf] %v670
                  %v672 = vld [vmem:[%s656 + $0x38] sm:$0xf]
                  %673 = vst [vmem:[%s657 + $0x1c] sm:$0xf] %v672
                  %v674 = vld [vmem:[%s656 + $0x40] sm:$0xf]
                  %675 = vst [vmem:[%s657 + $0x20] sm:$0xf] %v674
                  %v676 = vld [vmem:[%s656 + $0x48] sm:$0xf]
                  %677 = vst [vmem:[%s657 + $0x24] sm:$0xf] %v676
                  %v678 = vld [vmem:[%s656 + $0x50] sm:$0xf]
                  %679 = vst [vmem:[%s657 + $0x28] sm:$0xf] %v678
                  %v680 = vld [vmem:[%s656 + $0x58] sm:$0xf]
                  %681 = vst [vmem:[%s657 + $0x2c] sm:$0xf] %v680
                  %v682 = vld [vmem:[%s656 + $0x60] sm:$0xf]
                  %683 = vst [vmem:[%s657 + $0x30] sm:$0xf] %v682
                  %v684 = vld [vmem:[%s656 + $0x68] sm:$0xf]
                  %685 = vst [vmem:[%s657 + $0x34] sm:$0xf] %v684
                  %v686 = vld [vmem:[%s656 + $0x70] sm:$0xf]
                  %687 = vst [vmem:[%s657 + $0x38] sm:$0xf] %v686
                  %v688 = vld [vmem:[%s656 + $0x78] sm:$0xf]
                  %689 = vst [vmem:[%s657 + $0x3c] sm:$0xf] %v688
                  %v690 = vld [vmem:[%s656 + $0x80] sm:$0xf]
                  %691 = vst [vmem:[%s657 + $0x40] sm:$0xf] %v690
                  %v692 = vld [vmem:[%s656 + $0x88] sm:$0xf]
                  %693 = vst [vmem:[%s657 + $0x44] sm:$0xf] %v692
                  %v694 = vld [vmem:[%s656 + $0x90] sm:$0xf]
                  %695 = vst [vmem:[%s657 + $0x48] sm:$0xf] %v694
                  %v696 = vld [vmem:[%s656 + $0x98] sm:$0xf]
                  %697 = vst [vmem:[%s657 + $0x4c] sm:$0xf] %v696
                  %v698 = vld [vmem:[%s656 + $0xa0] sm:$0xf]
                  %699 = vst [vmem:[%s657 + $0x50] sm:$0xf] %v698
                  %v700 = vld [vmem:[%s656 + $0xa8] sm:$0xf]
                  %701 = vst [vmem:[%s657 + $0x54] sm:$0xf] %v700
                  %v702 = vld [vmem:[%s656 + $0xb0] sm:$0xf]
                  %703 = vst [vmem:[%s657 + $0x58] sm:$0xf] %v702
                  %v704 = vld [vmem:[%s656 + $0xb8] sm:$0xf]
                  %705 = vst [vmem:[%s657 + $0x5c] sm:$0xf] %v704
                  %v706 = vld [vmem:[%s656 + $0xc0] sm:$0xf]
                  %707 = vst [vmem:[%s657 + $0x60] sm:$0xf] %v706
                  %v708 = vld [vmem:[%s656 + $0xc8] sm:$0xf]
                  %709 = vst [vmem:[%s657 + $0x64] sm:$0xf] %v708
                  %v710 = vld [vmem:[%s656 + $0xd0] sm:$0xf]
                  %711 = vst [vmem:[%s657 + $0x68] sm:$0xf] %v710
                  %v712 = vld [vmem:[%s656 + $0xd8] sm:$0xf]
                  %713 = vst [vmem:[%s657 + $0x6c] sm:$0xf] %v712
                  %v714 = vld [vmem:[%s656 + $0xe0] sm:$0xf]
                  %715 = vst [vmem:[%s657 + $0x70] sm:$0xf] %v714
                  %v716 = vld [vmem:[%s656 + $0xe8] sm:$0xf]
                  %717 = vst [vmem:[%s657 + $0x74] sm:$0xf] %v716
                  %v718 = vld [vmem:[%s656 + $0xf0] sm:$0xf]
                  %719 = vst [vmem:[%s657 + $0x78] sm:$0xf] %v718
                  %v720 = vld [vmem:[%s656 + $0xf8] sm:$0xf]
                  %721 = vst [vmem:[%s657 + $0x7c] sm:$0xf] %v720
                $region134: #{_lambda_.1} parent=121 // loop_footer
                  %s655 = sadd.s32 1, %s651
                $region135: #{_lambda_.1} parent=121 // loop_footer_branch
                  %650 = sbr.rel target = $region131
                $region136: #{_lambda_.1} parent=121 // loop_exit
                  _
              $region122: #{_lambda_.1} parent=106 // pred_fallthru
                _
            $region107: #{_lambda_.1} parent=102 // pred_fallthru
              _
            // Predicated region
            $region108: #{_lambda_.1} parent=102 // pred_check
              _
            $region109: #{_lambda_.1} parent=102 // pred_check_branch
              %565 = sbr.rel (0) target = $region111
            $region110: #{_lambda_.1} parent=102 // pred_region
              loop: start=0, step=1, limit=1
              $region112: #{_lambda_.1} parent=110 // loop_pre_header
                _
              $region113: #{_lambda_.1} parent=110 // loop_header
                %s568 = sphi 0, %s572
                %p569 = scmp.ge.s32.totalorder %s568, 1
                %s573 = sphi %s559, %s559
                %s574 = sphi %s552, %s552
              $region114: #{_lambda_.1} parent=110 // loop_header_branch
                %571 = sbr.rel (%p569) target = $region118
              $region115: #{_lambda_.1} parent=110 // loop_body
                %v575 = vld [vmem:[%s573] sm:$0xf]
                %576 = vst [vmem:[%s574] sm:$0xf] %v575
                %v577 = vld [vmem:[%s573 + $0x8] sm:$0xf]
                %578 = vst [vmem:[%s574 + $0x4] sm:$0xf] %v577
                %v579 = vld [vmem:[%s573 + $0x10] sm:$0xf]
                %580 = vst [vmem:[%s574 + $0x8] sm:$0xf] %v579
                %v581 = vld [vmem:[%s573 + $0x18] sm:$0xf]
                %582 = vst [vmem:[%s574 + $0xc] sm:$0xf] %v581
                %v583 = vld [vmem:[%s573 + $0x20] sm:$0xf]
                %584 = vst [vmem:[%s574 + $0x10] sm:$0xf] %v583
                %v585 = vld [vmem:[%s573 + $0x28] sm:$0xf]
                %586 = vst [vmem:[%s574 + $0x14] sm:$0xf] %v585
                %v587 = vld [vmem:[%s573 + $0x30] sm:$0xf]
                %588 = vst [vmem:[%s574 + $0x18] sm:$0xf] %v587
                %v589 = vld [vmem:[%s573 + $0x38] sm:$0xf]
                %590 = vst [vmem:[%s574 + $0x1c] sm:$0xf] %v589
                %v591 = vld [vmem:[%s573 + $0x40] sm:$0xf]
                %592 = vst [vmem:[%s574 + $0x20] sm:$0xf] %v591
                %v593 = vld [vmem:[%s573 + $0x48] sm:$0xf]
                %594 = vst [vmem:[%s574 + $0x24] sm:$0xf] %v593
                %v595 = vld [vmem:[%s573 + $0x50] sm:$0xf]
                %596 = vst [vmem:[%s574 + $0x28] sm:$0xf] %v595
                %v597 = vld [vmem:[%s573 + $0x58] sm:$0xf]
                %598 = vst [vmem:[%s574 + $0x2c] sm:$0xf] %v597
                %v599 = vld [vmem:[%s573 + $0x60] sm:$0xf]
                %600 = vst [vmem:[%s574 + $0x30] sm:$0xf] %v599
                %v601 = vld [vmem:[%s573 + $0x68] sm:$0xf]
                %602 = vst [vmem:[%s574 + $0x34] sm:$0xf] %v601
                %v603 = vld [vmem:[%s573 + $0x70] sm:$0xf]
                %604 = vst [vmem:[%s574 + $0x38] sm:$0xf] %v603
                %v605 = vld [vmem:[%s573 + $0x78] sm:$0xf]
                %606 = vst [vmem:[%s574 + $0x3c] sm:$0xf] %v605
                %v607 = vld [vmem:[%s573 + $0x80] sm:$0xf]
                %608 = vst [vmem:[%s574 + $0x40] sm:$0xf] %v607
                %v609 = vld [vmem:[%s573 + $0x88] sm:$0xf]
                %610 = vst [vmem:[%s574 + $0x44] sm:$0xf] %v609
                %v611 = vld [vmem:[%s573 + $0x90] sm:$0xf]
                %612 = vst [vmem:[%s574 + $0x48] sm:$0xf] %v611
                %v613 = vld [vmem:[%s573 + $0x98] sm:$0xf]
                %614 = vst [vmem:[%s574 + $0x4c] sm:$0xf] %v613
                %v615 = vld [vmem:[%s573 + $0xa0] sm:$0xf]
                %616 = vst [vmem:[%s574 + $0x50] sm:$0xf] %v615
                %v617 = vld [vmem:[%s573 + $0xa8] sm:$0xf]
                %618 = vst [vmem:[%s574 + $0x54] sm:$0xf] %v617
                %v619 = vld [vmem:[%s573 + $0xb0] sm:$0xf]
                %620 = vst [vmem:[%s574 + $0x58] sm:$0xf] %v619
                %v621 = vld [vmem:[%s573 + $0xb8] sm:$0xf]
                %622 = vst [vmem:[%s574 + $0x5c] sm:$0xf] %v621
                %v623 = vld [vmem:[%s573 + $0xc0] sm:$0xf]
                %624 = vst [vmem:[%s574 + $0x60] sm:$0xf] %v623
                %v625 = vld [vmem:[%s573 + $0xc8] sm:$0xf]
                %626 = vst [vmem:[%s574 + $0x64] sm:$0xf] %v625
                %v627 = vld [vmem:[%s573 + $0xd0] sm:$0xf]
                %628 = vst [vmem:[%s574 + $0x68] sm:$0xf] %v627
                %v629 = vld [vmem:[%s573 + $0xd8] sm:$0xf]
                %630 = vst [vmem:[%s574 + $0x6c] sm:$0xf] %v629
                %v631 = vld [vmem:[%s573 + $0xe0] sm:$0xf]
                %632 = vst [vmem:[%s574 + $0x70] sm:$0xf] %v631
                %v633 = vld [vmem:[%s573 + $0xe8] sm:$0xf]
                %634 = vst [vmem:[%s574 + $0x74] sm:$0xf] %v633
                %v635 = vld [vmem:[%s573 + $0xf0] sm:$0xf]
                %636 = vst [vmem:[%s574 + $0x78] sm:$0xf] %v635
                %v637 = vld [vmem:[%s573 + $0xf8] sm:$0xf]
                %638 = vst [vmem:[%s574 + $0x7c] sm:$0xf] %v637
              $region116: #{_lambda_.1} parent=110 // loop_footer
                %s572 = sadd.s32 1, %s568
              $region117: #{_lambda_.1} parent=110 // loop_footer_branch
                %567 = sbr.rel target = $region113
              $region118: #{_lambda_.1} parent=110 // loop_exit
                _
            $region111: #{_lambda_.1} parent=102 // pred_fallthru
              _
          $region103: #{_lambda_.1} parent=98 // pred_fallthru
            _
          %722 = vnop
        $region99: #{_lambda_.1} parent=15 // pred_fallthru
          _
        // Predicated region
        $region137: #{_lambda_.1} parent=15 // pred_check
          %p723 = pneg %p143
        $region138: #{_lambda_.1} parent=15 // pred_check_branch
          %725 = sbr.rel (%p723) target = $region140
        $region139: #{_lambda_.1} parent=15 // pred_region
          %s726 = sand.u32 %s133, 1
          %s727 = sand.u32 %s133, 1
          %s728 = smul.addr %s727, 128
          %s729 = scalar_lea.vmem [#allocation6], %s728
          %s730 = smul.u32 32, %s19
          %s731 = smul.addr %s730, 2
          %s732 = sadd.s32 %s18, %s731
          %s733 = smul.addr %s17, 128
          %s734 = sadd.s32 %s732, %s733
          %s735 = smul.addr %s734, 4
          %s736 = scalar_lea.vmem %s3, %s735
          // Predicated region
          $region141: #{_lambda_.1} parent=139 // pred_check
            _
          $region142: #{_lambda_.1} parent=139 // pred_check_branch
            %738 = sbr.rel (0) target = $region144
          $region143: #{_lambda_.1} parent=139 // pred_region
            // Predicated region
            $region145: #{_lambda_.1} parent=143 // pred_check
              _
            $region146: #{_lambda_.1} parent=143 // pred_check_branch
              %740 = sbr.rel target = $region148
            $region147: #{_lambda_.1} parent=143 // pred_region
              // Predicated region
              $region160: #{_lambda_.1} parent=147 // pred_check
                _
              $region161: #{_lambda_.1} parent=147 // pred_check_branch
                %817 = sbr.rel (0) target = $region163
              $region162: #{_lambda_.1} parent=147 // pred_region
                loop: start=0, step=1, limit=1
                $region164: #{_lambda_.1} parent=162 // loop_pre_header
                  _
                $region165: #{_lambda_.1} parent=162 // loop_header
                  %s819 = sphi 0, %s823
                  %p820 = scmp.ge.s32.totalorder %s819, 1
                  %s824 = sphi %s736, %s736
                  %s825 = sphi %s729, %s729
                $region166: #{_lambda_.1} parent=162 // loop_header_branch
                  %822 = sbr.rel (%p820) target = $region170
                $region167: #{_lambda_.1} parent=162 // loop_body
                  _
                $region168: #{_lambda_.1} parent=162 // loop_footer
                  %s823 = sadd.s32 1, %s819
                $region169: #{_lambda_.1} parent=162 // loop_footer_branch
                  %818 = sbr.rel target = $region165
                $region170: #{_lambda_.1} parent=162 // loop_exit
                  _
                loop: start=0, step=1, limit=1
                $region171: #{_lambda_.1} parent=162 // loop_pre_header
                  _
                $region172: #{_lambda_.1} parent=162 // loop_header
                  %s828 = sphi 0, %s832
                  %p829 = scmp.ge.s32.totalorder %s828, 1
                  %s833 = sphi %s736, %s736
                  %s834 = sphi %s729, %s729
                $region173: #{_lambda_.1} parent=162 // loop_header_branch
                  %831 = sbr.rel (%p829) target = $region177
                $region174: #{_lambda_.1} parent=162 // loop_body
                  %v835 = vld [vmem:[%s833] sm:$0xf]
                  %836 = vst [vmem:[%s834] sm:$0xf] %v835
                  %v837 = vld [vmem:[%s833 + $0x8] sm:$0xf]
                  %838 = vst [vmem:[%s834 + $0x4] sm:$0xf] %v837
                  %v839 = vld [vmem:[%s833 + $0x10] sm:$0xf]
                  %840 = vst [vmem:[%s834 + $0x8] sm:$0xf] %v839
                  %v841 = vld [vmem:[%s833 + $0x18] sm:$0xf]
                  %842 = vst [vmem:[%s834 + $0xc] sm:$0xf] %v841
                  %v843 = vld [vmem:[%s833 + $0x20] sm:$0xf]
                  %844 = vst [vmem:[%s834 + $0x10] sm:$0xf] %v843
                  %v845 = vld [vmem:[%s833 + $0x28] sm:$0xf]
                  %846 = vst [vmem:[%s834 + $0x14] sm:$0xf] %v845
                  %v847 = vld [vmem:[%s833 + $0x30] sm:$0xf]
                  %848 = vst [vmem:[%s834 + $0x18] sm:$0xf] %v847
                  %v849 = vld [vmem:[%s833 + $0x38] sm:$0xf]
                  %850 = vst [vmem:[%s834 + $0x1c] sm:$0xf] %v849
                  %v851 = vld [vmem:[%s833 + $0x40] sm:$0xf]
                  %852 = vst [vmem:[%s834 + $0x20] sm:$0xf] %v851
                  %v853 = vld [vmem:[%s833 + $0x48] sm:$0xf]
                  %854 = vst [vmem:[%s834 + $0x24] sm:$0xf] %v853
                  %v855 = vld [vmem:[%s833 + $0x50] sm:$0xf]
                  %856 = vst [vmem:[%s834 + $0x28] sm:$0xf] %v855
                  %v857 = vld [vmem:[%s833 + $0x58] sm:$0xf]
                  %858 = vst [vmem:[%s834 + $0x2c] sm:$0xf] %v857
                  %v859 = vld [vmem:[%s833 + $0x60] sm:$0xf]
                  %860 = vst [vmem:[%s834 + $0x30] sm:$0xf] %v859
                  %v861 = vld [vmem:[%s833 + $0x68] sm:$0xf]
                  %862 = vst [vmem:[%s834 + $0x34] sm:$0xf] %v861
                  %v863 = vld [vmem:[%s833 + $0x70] sm:$0xf]
                  %864 = vst [vmem:[%s834 + $0x38] sm:$0xf] %v863
                  %v865 = vld [vmem:[%s833 + $0x78] sm:$0xf]
                  %866 = vst [vmem:[%s834 + $0x3c] sm:$0xf] %v865
                  %v867 = vld [vmem:[%s833 + $0x80] sm:$0xf]
                  %868 = vst [vmem:[%s834 + $0x40] sm:$0xf] %v867
                  %v869 = vld [vmem:[%s833 + $0x88] sm:$0xf]
                  %870 = vst [vmem:[%s834 + $0x44] sm:$0xf] %v869
                  %v871 = vld [vmem:[%s833 + $0x90] sm:$0xf]
                  %872 = vst [vmem:[%s834 + $0x48] sm:$0xf] %v871
                  %v873 = vld [vmem:[%s833 + $0x98] sm:$0xf]
                  %874 = vst [vmem:[%s834 + $0x4c] sm:$0xf] %v873
                  %v875 = vld [vmem:[%s833 + $0xa0] sm:$0xf]
                  %876 = vst [vmem:[%s834 + $0x50] sm:$0xf] %v875
                  %v877 = vld [vmem:[%s833 + $0xa8] sm:$0xf]
                  %878 = vst [vmem:[%s834 + $0x54] sm:$0xf] %v877
                  %v879 = vld [vmem:[%s833 + $0xb0] sm:$0xf]
                  %880 = vst [vmem:[%s834 + $0x58] sm:$0xf] %v879
                  %v881 = vld [vmem:[%s833 + $0xb8] sm:$0xf]
                  %882 = vst [vmem:[%s834 + $0x5c] sm:$0xf] %v881
                  %v883 = vld [vmem:[%s833 + $0xc0] sm:$0xf]
                  %884 = vst [vmem:[%s834 + $0x60] sm:$0xf] %v883
                  %v885 = vld [vmem:[%s833 + $0xc8] sm:$0xf]
                  %886 = vst [vmem:[%s834 + $0x64] sm:$0xf] %v885
                  %v887 = vld [vmem:[%s833 + $0xd0] sm:$0xf]
                  %888 = vst [vmem:[%s834 + $0x68] sm:$0xf] %v887
                  %v889 = vld [vmem:[%s833 + $0xd8] sm:$0xf]
                  %890 = vst [vmem:[%s834 + $0x6c] sm:$0xf] %v889
                  %v891 = vld [vmem:[%s833 + $0xe0] sm:$0xf]
                  %892 = vst [vmem:[%s834 + $0x70] sm:$0xf] %v891
                  %v893 = vld [vmem:[%s833 + $0xe8] sm:$0xf]
                  %894 = vst [vmem:[%s834 + $0x74] sm:$0xf] %v893
                  %v895 = vld [vmem:[%s833 + $0xf0] sm:$0xf]
                  %896 = vst [vmem:[%s834 + $0x78] sm:$0xf] %v895
                  %v897 = vld [vmem:[%s833 + $0xf8] sm:$0xf]
                  %898 = vst [vmem:[%s834 + $0x7c] sm:$0xf] %v897
                $region175: #{_lambda_.1} parent=162 // loop_footer
                  %s832 = sadd.s32 1, %s828
                $region176: #{_lambda_.1} parent=162 // loop_footer_branch
                  %827 = sbr.rel target = $region172
                $region177: #{_lambda_.1} parent=162 // loop_exit
                  _
              $region163: #{_lambda_.1} parent=147 // pred_fallthru
                _
            $region148: #{_lambda_.1} parent=143 // pred_fallthru
              _
            // Predicated region
            $region149: #{_lambda_.1} parent=143 // pred_check
              _
            $region150: #{_lambda_.1} parent=143 // pred_check_branch
              %742 = sbr.rel (0) target = $region152
            $region151: #{_lambda_.1} parent=143 // pred_region
              loop: start=0, step=1, limit=1
              $region153: #{_lambda_.1} parent=151 // loop_pre_header
                _
              $region154: #{_lambda_.1} parent=151 // loop_header
                %s745 = sphi 0, %s749
                %p746 = scmp.ge.s32.totalorder %s745, 1
                %s750 = sphi %s736, %s736
                %s751 = sphi %s729, %s729
              $region155: #{_lambda_.1} parent=151 // loop_header_branch
                %748 = sbr.rel (%p746) target = $region159
              $region156: #{_lambda_.1} parent=151 // loop_body
                %v752 = vld [vmem:[%s750] sm:$0xf]
                %753 = vst [vmem:[%s751] sm:$0xf] %v752
                %v754 = vld [vmem:[%s750 + $0x8] sm:$0xf]
                %755 = vst [vmem:[%s751 + $0x4] sm:$0xf] %v754
                %v756 = vld [vmem:[%s750 + $0x10] sm:$0xf]
                %757 = vst [vmem:[%s751 + $0x8] sm:$0xf] %v756
                %v758 = vld [vmem:[%s750 + $0x18] sm:$0xf]
                %759 = vst [vmem:[%s751 + $0xc] sm:$0xf] %v758
                %v760 = vld [vmem:[%s750 + $0x20] sm:$0xf]
                %761 = vst [vmem:[%s751 + $0x10] sm:$0xf] %v760
                %v762 = vld [vmem:[%s750 + $0x28] sm:$0xf]
                %763 = vst [vmem:[%s751 + $0x14] sm:$0xf] %v762
                %v764 = vld [vmem:[%s750 + $0x30] sm:$0xf]
                %765 = vst [vmem:[%s751 + $0x18] sm:$0xf] %v764
                %v766 = vld [vmem:[%s750 + $0x38] sm:$0xf]
                %767 = vst [vmem:[%s751 + $0x1c] sm:$0xf] %v766
                %v768 = vld [vmem:[%s750 + $0x40] sm:$0xf]
                %769 = vst [vmem:[%s751 + $0x20] sm:$0xf] %v768
                %v770 = vld [vmem:[%s750 + $0x48] sm:$0xf]
                %771 = vst [vmem:[%s751 + $0x24] sm:$0xf] %v770
                %v772 = vld [vmem:[%s750 + $0x50] sm:$0xf]
                %773 = vst [vmem:[%s751 + $0x28] sm:$0xf] %v772
                %v774 = vld [vmem:[%s750 + $0x58] sm:$0xf]
                %775 = vst [vmem:[%s751 + $0x2c] sm:$0xf] %v774
                %v776 = vld [vmem:[%s750 + $0x60] sm:$0xf]
                %777 = vst [vmem:[%s751 + $0x30] sm:$0xf] %v776
                %v778 = vld [vmem:[%s750 + $0x68] sm:$0xf]
                %779 = vst [vmem:[%s751 + $0x34] sm:$0xf] %v778
                %v780 = vld [vmem:[%s750 + $0x70] sm:$0xf]
                %781 = vst [vmem:[%s751 + $0x38] sm:$0xf] %v780
                %v782 = vld [vmem:[%s750 + $0x78] sm:$0xf]
                %783 = vst [vmem:[%s751 + $0x3c] sm:$0xf] %v782
                %v784 = vld [vmem:[%s750 + $0x80] sm:$0xf]
                %785 = vst [vmem:[%s751 + $0x40] sm:$0xf] %v784
                %v786 = vld [vmem:[%s750 + $0x88] sm:$0xf]
                %787 = vst [vmem:[%s751 + $0x44] sm:$0xf] %v786
                %v788 = vld [vmem:[%s750 + $0x90] sm:$0xf]
                %789 = vst [vmem:[%s751 + $0x48] sm:$0xf] %v788
                %v790 = vld [vmem:[%s750 + $0x98] sm:$0xf]
                %791 = vst [vmem:[%s751 + $0x4c] sm:$0xf] %v790
                %v792 = vld [vmem:[%s750 + $0xa0] sm:$0xf]
                %793 = vst [vmem:[%s751 + $0x50] sm:$0xf] %v792
                %v794 = vld [vmem:[%s750 + $0xa8] sm:$0xf]
                %795 = vst [vmem:[%s751 + $0x54] sm:$0xf] %v794
                %v796 = vld [vmem:[%s750 + $0xb0] sm:$0xf]
                %797 = vst [vmem:[%s751 + $0x58] sm:$0xf] %v796
                %v798 = vld [vmem:[%s750 + $0xb8] sm:$0xf]
                %799 = vst [vmem:[%s751 + $0x5c] sm:$0xf] %v798
                %v800 = vld [vmem:[%s750 + $0xc0] sm:$0xf]
                %801 = vst [vmem:[%s751 + $0x60] sm:$0xf] %v800
                %v802 = vld [vmem:[%s750 + $0xc8] sm:$0xf]
                %803 = vst [vmem:[%s751 + $0x64] sm:$0xf] %v802
                %v804 = vld [vmem:[%s750 + $0xd0] sm:$0xf]
                %805 = vst [vmem:[%s751 + $0x68] sm:$0xf] %v804
                %v806 = vld [vmem:[%s750 + $0xd8] sm:$0xf]
                %807 = vst [vmem:[%s751 + $0x6c] sm:$0xf] %v806
                %v808 = vld [vmem:[%s750 + $0xe0] sm:$0xf]
                %809 = vst [vmem:[%s751 + $0x70] sm:$0xf] %v808
                %v810 = vld [vmem:[%s750 + $0xe8] sm:$0xf]
                %811 = vst [vmem:[%s751 + $0x74] sm:$0xf] %v810
                %v812 = vld [vmem:[%s750 + $0xf0] sm:$0xf]
                %813 = vst [vmem:[%s751 + $0x78] sm:$0xf] %v812
                %v814 = vld [vmem:[%s750 + $0xf8] sm:$0xf]
                %815 = vst [vmem:[%s751 + $0x7c] sm:$0xf] %v814
              $region157: #{_lambda_.1} parent=151 // loop_footer
                %s749 = sadd.s32 1, %s745
              $region158: #{_lambda_.1} parent=151 // loop_footer_branch
                %744 = sbr.rel target = $region154
              $region159: #{_lambda_.1} parent=151 // loop_exit
                _
            $region152: #{_lambda_.1} parent=143 // pred_fallthru
              _
          $region144: #{_lambda_.1} parent=139 // pred_fallthru
            _
          %899 = vnop
        $region140: #{_lambda_.1} parent=15 // pred_fallthru
          _
      $region16: #{_lambda_.1} parent=5 // pred_fallthru
        _
      %p900 = scmp.le.s32.totalorder 1, %s10
      %p901 = scmp.lt.s32.totalorder %s10, 9
      %p902 = pnand %p900, %p901
      %p903 = pneg %p902
      // Predicated region
      $region178: #{_lambda_.1} parent=5 // pred_check
        _
      $region179: #{_lambda_.1} parent=5 // pred_check_branch
        %905 = sbr.rel (%p902) target = $region181
      $region180: #{_lambda_.1} parent=5 // pred_region
        %s906 = ssub.s32 %s10, 1
        %s907 = sand.u32 %s46, 1
        %s908 = sand.u32 %s46, 1
        %s909 = smul.addr %s908, 256
        %s910 = scalar_lea.vmem [#allocation3], %s909
        // Predicated region
        $region182: #{_lambda_.1} parent=180 // pred_check
          %p911 = pneg %p59
        $region183: #{_lambda_.1} parent=180 // pred_check_branch
          %913 = sbr.rel (%p911) target = $region185
        $region184: #{_lambda_.1} parent=180 // pred_region
          _
        $region185: #{_lambda_.1} parent=180 // pred_fallthru
          _
        %s914 = sand.u32 %s76, 1
        %s915 = sand.u32 %s76, 1
        %s916 = smul.addr %s915, 128
        %s917 = scalar_lea.vmem [#allocation4], %s916
        // Predicated region
        $region186: #{_lambda_.1} parent=180 // pred_check
          %p918 = pneg %p89
        $region187: #{_lambda_.1} parent=180 // pred_check_branch
          %920 = sbr.rel (%p918) target = $region189
        $region188: #{_lambda_.1} parent=180 // pred_region
          _
        $region189: #{_lambda_.1} parent=180 // pred_fallthru
          _
        %s921 = sand.u32 %s106, 1
        %s922 = sand.u32 %s106, 1
        %s923 = smul.addr %s922, 128
        %s924 = scalar_lea.vmem [#allocation5], %s923
        // Predicated region
        $region190: #{_lambda_.1} parent=180 // pred_check
          %p925 = pneg %p119
        $region191: #{_lambda_.1} parent=180 // pred_check_branch
          %927 = sbr.rel (%p925) target = $region193
        $region192: #{_lambda_.1} parent=180 // pred_region
          _
        $region193: #{_lambda_.1} parent=180 // pred_fallthru
          _
        %s928 = sand.u32 %s136, 1
        %s929 = sand.u32 %s136, 1
        %s930 = smul.addr %s929, 128
        %s931 = scalar_lea.vmem [#allocation6], %s930
        // Predicated region
        $region194: #{_lambda_.1} parent=180 // pred_check
          %p932 = pneg %p149
        $region195: #{_lambda_.1} parent=180 // pred_check_branch
          %934 = sbr.rel (%p932) target = $region197
        $region196: #{_lambda_.1} parent=180 // pred_region
          _
        $region197: #{_lambda_.1} parent=180 // pred_fallthru
          _
        %s935 = sand.u32 %s46, 1
        %s936 = sand.u32 %s46, 1
        %s937 = smul.addr %s936, 256
        %s938 = scalar_lea.vmem [#allocation3], %s937
        %p939 = pneg %p59
        %p940 = pneg %p56
        %s941 = sand.u32 %s76, 1
        %s942 = sand.u32 %s76, 1
        %s943 = smul.addr %s942, 128
        %s944 = scalar_lea.vmem [#allocation4], %s943
        %p945 = pneg %p89
        %p946 = pneg %p86
        %s947 = sand.u32 %s106, 1
        %s948 = sand.u32 %s106, 1
        %s949 = smul.addr %s948, 128
        %s950 = scalar_lea.vmem [#allocation5], %s949
        %p951 = pneg %p119
        %p952 = pneg %p116
        %s953 = sand.u32 %s136, 1
        %s954 = sand.u32 %s136, 1
        %s955 = smul.addr %s954, 128
        %s956 = scalar_lea.vmem [#allocation6], %s955
        %p957 = pneg %p149
        %p958 = pneg %p146
        %p959 = pneg %p179
        %p960 = pneg %p176
        %s961 = sand.u32 %s166, 1
        %s962 = sand.u32 %s166, 1
        %s963 = smul.addr %s962, 256
        %s964 = scalar_lea.vmem [#allocation7], %s963
        %s965 = smul.u32 32, %s22
        %s966 = smul.u32 2, %s21
        %s967 = smul.u32 32, %s22
        %s968 = smul.u32 32, %s22
        %s969 = smul.u32 32, %s22
        %s970 = smul.u32 16, %s22
        %s971 = smul.u32 2, %s21
        %p973 = scmp.eq.s32.totalorder %s22, 0
        // Predicated region
        $region198: #{_lambda_.1} parent=180 // pred_check
          %p974 = pneg %p973
        $region199: #{_lambda_.1} parent=180 // pred_check_branch
          %976 = sbr.rel (%p974) target = $region201
        $region200: #{_lambda_.1} parent=180 // pred_region
          %977 = vst [vmem:[#allocation2] sm:$0xff] 0.0
          %978 = vst [vmem:[#allocation2 + $0x8] sm:$0xff] 0.0
          %979 = vst [vmem:[#allocation2 + $0x10] sm:$0xff] 0.0
          %980 = vst [vmem:[#allocation2 + $0x18] sm:$0xff] 0.0
          %981 = vst [vmem:[#allocation2 + $0x20] sm:$0xff] 0.0
          %982 = vst [vmem:[#allocation2 + $0x28] sm:$0xff] 0.0
          %983 = vst [vmem:[#allocation2 + $0x30] sm:$0xff] 0.0
          %984 = vst [vmem:[#allocation2 + $0x38] sm:$0xff] 0.0
          %985 = vst [vmem:[#allocation2 + $0x40] sm:$0xff] 0.0
          %986 = vst [vmem:[#allocation2 + $0x48] sm:$0xff] 0.0
          %987 = vst [vmem:[#allocation2 + $0x50] sm:$0xff] 0.0
          %988 = vst [vmem:[#allocation2 + $0x58] sm:$0xff] 0.0
          %989 = vst [vmem:[#allocation2 + $0x60] sm:$0xff] 0.0
          %990 = vst [vmem:[#allocation2 + $0x68] sm:$0xff] 0.0
          %991 = vst [vmem:[#allocation2 + $0x70] sm:$0xff] 0.0
          %992 = vst [vmem:[#allocation2 + $0x78] sm:$0xff] 0.0
        $region201: #{_lambda_.1} parent=180 // pred_fallthru
          _
        %v993 = vlaneseq
        %v994 = vshrl.u32 %v993, 7
        %v995 = vadd.s32 %v994, 8
        %v996 = vadd.s32 %v994, 16
        %v997 = vadd.s32 %v994, 24
        %v998 = vadd.s32 %v994, 32
        %v999 = vadd.s32 %v994, 40
        %v1000 = vadd.s32 %v994, 48
        %v1001 = vadd.s32 %v994, 56
        %v1002 = vadd.s32 %v994, 64
        %v1003 = vadd.s32 %v994, 72
        %v1004 = vadd.s32 %v994, 80
        %v1005 = vadd.s32 %v994, 88
        %v1006 = vadd.s32 %v994, 96
        %v1007 = vadd.s32 %v994, 104
        %v1008 = vadd.s32 %v994, 112
        %v1009 = vadd.s32 %v994, 120
        %v1010 = vlaneseq
        %v1011 = vand.u32 %v1010, 127
        %vm1012 = vcmp.ge.s32.totalorder %v994, %v1011
        %vm1013 = vcmp.ge.s32.totalorder %v995, %v1011
        %vm1014 = vcmp.ge.s32.totalorder %v996, %v1011
        %vm1015 = vcmp.ge.s32.totalorder %v997, %v1011
        %vm1016 = vcmp.ge.s32.totalorder %v998, %v1011
        %vm1017 = vcmp.ge.s32.totalorder %v999, %v1011
        %vm1018 = vcmp.ge.s32.totalorder %v1000, %v1011
        %vm1019 = vcmp.ge.s32.totalorder %v1001, %v1011
        %vm1020 = vcmp.ge.s32.totalorder %v1002, %v1011
        %vm1021 = vcmp.ge.s32.totalorder %v1003, %v1011
        %vm1022 = vcmp.ge.s32.totalorder %v1004, %v1011
        %vm1023 = vcmp.ge.s32.totalorder %v1005, %v1011
        %vm1024 = vcmp.ge.s32.totalorder %v1006, %v1011
        %vm1025 = vcmp.ge.s32.totalorder %v1007, %v1011
        %vm1026 = vcmp.ge.s32.totalorder %v1008, %v1011
        %vm1027 = vcmp.ge.s32.totalorder %v1009, %v1011
        %v1028 = vsel %vm1012, 1, 0
        %v1029 = vsel %vm1013, 1, 0
        %v1030 = vsel %vm1014, 1, 0
        %v1031 = vsel %vm1015, 1, 0
        %v1032 = vsel %vm1016, 1, 0
        %v1033 = vsel %vm1017, 1, 0
        %v1034 = vsel %vm1018, 1, 0
        %v1035 = vsel %vm1019, 1, 0
        %v1036 = vsel %vm1020, 1, 0
        %v1037 = vsel %vm1021, 1, 0
        %v1038 = vsel %vm1022, 1, 0
        %v1039 = vsel %vm1023, 1, 0
        %v1040 = vsel %vm1024, 1, 0
        %v1041 = vsel %vm1025, 1, 0
        %v1042 = vsel %vm1026, 1, 0
        %v1043 = vsel %vm1027, 1, 0
        %v1044 = vcvt.s32.f32 %v1028
        %v1045 = vcvt.s32.f32 %v1029
        %v1046 = vcvt.s32.f32 %v1030
        %v1047 = vcvt.s32.f32 %v1031
        %v1048 = vcvt.s32.f32 %v1032
        %v1049 = vcvt.s32.f32 %v1033
        %v1050 = vcvt.s32.f32 %v1034
        %v1051 = vcvt.s32.f32 %v1035
        %v1052 = vcvt.s32.f32 %v1036
        %v1053 = vcvt.s32.f32 %v1037
        %v1054 = vcvt.s32.f32 %v1038
        %v1055 = vcvt.s32.f32 %v1039
        %v1056 = vcvt.s32.f32 %v1040
        %v1057 = vcvt.s32.f32 %v1041
        %v1058 = vcvt.s32.f32 %v1042
        %v1059 = vcvt.s32.f32 %v1043
        %v1060 = vld [vmem:[%s910] sm:$0xff]
        %v1061 = vld [vmem:[%s910 + $0x8] sm:$0xff]
        %v1062 = vld [vmem:[%s910 + $0x10] sm:$0xff]
        %v1063 = vld [vmem:[%s910 + $0x18] sm:$0xff]
        %v1064 = vld [vmem:[%s910 + $0x20] sm:$0xff]
        %v1065 = vld [vmem:[%s910 + $0x28] sm:$0xff]
        %v1066 = vld [vmem:[%s910 + $0x30] sm:$0xff]
        %v1067 = vld [vmem:[%s910 + $0x38] sm:$0xff]
        %v1068 = vld [vmem:[%s910 + $0x40] sm:$0xff]
        %v1069 = vld [vmem:[%s910 + $0x48] sm:$0xff]
        %v1070 = vld [vmem:[%s910 + $0x50] sm:$0xff]
        %v1071 = vld [vmem:[%s910 + $0x58] sm:$0xff]
        %v1072 = vld [vmem:[%s910 + $0x60] sm:$0xff]
        %v1073 = vld [vmem:[%s910 + $0x68] sm:$0xff]
        %v1074 = vld [vmem:[%s910 + $0x70] sm:$0xff]
        %v1075 = vld [vmem:[%s910 + $0x78] sm:$0xff]
        %v1076 = vld [vmem:[%s917] sm:$0xf]
        %v1077 = vld [vmem:[%s917 + $0x4] sm:$0xf]
        %v1078 = vld [vmem:[%s917 + $0x8] sm:$0xf]
        %v1079 = vld [vmem:[%s917 + $0xc] sm:$0xf]
        %v1080 = vld [vmem:[%s917 + $0x10] sm:$0xf]
        %v1081 = vld [vmem:[%s917 + $0x14] sm:$0xf]
        %v1082 = vld [vmem:[%s917 + $0x18] sm:$0xf]
        %v1083 = vld [vmem:[%s917 + $0x1c] sm:$0xf]
        %v1084 = vld [vmem:[%s917 + $0x20] sm:$0xf]
        %v1085 = vld [vmem:[%s917 + $0x24] sm:$0xf]
        %v1086 = vld [vmem:[%s917 + $0x28] sm:$0xf]
        %v1087 = vld [vmem:[%s917 + $0x2c] sm:$0xf]
        %v1088 = vld [vmem:[%s917 + $0x30] sm:$0xf]
        %v1089 = vld [vmem:[%s917 + $0x34] sm:$0xf]
        %v1090 = vld [vmem:[%s917 + $0x38] sm:$0xf]
        %v1091 = vld [vmem:[%s917 + $0x3c] sm:$0xf]
        %v1092 = vunpack.c.l.bf16 %v1076
        %v1093 = vunpack.c.l.bf16 %v1077
        %v1094 = vunpack.c.l.bf16 %v1078
        %v1095 = vunpack.c.l.bf16 %v1079
        %v1096 = vunpack.c.l.bf16 %v1080
        %v1097 = vunpack.c.l.bf16 %v1081
        %v1098 = vunpack.c.l.bf16 %v1082
        %v1099 = vunpack.c.l.bf16 %v1083
        %v1100 = vunpack.c.l.bf16 %v1084
        %v1101 = vunpack.c.l.bf16 %v1085
        %v1102 = vunpack.c.l.bf16 %v1086
        %v1103 = vunpack.c.l.bf16 %v1087
        %v1104 = vunpack.c.l.bf16 %v1088
        %v1105 = vunpack.c.l.bf16 %v1089
        %v1106 = vunpack.c.l.bf16 %v1090
        %v1107 = vunpack.c.l.bf16 %v1091
        %v1108 = vmax.f32 %v1092, 0.0
        %v1109 = vmax.f32 %v1093, 0.0
        %v1110 = vmax.f32 %v1094, 0.0
        %v1111 = vmax.f32 %v1095, 0.0
        %v1112 = vmax.f32 %v1096, 0.0
        %v1113 = vmax.f32 %v1097, 0.0
        %v1114 = vmax.f32 %v1098, 0.0
        %v1115 = vmax.f32 %v1099, 0.0
        %v1116 = vmax.f32 %v1100, 0.0
        %v1117 = vmax.f32 %v1101, 0.0
        %v1118 = vmax.f32 %v1102, 0.0
        %v1119 = vmax.f32 %v1103, 0.0
        %v1120 = vmax.f32 %v1104, 0.0
        %v1121 = vmax.f32 %v1105, 0.0
        %v1122 = vmax.f32 %v1106, 0.0
        %v1123 = vmax.f32 %v1107, 0.0
        %v1124 = vld [vmem:[%s924] sm:$0xf]
        %v1125 = vld [vmem:[%s924 + $0x4] sm:$0xf]
        %v1126 = vld [vmem:[%s924 + $0x8] sm:$0xf]
        %v1127 = vld [vmem:[%s924 + $0xc] sm:$0xf]
        %v1128 = vld [vmem:[%s924 + $0x10] sm:$0xf]
        %v1129 = vld [vmem:[%s924 + $0x14] sm:$0xf]
        %v1130 = vld [vmem:[%s924 + $0x18] sm:$0xf]
        %v1131 = vld [vmem:[%s924 + $0x1c] sm:$0xf]
        %v1132 = vld [vmem:[%s924 + $0x20] sm:$0xf]
        %v1133 = vld [vmem:[%s924 + $0x24] sm:$0xf]
        %v1134 = vld [vmem:[%s924 + $0x28] sm:$0xf]
        %v1135 = vld [vmem:[%s924 + $0x2c] sm:$0xf]
        %v1136 = vld [vmem:[%s924 + $0x30] sm:$0xf]
        %v1137 = vld [vmem:[%s924 + $0x34] sm:$0xf]
        %v1138 = vld [vmem:[%s924 + $0x38] sm:$0xf]
        %v1139 = vld [vmem:[%s924 + $0x3c] sm:$0xf]
        %v1140 = vld [vmem:[%s931] sm:$0xf]
        %v1141 = vld [vmem:[%s931 + $0x4] sm:$0xf]
        %v1142 = vld [vmem:[%s931 + $0x8] sm:$0xf]
        %v1143 = vld [vmem:[%s931 + $0xc] sm:$0xf]
        %v1144 = vld [vmem:[%s931 + $0x10] sm:$0xf]
        %v1145 = vld [vmem:[%s931 + $0x14] sm:$0xf]
        %v1146 = vld [vmem:[%s931 + $0x18] sm:$0xf]
        %v1147 = vld [vmem:[%s931 + $0x1c] sm:$0xf]
        %v1148 = vld [vmem:[%s931 + $0x20] sm:$0xf]
        %v1149 = vld [vmem:[%s931 + $0x24] sm:$0xf]
        %v1150 = vld [vmem:[%s931 + $0x28] sm:$0xf]
        %v1151 = vld [vmem:[%s931 + $0x2c] sm:$0xf]
        %v1152 = vld [vmem:[%s931 + $0x30] sm:$0xf]
        %v1153 = vld [vmem:[%s931 + $0x34] sm:$0xf]
        %v1154 = vld [vmem:[%s931 + $0x38] sm:$0xf]
        %v1155 = vld [vmem:[%s931 + $0x3c] sm:$0xf]
        %v1156 = vunpack.c.l.bf16 %v1140
        %v1157 = vunpack.c.l.bf16 %v1141
        %v1158 = vunpack.c.l.bf16 %v1142
        %v1159 = vunpack.c.l.bf16 %v1143
        %v1160 = vunpack.c.l.bf16 %v1144
        %v1161 = vunpack.c.l.bf16 %v1145
        %v1162 = vunpack.c.l.bf16 %v1146
        %v1163 = vunpack.c.l.bf16 %v1147
        %v1164 = vunpack.c.l.bf16 %v1148
        %v1165 = vunpack.c.l.bf16 %v1149
        %v1166 = vunpack.c.l.bf16 %v1150
        %v1167 = vunpack.c.l.bf16 %v1151
        %v1168 = vunpack.c.l.bf16 %v1152
        %v1169 = vunpack.c.l.bf16 %v1153
        %v1170 = vunpack.c.l.bf16 %v1154
        %v1171 = vunpack.c.l.bf16 %v1155
        %v1172 = vmin.f32 %v1156, 0.0
        %v1173 = vmin.f32 %v1157, 0.0
        %v1174 = vmin.f32 %v1158, 0.0
        %v1175 = vmin.f32 %v1159, 0.0
        %v1176 = vmin.f32 %v1160, 0.0
        %v1177 = vmin.f32 %v1161, 0.0
        %v1178 = vmin.f32 %v1162, 0.0
        %v1179 = vmin.f32 %v1163, 0.0
        %v1180 = vmin.f32 %v1164, 0.0
        %v1181 = vmin.f32 %v1165, 0.0
        %v1182 = vmin.f32 %v1166, 0.0
        %v1183 = vmin.f32 %v1167, 0.0
        %v1184 = vmin.f32 %v1168, 0.0
        %v1185 = vmin.f32 %v1169, 0.0
        %v1186 = vmin.f32 %v1170, 0.0
        %v1187 = vmin.f32 %v1171, 0.0
        %v1188 = vand.u32 2147483647, %v1156
        %v1189 = vand.u32 2147483647, %v1157
        %v1190 = vand.u32 2147483647, %v1158
        %v1191 = vand.u32 2147483647, %v1159
        %v1192 = vand.u32 2147483647, %v1160
        %v1193 = vand.u32 2147483647, %v1161
        %v1194 = vand.u32 2147483647, %v1162
        %v1195 = vand.u32 2147483647, %v1163
        %v1196 = vand.u32 2147483647, %v1164
        %v1197 = vand.u32 2147483647, %v1165
        %v1198 = vand.u32 2147483647, %v1166
        %v1199 = vand.u32 2147483647, %v1167
        %v1200 = vand.u32 2147483647, %v1168
        %v1201 = vand.u32 2147483647, %v1169
        %v1202 = vand.u32 2147483647, %v1170
        %v1203 = vand.u32 2147483647, %v1171
        %v1204 = vsub.f32 0.0, %v1188
        %v1205 = vsub.f32 0.0, %v1189
        %v1206 = vsub.f32 0.0, %v1190
        %v1207 = vsub.f32 0.0, %v1191
        %v1208 = vsub.f32 0.0, %v1192
        %v1209 = vsub.f32 0.0, %v1193
        %v1210 = vsub.f32 0.0, %v1194
        %v1211 = vsub.f32 0.0, %v1195
        %v1212 = vsub.f32 0.0, %v1196
        %v1213 = vsub.f32 0.0, %v1197
        %v1214 = vsub.f32 0.0, %v1198
        %v1215 = vsub.f32 0.0, %v1199
        %v1216 = vsub.f32 0.0, %v1200
        %v1217 = vsub.f32 0.0, %v1201
        %v1218 = vsub.f32 0.0, %v1202
        %v1219 = vsub.f32 0.0, %v1203
        %v1220 = vmul.f32 %v1204, 1.442695
        %v1221 = vpow.pop %v1220
        %v1222 = vmul.f32 %v1205, 1.442695
        %v1223 = vpow.pop %v1222
        %v1224 = vmul.f32 %v1206, 1.442695
        %v1225 = vpow.pop %v1224
        %v1226 = vmul.f32 %v1207, 1.442695
        %v1227 = vpow.pop %v1226
        %v1228 = vmul.f32 %v1208, 1.442695
        %v1229 = vpow.pop %v1228
        %v1230 = vmul.f32 %v1209, 1.442695
        %v1231 = vpow.pop %v1230
        %v1232 = vmul.f32 %v1210, 1.442695
        %v1233 = vpow.pop %v1232
        %v1234 = vmul.f32 %v1211, 1.442695
        %v1235 = vpow.pop %v1234
        %v1236 = vmul.f32 %v1212, 1.442695
        %v1237 = vpow.pop %v1236
        %v1238 = vmul.f32 %v1213, 1.442695
        %v1239 = vpow.pop %v1238
        %v1240 = vmul.f32 %v1214, 1.442695
        %v1241 = vpow.pop %v1240
        %v1242 = vmul.f32 %v1215, 1.442695
        %v1243 = vpow.pop %v1242
        %v1244 = vmul.f32 %v1216, 1.442695
        %v1245 = vpow.pop %v1244
        %v1246 = vmul.f32 %v1217, 1.442695
        %v1247 = vpow.pop %v1246
        %v1248 = vmul.f32 %v1218, 1.442695
        %v1249 = vpow.pop %v1248
        %v1250 = vmul.f32 %v1219, 1.442695
        %v1251 = vpow.pop %v1250
        %v1252 = vadd.f32 %v1221, 1.0
        %v1253 = vadd.f32 %v1223, 1.0
        %v1254 = vadd.f32 %v1225, 1.0
        %v1255 = vadd.f32 %v1227, 1.0
        %v1256 = vadd.f32 %v1229, 1.0
        %v1257 = vadd.f32 %v1231, 1.0
        %v1258 = vadd.f32 %v1233, 1.0
        %v1259 = vadd.f32 %v1235, 1.0
        %v1260 = vadd.f32 %v1237, 1.0
        %v1261 = vadd.f32 %v1239, 1.0
        %v1262 = vadd.f32 %v1241, 1.0
        %v1263 = vadd.f32 %v1243, 1.0
        %v1264 = vadd.f32 %v1245, 1.0
        %v1265 = vadd.f32 %v1247, 1.0
        %v1266 = vadd.f32 %v1249, 1.0
        %v1267 = vadd.f32 %v1251, 1.0
        %v1268 = vlog2.pop %v1252
        %v1269 = vmul.f32 %v1268, 0.6931472
        %v1270 = vlog2.pop %v1253
        %v1271 = vmul.f32 %v1270, 0.6931472
        %v1272 = vlog2.pop %v1254
        %v1273 = vmul.f32 %v1272, 0.6931472
        %v1274 = vlog2.pop %v1255
        %v1275 = vmul.f32 %v1274, 0.6931472
        %v1276 = vlog2.pop %v1256
        %v1277 = vmul.f32 %v1276, 0.6931472
        %v1278 = vlog2.pop %v1257
        %v1279 = vmul.f32 %v1278, 0.6931472
        %v1280 = vlog2.pop %v1258
        %v1281 = vmul.f32 %v1280, 0.6931472
        %v1282 = vlog2.pop %v1259
        %v1283 = vmul.f32 %v1282, 0.6931472
        %v1284 = vlog2.pop %v1260
        %v1285 = vmul.f32 %v1284, 0.6931472
        %v1286 = vlog2.pop %v1261
        %v1287 = vmul.f32 %v1286, 0.6931472
        %v1288 = vlog2.pop %v1262
        %v1289 = vmul.f32 %v1288, 0.6931472
        %v1290 = vlog2.pop %v1263
        %v1291 = vmul.f32 %v1290, 0.6931472
        %v1292 = vlog2.pop %v1264
        %v1293 = vmul.f32 %v1292, 0.6931472
        %v1294 = vlog2.pop %v1265
        %v1295 = vmul.f32 %v1294, 0.6931472
        %v1296 = vlog2.pop %v1266
        %v1297 = vmul.f32 %v1296, 0.6931472
        %v1298 = vlog2.pop %v1267
        %v1299 = vmul.f32 %v1298, 0.6931472
        %v1300 = vsub.f32 %v1172, %v1269
        %v1301 = vsub.f32 %v1173, %v1271
        %v1302 = vsub.f32 %v1174, %v1273
        %v1303 = vsub.f32 %v1175, %v1275
        %v1304 = vsub.f32 %v1176, %v1277
        %v1305 = vsub.f32 %v1177, %v1279
        %v1306 = vsub.f32 %v1178, %v1281
        %v1307 = vsub.f32 %v1179, %v1283
        %v1308 = vsub.f32 %v1180, %v1285
        %v1309 = vsub.f32 %v1181, %v1287
        %v1310 = vsub.f32 %v1182, %v1289
        %v1311 = vsub.f32 %v1183, %v1291
        %v1312 = vsub.f32 %v1184, %v1293
        %v1313 = vsub.f32 %v1185, %v1295
        %v1314 = vsub.f32 %v1186, %v1297
        %v1315 = vsub.f32 %v1187, %v1299
        %v1316 = vmul.f32 %v1300, 0.0625
        %v1317 = vmul.f32 %v1301, 0.0625
        %v1318 = vmul.f32 %v1302, 0.0625
        %v1319 = vmul.f32 %v1303, 0.0625
        %v1320 = vmul.f32 %v1304, 0.0625
        %v1321 = vmul.f32 %v1305, 0.0625
        %v1322 = vmul.f32 %v1306, 0.0625
        %v1323 = vmul.f32 %v1307, 0.0625
        %v1324 = vmul.f32 %v1308, 0.0625
        %v1325 = vmul.f32 %v1309, 0.0625
        %v1326 = vmul.f32 %v1310, 0.0625
        %v1327 = vmul.f32 %v1311, 0.0625
        %v1328 = vmul.f32 %v1312, 0.0625
        %v1329 = vmul.f32 %v1313, 0.0625
        %v1330 = vmul.f32 %v1314, 0.0625
        %v1331 = vmul.f32 %v1315, 0.0625
        %1332 = vmatprep.subr.mxu0 0.0
        %1333 = vmatpush1.msra.mxu0 %v1316
        %1334 = vmatprep.subr.mxu0 0.0
        %1335 = vmatpush1.msra.mxu0 %v1317
        %1336 = vmatprep.subr.mxu0 0.0
        %1337 = vmatpush1.msra.mxu0 %v1318
        %1338 = vmatprep.subr.mxu0 0.0
        %1339 = vmatpush1.msra.mxu0 %v1319
        %1340 = vmatprep.subr.mxu0 0.0
        %1341 = vmatpush1.msra.mxu0 %v1320
        %1342 = vmatprep.subr.mxu0 0.0
        %1343 = vmatpush1.msra.mxu0 %v1321
        %1344 = vmatprep.subr.mxu0 0.0
        %1345 = vmatpush1.msra.mxu0 %v1322
        %1346 = vmatprep.subr.mxu0 0.0
        %1347 = vmatpush1.msra.mxu0 %v1323
        %1348 = vmatprep.subr.mxu0 0.0
        %1349 = vmatpush1.msra.mxu0 %v1324
        %1350 = vmatprep.subr.mxu0 0.0
        %1351 = vmatpush1.msra.mxu0 %v1325
        %1352 = vmatprep.subr.mxu0 0.0
        %1353 = vmatpush1.msra.mxu0 %v1326
        %1354 = vmatprep.subr.mxu0 0.0
        %1355 = vmatpush1.msra.mxu0 %v1327
        %1356 = vmatprep.subr.mxu0 0.0
        %1357 = vmatpush1.msra.mxu0 %v1328
        %1358 = vmatprep.subr.mxu0 0.0
        %1359 = vmatpush1.msra.mxu0 %v1329
        %1360 = vmatprep.subr.mxu0 0.0
        %1361 = vmatpush1.msra.mxu0 %v1330
        %1362 = vmatprep.subr.mxu0 0.0
        %1363 = vmatpush1.msra.mxu0 %v1331
        %1364 = vmatprep.subr.mxu0 0.0
        %1365 = vmatpush1.msra.mxu0 0.0
        %1366 = vmatprep.subr.mxu0 0.0
        %1367 = vmatpush1.msra.mxu0 0.0
        %1368 = vmatprep.subr.mxu0 0.0
        %1369 = vmatpush1.msra.mxu0 0.0
        %1370 = vmatprep.subr.mxu0 0.0
        %1371 = vmatpush1.msra.mxu0 0.0
        %1372 = vmatprep.subr.mxu0 0.0
        %1373 = vmatpush1.msra.mxu0 0.0
        %1374 = vmatprep.subr.mxu0 0.0
        %1375 = vmatpush1.msra.mxu0 0.0
        %1376 = vmatprep.subr.mxu0 0.0
        %1377 = vmatpush1.msra.mxu0 0.0
        %1378 = vmatprep.subr.mxu0 0.0
        %1379 = vmatpush1.msra.mxu0 0.0
        %1380 = vmatprep.subr.mxu0 0.0
        %1381 = vmatpush1.msra.mxu0 0.0
        %1382 = vmatprep.subr.mxu0 0.0
        %1383 = vmatpush1.msra.mxu0 0.0
        %1384 = vmatprep.subr.mxu0 0.0
        %1385 = vmatpush1.msra.mxu0 0.0
        %1386 = vmatprep.subr.mxu0 0.0
        %1387 = vmatpush1.msra.mxu0 0.0
        %1388 = vmatprep.subr.mxu0 0.0
        %1389 = vmatpush1.msra.mxu0 0.0
        %1390 = vmatprep.subr.mxu0 0.0
        %1391 = vmatpush1.msra.mxu0 0.0
        %1392 = vmatprep.subr.mxu0 0.0
        %1393 = vmatpush1.msra.mxu0 0.0
        %1394 = vmatprep.subr.mxu0 0.0
        %1395 = vmatpush1.msra.mxu0 0.0
        %1396 = vmatprep.mubr.f32.mxu0 0.0
        %1397 = vmatmul.mubr.f32.gmra.mrb[0].mxu0 %v1044
        %v1398 = vpop.f32.mrb[0].mxu0
        %v1399 = vadd.f32 0.0, %v1398
        %v1400 = vpop.f32.mrb[0].mxu0
        %1401 = vmatprep.mubr.f32.mxu0 0.0
        %1402 = vmatmul.mubr.f32.gmra.mrb[0].mxu0 %v1045
        %v1403 = vpop.f32.mrb[0].mxu0
        %v1404 = vadd.f32 0.0, %v1403
        %v1405 = vpop.f32.mrb[0].mxu0
        %1406 = vmatprep.mubr.f32.mxu0 0.0
        %1407 = vmatmul.mubr.f32.gmra.mrb[0].mxu0 %v1046
        %v1408 = vpop.f32.mrb[0].mxu0
        %v1409 = vadd.f32 0.0, %v1408
        %v1410 = vpop.f32.mrb[0].mxu0
        %1411 = vmatprep.mubr.f32.mxu0 0.0
        %1412 = vmatmul.mubr.f32.gmra.mrb[0].mxu0 %v1047
        %v1413 = vpop.f32.mrb[0].mxu0
        %v1414 = vadd.f32 0.0, %v1413
        %v1415 = vpop.f32.mrb[0].mxu0
        %1416 = vmatprep.mubr.f32.mxu0 0.0
        %1417 = vmatmul.mubr.f32.gmra.mrb[0].mxu0 %v1048
        %v1418 = vpop.f32.mrb[0].mxu0
        %v1419 = vadd.f32 0.0, %v1418
        %v1420 = vpop.f32.mrb[0].mxu0
        %1421 = vmatprep.mubr.f32.mxu0 0.0
        %1422 = vmatmul.mubr.f32.gmra.mrb[0].mxu0 %v1049
        %v1423 = vpop.f32.mrb[0].mxu0
        %v1424 = vadd.f32 0.0, %v1423
        %v1425 = vpop.f32.mrb[0].mxu0
        %1426 = vmatprep.mubr.f32.mxu0 0.0
        %1427 = vmatmul.mubr.f32.gmra.mrb[0].mxu0 %v1050
        %v1428 = vpop.f32.mrb[0].mxu0
        %v1429 = vadd.f32 0.0, %v1428
        %v1430 = vpop.f32.mrb[0].mxu0
        %1431 = vmatprep.mubr.f32.mxu0 0.0
        %1432 = vmatmul.mubr.f32.gmra.mrb[0].mxu0 %v1051
        %v1433 = vpop.f32.mrb[0].mxu0
        %v1434 = vadd.f32 0.0, %v1433
        %v1435 = vpop.f32.mrb[0].mxu0
        %1436 = vmatprep.mubr.f32.mxu0 0.0
        %1437 = vmatmul.mubr.f32.gmra.mrb[0].mxu0 %v1052
        %v1438 = vpop.f32.mrb[0].mxu0
        %v1439 = vadd.f32 0.0, %v1438
        %v1440 = vpop.f32.mrb[0].mxu0
        %1441 = vmatprep.mubr.f32.mxu0 0.0
        %1442 = vmatmul.mubr.f32.gmra.mrb[0].mxu0 %v1053
        %v1443 = vpop.f32.mrb[0].mxu0
        %v1444 = vadd.f32 0.0, %v1443
        %v1445 = vpop.f32.mrb[0].mxu0
        %1446 = vmatprep.mubr.f32.mxu0 0.0
        %1447 = vmatmul.mubr.f32.gmra.mrb[0].mxu0 %v1054
        %v1448 = vpop.f32.mrb[0].mxu0
        %v1449 = vadd.f32 0.0, %v1448
        %v1450 = vpop.f32.mrb[0].mxu0
        %1451 = vmatprep.mubr.f32.mxu0 0.0
        %1452 = vmatmul.mubr.f32.gmra.mrb[0].mxu0 %v1055
        %v1453 = vpop.f32.mrb[0].mxu0
        %v1454 = vadd.f32 0.0, %v1453
        %v1455 = vpop.f32.mrb[0].mxu0
        %1456 = vmatprep.mubr.f32.mxu0 0.0
        %1457 = vmatmul.mubr.f32.gmra.mrb[0].mxu0 %v1056
        %v1458 = vpop.f32.mrb[0].mxu0
        %v1459 = vadd.f32 0.0, %v1458
        %v1460 = vpop.f32.mrb[0].mxu0
        %1461 = vmatprep.mubr.f32.mxu0 0.0
        %1462 = vmatmul.mubr.f32.gmra.mrb[0].mxu0 %v1057
        %v1463 = vpop.f32.mrb[0].mxu0
        %v1464 = vadd.f32 0.0, %v1463
        %v1465 = vpop.f32.mrb[0].mxu0
        %1466 = vmatprep.mubr.f32.mxu0 0.0
        %1467 = vmatmul.mubr.f32.gmra.mrb[0].mxu0 %v1058
        %v1468 = vpop.f32.mrb[0].mxu0
        %v1469 = vadd.f32 0.0, %v1468
        %v1470 = vpop.f32.mrb[0].mxu0
        %1471 = vmatprep.mubr.f32.mxu0 0.0
        %1472 = vmatmul.mubr.f32.gmra.mrb[0].mxu0 %v1059
        %v1473 = vpop.f32.mrb[0].mxu0
        %v1474 = vadd.f32 0.0, %v1473
        %v1475 = vpop.f32.mrb[0].mxu0
        %1476 = vdwg.mxu0
        %v1477 = vmax.f32 %v1399, -60.0
        %v1478 = vmax.f32 %v1404, -60.0
        %v1479 = vmax.f32 %v1409, -60.0
        %v1480 = vmax.f32 %v1414, -60.0
        %v1481 = vmax.f32 %v1419, -60.0
        %v1482 = vmax.f32 %v1424, -60.0
        %v1483 = vmax.f32 %v1429, -60.0
        %v1484 = vmax.f32 %v1434, -60.0
        %v1485 = vmax.f32 %v1439, -60.0
        %v1486 = vmax.f32 %v1444, -60.0
        %v1487 = vmax.f32 %v1449, -60.0
        %v1488 = vmax.f32 %v1454, -60.0
        %v1489 = vmax.f32 %v1459, -60.0
        %v1490 = vmax.f32 %v1464, -60.0
        %v1491 = vmax.f32 %v1469, -60.0
        %v1492 = vmax.f32 %v1474, -60.0
        %v1493 = vmul.f32 %v1477, 1.442695
        %v1494 = vpow.pop %v1493
        %v1495 = vmul.f32 %v1478, 1.442695
        %v1496 = vpow.pop %v1495
        %v1497 = vmul.f32 %v1479, 1.442695
        %v1498 = vpow.pop %v1497
        %v1499 = vmul.f32 %v1480, 1.442695
        %v1500 = vpow.pop %v1499
        %v1501 = vmul.f32 %v1481, 1.442695
        %v1502 = vpow.pop %v1501
        %v1503 = vmul.f32 %v1482, 1.442695
        %v1504 = vpow.pop %v1503
        %v1505 = vmul.f32 %v1483, 1.442695
        %v1506 = vpow.pop %v1505
        %v1507 = vmul.f32 %v1484, 1.442695
        %v1508 = vpow.pop %v1507
        %v1509 = vmul.f32 %v1485, 1.442695
        %v1510 = vpow.pop %v1509
        %v1511 = vmul.f32 %v1486, 1.442695
        %v1512 = vpow.pop %v1511
        %v1513 = vmul.f32 %v1487, 1.442695
        %v1514 = vpow.pop %v1513
        %v1515 = vmul.f32 %v1488, 1.442695
        %v1516 = vpow.pop %v1515
        %v1517 = vmul.f32 %v1489, 1.442695
        %v1518 = vpow.pop %v1517
        %v1519 = vmul.f32 %v1490, 1.442695
        %v1520 = vpow.pop %v1519
        %v1521 = vmul.f32 %v1491, 1.442695
        %v1522 = vpow.pop %v1521
        %v1523 = vmul.f32 %v1492, 1.442695
        %v1524 = vpow.pop %v1523
        %v1525 = vrcp.pop %v1494
        %v1526 = vrcp.pop %v1496
        %v1527 = vrcp.pop %v1498
        %v1528 = vrcp.pop %v1500
        %v1529 = vrcp.pop %v1502
        %v1530 = vrcp.pop %v1504
        %v1531 = vrcp.pop %v1506
        %v1532 = vrcp.pop %v1508
        %v1533 = vrcp.pop %v1510
        %v1534 = vrcp.pop %v1512
        %v1535 = vrcp.pop %v1514
        %v1536 = vrcp.pop %v1516
        %v1537 = vrcp.pop %v1518
        %v1538 = vrcp.pop %v1520
        %v1539 = vrcp.pop %v1522
        %v1540 = vrcp.pop %v1524
        %v1541 = vmul.f32 %v1108, %v1525
        %v1542 = vmul.f32 %v1109, %v1526
        %v1543 = vmul.f32 %v1110, %v1527
        %v1544 = vmul.f32 %v1111, %v1528
        %v1545 = vmul.f32 %v1112, %v1529
        %v1546 = vmul.f32 %v1113, %v1530
        %v1547 = vmul.f32 %v1114, %v1531
        %v1548 = vmul.f32 %v1115, %v1532
        %v1549 = vmul.f32 %v1116, %v1533
        %v1550 = vmul.f32 %v1117, %v1534
        %v1551 = vmul.f32 %v1118, %v1535
        %v1552 = vmul.f32 %v1119, %v1536
        %v1553 = vmul.f32 %v1120, %v1537
        %v1554 = vmul.f32 %v1121, %v1538
        %v1555 = vmul.f32 %v1122, %v1539
        %v1556 = vmul.f32 %v1123, %v1540
        %v1557 = vpack.c.bf16 %v1542, %v1541
        %v1558 = vpack.c.bf16 %v1544, %v1543
        %v1559 = vpack.c.bf16 %v1546, %v1545
        %v1560 = vpack.c.bf16 %v1548, %v1547
        %v1561 = vpack.c.bf16 %v1550, %v1549
        %v1562 = vpack.c.bf16 %v1552, %v1551
        %v1563 = vpack.c.bf16 %v1554, %v1553
        %v1564 = vpack.c.bf16 %v1556, %v1555
        %v1565 = vlaneseq
        %v1566 = vshrl.u32 %v1565, 7
        %v1567 = vsub.s32 7, %v1566
        %v1568 = vrot.slane %v1524, %v1567
        %v1569 = vmul.f32 %v1541, %v1568
        %v1570 = vmul.f32 %v1542, %v1568
        %v1571 = vmul.f32 %v1543, %v1568
        %v1572 = vmul.f32 %v1544, %v1568
        %v1573 = vmul.f32 %v1545, %v1568
        %v1574 = vmul.f32 %v1546, %v1568
        %v1575 = vmul.f32 %v1547, %v1568
        %v1576 = vmul.f32 %v1548, %v1568
        %v1577 = vmul.f32 %v1549, %v1568
        %v1578 = vmul.f32 %v1550, %v1568
        %v1579 = vmul.f32 %v1551, %v1568
        %v1580 = vmul.f32 %v1552, %v1568
        %v1581 = vmul.f32 %v1553, %v1568
        %v1582 = vmul.f32 %v1554, %v1568
        %v1583 = vmul.f32 %v1555, %v1568
        %v1584 = vmul.f32 %v1556, %v1568
        %v1585 = vpack.c.bf16 %v1570, %v1569
        %v1586 = vpack.c.bf16 %v1572, %v1571
        %v1587 = vpack.c.bf16 %v1574, %v1573
        %v1588 = vpack.c.bf16 %v1576, %v1575
        %v1589 = vpack.c.bf16 %v1578, %v1577
        %v1590 = vpack.c.bf16 %v1580, %v1579
        %v1591 = vpack.c.bf16 %v1582, %v1581
        %v1592 = vpack.c.bf16 %v1584, %v1583
        %v1593 = vunpack.c.l.bf16 %v1060
        %v1594 = vunpack.c.l.bf16 %v1061
        %v1595 = vunpack.c.l.bf16 %v1062
        %v1596 = vunpack.c.l.bf16 %v1063
        %v1597 = vunpack.c.l.bf16 %v1064
        %v1598 = vunpack.c.l.bf16 %v1065
        %v1599 = vunpack.c.l.bf16 %v1066
        %v1600 = vunpack.c.l.bf16 %v1067
        %v1601 = vunpack.c.l.bf16 %v1068
        %v1602 = vunpack.c.l.bf16 %v1069
        %v1603 = vunpack.c.l.bf16 %v1070
        %v1604 = vunpack.c.l.bf16 %v1071
        %v1605 = vunpack.c.l.bf16 %v1072
        %v1606 = vunpack.c.l.bf16 %v1073
        %v1607 = vunpack.c.l.bf16 %v1074
        %v1608 = vunpack.c.l.bf16 %v1075
        %v1609 = vmax.f32 %v1593, 0.0
        %v1610 = vmax.f32 %v1594, 0.0
        %v1611 = vmax.f32 %v1595, 0.0
        %v1612 = vmax.f32 %v1596, 0.0
        %v1613 = vmax.f32 %v1597, 0.0
        %v1614 = vmax.f32 %v1598, 0.0
        %v1615 = vmax.f32 %v1599, 0.0
        %v1616 = vmax.f32 %v1600, 0.0
        %v1617 = vmax.f32 %v1601, 0.0
        %v1618 = vmax.f32 %v1602, 0.0
        %v1619 = vmax.f32 %v1603, 0.0
        %v1620 = vmax.f32 %v1604, 0.0
        %v1621 = vmax.f32 %v1605, 0.0
        %v1622 = vmax.f32 %v1606, 0.0
        %v1623 = vmax.f32 %v1607, 0.0
        %v1624 = vmax.f32 %v1608, 0.0
        %v1625 = vmul.f32 %v1609, 0.088388346
        %v1626 = vmul.f32 %v1610, 0.088388346
        %v1627 = vmul.f32 %v1611, 0.088388346
        %v1628 = vmul.f32 %v1612, 0.088388346
        %v1629 = vmul.f32 %v1613, 0.088388346
        %v1630 = vmul.f32 %v1614, 0.088388346
        %v1631 = vmul.f32 %v1615, 0.088388346
        %v1632 = vmul.f32 %v1616, 0.088388346
        %v1633 = vmul.f32 %v1617, 0.088388346
        %v1634 = vmul.f32 %v1618, 0.088388346
        %v1635 = vmul.f32 %v1619, 0.088388346
        %v1636 = vmul.f32 %v1620, 0.088388346
        %v1637 = vmul.f32 %v1621, 0.088388346
        %v1638 = vmul.f32 %v1622, 0.088388346
        %v1639 = vmul.f32 %v1623, 0.088388346
        %v1640 = vmul.f32 %v1624, 0.088388346
        %v1641 = vmul.f32 %v1625, %v1494
        %v1642 = vmul.f32 %v1626, %v1496
        %v1643 = vmul.f32 %v1627, %v1498
        %v1644 = vmul.f32 %v1628, %v1500
        %v1645 = vmul.f32 %v1629, %v1502
        %v1646 = vmul.f32 %v1630, %v1504
        %v1647 = vmul.f32 %v1631, %v1506
        %v1648 = vmul.f32 %v1632, %v1508
        %v1649 = vmul.f32 %v1633, %v1510
        %v1650 = vmul.f32 %v1634, %v1512
        %v1651 = vmul.f32 %v1635, %v1514
        %v1652 = vmul.f32 %v1636, %v1516
        %v1653 = vmul.f32 %v1637, %v1518
        %v1654 = vmul.f32 %v1638, %v1520
        %v1655 = vmul.f32 %v1639, %v1522
        %v1656 = vmul.f32 %v1640, %v1524
        %v1673 = vrot.slane %v1060, 4
        %v1674 = vrot.slane %v1061, 4
        %v1675 = vrot.slane %v1062, 4
        %v1676 = vrot.slane %v1063, 4
        %v1677 = vrot.slane %v1064, 4
        %v1678 = vrot.slane %v1065, 4
        %v1679 = vrot.slane %v1066, 4
        %v1680 = vrot.slane %v1067, 4
        %v1681 = vrot.slane %v1068, 4
        %v1682 = vrot.slane %v1069, 4
        %v1683 = vrot.slane %v1070, 4
        %v1684 = vrot.slane %v1071, 4
        %v1685 = vrot.slane %v1072, 4
        %v1686 = vrot.slane %v1073, 4
        %v1687 = vrot.slane %v1074, 4
        %v1688 = vrot.slane %v1075, 4
        %v1705 = vunpack.c.l.bf16 %v1673
        %v1706 = vunpack.c.l.bf16 %v1674
        %v1707 = vunpack.c.l.bf16 %v1675
        %v1708 = vunpack.c.l.bf16 %v1676
        %v1709 = vunpack.c.l.bf16 %v1677
        %v1710 = vunpack.c.l.bf16 %v1678
        %v1711 = vunpack.c.l.bf16 %v1679
        %v1712 = vunpack.c.l.bf16 %v1680
        %v1713 = vunpack.c.l.bf16 %v1681
        %v1714 = vunpack.c.l.bf16 %v1682
        %v1715 = vunpack.c.l.bf16 %v1683
        %v1716 = vunpack.c.l.bf16 %v1684
        %v1717 = vunpack.c.l.bf16 %v1685
        %v1718 = vunpack.c.l.bf16 %v1686
        %v1719 = vunpack.c.l.bf16 %v1687
        %v1720 = vunpack.c.l.bf16 %v1688
        %v1721 = vmax.f32 %v1705, 0.0
        %v1722 = vmax.f32 %v1706, 0.0
        %v1723 = vmax.f32 %v1707, 0.0
        %v1724 = vmax.f32 %v1708, 0.0
        %v1725 = vmax.f32 %v1709, 0.0
        %v1726 = vmax.f32 %v1710, 0.0
        %v1727 = vmax.f32 %v1711, 0.0
        %v1728 = vmax.f32 %v1712, 0.0
        %v1729 = vmax.f32 %v1713, 0.0
        %v1730 = vmax.f32 %v1714, 0.0
        %v1731 = vmax.f32 %v1715, 0.0
        %v1732 = vmax.f32 %v1716, 0.0
        %v1733 = vmax.f32 %v1717, 0.0
        %v1734 = vmax.f32 %v1718, 0.0
        %v1735 = vmax.f32 %v1719, 0.0
        %v1736 = vmax.f32 %v1720, 0.0
        %v1737 = vmul.f32 %v1721, 0.088388346
        %v1738 = vmul.f32 %v1722, 0.088388346
        %v1739 = vmul.f32 %v1723, 0.088388346
        %v1740 = vmul.f32 %v1724, 0.088388346
        %v1741 = vmul.f32 %v1725, 0.088388346
        %v1742 = vmul.f32 %v1726, 0.088388346
        %v1743 = vmul.f32 %v1727, 0.088388346
        %v1744 = vmul.f32 %v1728, 0.088388346
        %v1745 = vmul.f32 %v1729, 0.088388346
        %v1746 = vmul.f32 %v1730, 0.088388346
        %v1747 = vmul.f32 %v1731, 0.088388346
        %v1748 = vmul.f32 %v1732, 0.088388346
        %v1749 = vmul.f32 %v1733, 0.088388346
        %v1750 = vmul.f32 %v1734, 0.088388346
        %v1751 = vmul.f32 %v1735, 0.088388346
        %v1752 = vmul.f32 %v1736, 0.088388346
        %v1753 = vmul.f32 %v1737, %v1494
        %v1754 = vmul.f32 %v1738, %v1496
        %v1755 = vmul.f32 %v1739, %v1498
        %v1756 = vmul.f32 %v1740, %v1500
        %v1757 = vmul.f32 %v1741, %v1502
        %v1758 = vmul.f32 %v1742, %v1504
        %v1759 = vmul.f32 %v1743, %v1506
        %v1760 = vmul.f32 %v1744, %v1508
        %v1761 = vmul.f32 %v1745, %v1510
        %v1762 = vmul.f32 %v1746, %v1512
        %v1763 = vmul.f32 %v1747, %v1514
        %v1764 = vmul.f32 %v1748, %v1516
        %v1765 = vmul.f32 %v1749, %v1518
        %v1766 = vmul.f32 %v1750, %v1520
        %v1767 = vmul.f32 %v1751, %v1522
        %v1768 = vmul.f32 %v1752, %v1524
        %v1769 = vpack.c.bf16 %v1642, %v1641
        %v1770 = vpack.c.bf16 %v1644, %v1643
        %v1771 = vpack.c.bf16 %v1646, %v1645
        %v1772 = vpack.c.bf16 %v1648, %v1647
        %v1773 = vpack.c.bf16 %v1650, %v1649
        %v1774 = vpack.c.bf16 %v1652, %v1651
        %v1775 = vpack.c.bf16 %v1654, %v1653
        %v1776 = vpack.c.bf16 %v1656, %v1655
        %v1777 = vpack.c.bf16 %v1754, %v1753
        %v1778 = vpack.c.bf16 %v1756, %v1755
        %v1779 = vpack.c.bf16 %v1758, %v1757
        %v1780 = vpack.c.bf16 %v1760, %v1759
        %v1781 = vpack.c.bf16 %v1762, %v1761
        %v1782 = vpack.c.bf16 %v1764, %v1763
        %v1783 = vpack.c.bf16 %v1766, %v1765
        %v1784 = vpack.c.bf16 %v1768, %v1767
        %v1785 = vld [vmem:[#allocation2] sm:$0xff]
        %v1786 = vld [vmem:[#allocation2 + $0x8] sm:$0xff]
        %v1787 = vld [vmem:[#allocation2 + $0x10] sm:$0xff]
        %v1788 = vld [vmem:[#allocation2 + $0x18] sm:$0xff]
        %v1789 = vld [vmem:[#allocation2 + $0x20] sm:$0xff]
        %v1790 = vld [vmem:[#allocation2 + $0x28] sm:$0xff]
        %v1791 = vld [vmem:[#allocation2 + $0x30] sm:$0xff]
        %v1792 = vld [vmem:[#allocation2 + $0x38] sm:$0xff]
        %v1793 = vld [vmem:[#allocation2 + $0x40] sm:$0xff]
        %v1794 = vld [vmem:[#allocation2 + $0x48] sm:$0xff]
        %v1795 = vld [vmem:[#allocation2 + $0x50] sm:$0xff]
        %v1796 = vld [vmem:[#allocation2 + $0x58] sm:$0xff]
        %v1797 = vld [vmem:[#allocation2 + $0x60] sm:$0xff]
        %v1798 = vld [vmem:[#allocation2 + $0x68] sm:$0xff]
        %v1799 = vld [vmem:[#allocation2 + $0x70] sm:$0xff]
        %v1800 = vld [vmem:[#allocation2 + $0x78] sm:$0xff]
        %v1801 = vpack.c.bf16 %v1786, %v1785
        %v1802 = vpack.c.bf16 %v1788, %v1787
        %v1803 = vpack.c.bf16 %v1790, %v1789
        %v1804 = vpack.c.bf16 %v1792, %v1791
        %v1805 = vpack.c.bf16 %v1794, %v1793
        %v1806 = vpack.c.bf16 %v1796, %v1795
        %v1807 = vpack.c.bf16 %v1798, %v1797
        %v1808 = vpack.c.bf16 %v1800, %v1799
        %1809 = vmatprep.subr.bf16.mxu0 0
        %1810 = vmatpush1.bf16.xpose.msra.mxu0 %v1557
        %1811 = vmatprep.subr.bf16.mxu0 0
        %1812 = vmatpush1.bf16.xpose.msra.mxu0 %v1558
        %1813 = vmatprep.subr.bf16.mxu0 0
        %1814 = vmatpush1.bf16.xpose.msra.mxu0 %v1559
        %1815 = vmatprep.subr.bf16.mxu0 0
        %1816 = vmatpush1.bf16.xpose.msra.mxu0 %v1560
        %1817 = vmatprep.subr.bf16.mxu0 0
        %1818 = vmatpush1.bf16.xpose.msra.mxu0 %v1561
        %1819 = vmatprep.subr.bf16.mxu0 0
        %1820 = vmatpush1.bf16.xpose.msra.mxu0 %v1562
        %1821 = vmatprep.subr.bf16.mxu0 0
        %1822 = vmatpush1.bf16.xpose.msra.mxu0 %v1563
        %1823 = vmatprep.subr.bf16.mxu0 0
        %1824 = vmatpush1.bf16.xpose.msra.mxu0 %v1564
        %1825 = vmatprep.subr.bf16.mxu0 0
        %1826 = vmatpush1.bf16.xpose.msra.mxu0 0
        %1827 = vmatprep.subr.bf16.mxu0 0
        %1828 = vmatpush1.bf16.xpose.msra.mxu0 0
        %1829 = vmatprep.subr.bf16.mxu0 0
        %1830 = vmatpush1.bf16.xpose.msra.mxu0 0
        %1831 = vmatprep.subr.bf16.mxu0 0
        %1832 = vmatpush1.bf16.xpose.msra.mxu0 0
        %1833 = vmatprep.subr.bf16.mxu0 0
        %1834 = vmatpush1.bf16.xpose.msra.mxu0 0
        %1835 = vmatprep.subr.bf16.mxu0 0
        %1836 = vmatpush1.bf16.xpose.msra.mxu0 0
        %1837 = vmatprep.subr.bf16.mxu0 0
        %1838 = vmatpush1.bf16.xpose.msra.mxu0 0
        %1839 = vmatprep.subr.bf16.mxu0 0
        %1840 = vmatpush1.bf16.xpose.msra.mxu0 0
        %1841 = vmatprep.mubr.bf16.mxu0 0
        %1842 = vmatmul.mubr.bf16.gmra.mrb[0].mxu0 %v1769
        %v1843 = vpop.f32.mrb[0].mxu0
        %v1844 = vadd.f32 0.0, %v1843
        %v1845 = vpop.f32.mrb[0].mxu0
        %v1846 = vpop.f32.mrb[0].mxu0
        %v1847 = vadd.f32 0.0, %v1846
        %v1848 = vpop.f32.mrb[0].mxu0
        %1849 = vmatprep.mubr.bf16.mxu0 0
        %1850 = vmatmul.mubr.bf16.gmra.mrb[0].mxu0 %v1770
        %v1851 = vpop.f32.mrb[0].mxu0
        %v1852 = vadd.f32 0.0, %v1851
        %v1853 = vpop.f32.mrb[0].mxu0
        %v1854 = vpop.f32.mrb[0].mxu0
        %v1855 = vadd.f32 0.0, %v1854
        %v1856 = vpop.f32.mrb[0].mxu0
        %1857 = vmatprep.mubr.bf16.mxu0 0
        %1858 = vmatmul.mubr.bf16.gmra.mrb[0].mxu0 %v1771
        %v1859 = vpop.f32.mrb[0].mxu0
        %v1860 = vadd.f32 0.0, %v1859
        %v1861 = vpop.f32.mrb[0].mxu0
        %v1862 = vpop.f32.mrb[0].mxu0
        %v1863 = vadd.f32 0.0, %v1862
        %v1864 = vpop.f32.mrb[0].mxu0
        %1865 = vmatprep.mubr.bf16.mxu0 0
        %1866 = vmatmul.mubr.bf16.gmra.mrb[0].mxu0 %v1772
        %v1867 = vpop.f32.mrb[0].mxu0
        %v1868 = vadd.f32 0.0, %v1867
        %v1869 = vpop.f32.mrb[0].mxu0
        %v1870 = vpop.f32.mrb[0].mxu0
        %v1871 = vadd.f32 0.0, %v1870
        %v1872 = vpop.f32.mrb[0].mxu0
        %1873 = vmatprep.mubr.bf16.mxu0 0
        %1874 = vmatmul.mubr.bf16.gmra.mrb[0].mxu0 %v1773
        %v1875 = vpop.f32.mrb[0].mxu0
        %v1876 = vadd.f32 0.0, %v1875
        %v1877 = vpop.f32.mrb[0].mxu0
        %v1878 = vpop.f32.mrb[0].mxu0
        %v1879 = vadd.f32 0.0, %v1878
        %v1880 = vpop.f32.mrb[0].mxu0
        %1881 = vmatprep.mubr.bf16.mxu0 0
        %1882 = vmatmul.mubr.bf16.gmra.mrb[0].mxu0 %v1774
        %v1883 = vpop.f32.mrb[0].mxu0
        %v1884 = vadd.f32 0.0, %v1883
        %v1885 = vpop.f32.mrb[0].mxu0
        %v1886 = vpop.f32.mrb[0].mxu0
        %v1887 = vadd.f32 0.0, %v1886
        %v1888 = vpop.f32.mrb[0].mxu0
        %1889 = vmatprep.mubr.bf16.mxu0 0
        %1890 = vmatmul.mubr.bf16.gmra.mrb[0].mxu0 %v1775
        %v1891 = vpop.f32.mrb[0].mxu0
        %v1892 = vadd.f32 0.0, %v1891
        %v1893 = vpop.f32.mrb[0].mxu0
        %v1894 = vpop.f32.mrb[0].mxu0
        %v1895 = vadd.f32 0.0, %v1894
        %v1896 = vpop.f32.mrb[0].mxu0
        %1897 = vmatprep.mubr.bf16.mxu0 0
        %1898 = vmatmul.mubr.bf16.gmra.mrb[0].mxu0 %v1776
        %v1899 = vpop.f32.mrb[0].mxu0
        %v1900 = vadd.f32 0.0, %v1899
        %v1901 = vpop.f32.mrb[0].mxu0
        %v1902 = vpop.f32.mrb[0].mxu0
        %v1903 = vadd.f32 0.0, %v1902
        %v1904 = vpop.f32.mrb[0].mxu0
        %1905 = vmatprep.mubr.bf16.mxu0 0
        %1906 = vmatmul.mubr.bf16.gmra.mrb[0].mxu0 %v1777
        %v1907 = vpop.f32.mrb[0].mxu0
        %v1908 = vadd.f32 0.0, %v1907
        %v1909 = vpop.f32.mrb[0].mxu0
        %v1910 = vpop.f32.mrb[0].mxu0
        %v1911 = vadd.f32 0.0, %v1910
        %v1912 = vpop.f32.mrb[0].mxu0
        %1913 = vmatprep.mubr.bf16.mxu0 0
        %1914 = vmatmul.mubr.bf16.gmra.mrb[0].mxu0 %v1778
        %v1915 = vpop.f32.mrb[0].mxu0
        %v1916 = vadd.f32 0.0, %v1915
        %v1917 = vpop.f32.mrb[0].mxu0
        %v1918 = vpop.f32.mrb[0].mxu0
        %v1919 = vadd.f32 0.0, %v1918
        %v1920 = vpop.f32.mrb[0].mxu0
        %1921 = vmatprep.mubr.bf16.mxu0 0
        %1922 = vmatmul.mubr.bf16.gmra.mrb[0].mxu0 %v1779
        %v1923 = vpop.f32.mrb[0].mxu0
        %v1924 = vadd.f32 0.0, %v1923
        %v1925 = vpop.f32.mrb[0].mxu0
        %v1926 = vpop.f32.mrb[0].mxu0
        %v1927 = vadd.f32 0.0, %v1926
        %v1928 = vpop.f32.mrb[0].mxu0
        %1929 = vmatprep.mubr.bf16.mxu0 0
        %1930 = vmatmul.mubr.bf16.gmra.mrb[0].mxu0 %v1780
        %v1931 = vpop.f32.mrb[0].mxu0
        %v1932 = vadd.f32 0.0, %v1931
        %v1933 = vpop.f32.mrb[0].mxu0
        %v1934 = vpop.f32.mrb[0].mxu0
        %v1935 = vadd.f32 0.0, %v1934
        %v1936 = vpop.f32.mrb[0].mxu0
        %1937 = vmatprep.mubr.bf16.mxu0 0
        %1938 = vmatmul.mubr.bf16.gmra.mrb[0].mxu0 %v1781
        %v1939 = vpop.f32.mrb[0].mxu0
        %v1940 = vadd.f32 0.0, %v1939
        %v1941 = vpop.f32.mrb[0].mxu0
        %v1942 = vpop.f32.mrb[0].mxu0
        %v1943 = vadd.f32 0.0, %v1942
        %v1944 = vpop.f32.mrb[0].mxu0
        %1945 = vmatprep.mubr.bf16.mxu0 0
        %1946 = vmatmul.mubr.bf16.gmra.mrb[0].mxu0 %v1782
        %v1947 = vpop.f32.mrb[0].mxu0
        %v1948 = vadd.f32 0.0, %v1947
        %v1949 = vpop.f32.mrb[0].mxu0
        %v1950 = vpop.f32.mrb[0].mxu0
        %v1951 = vadd.f32 0.0, %v1950
        %v1952 = vpop.f32.mrb[0].mxu0
        %1953 = vmatprep.mubr.bf16.mxu0 0
        %1954 = vmatmul.mubr.bf16.gmra.mrb[0].mxu0 %v1783
        %v1955 = vpop.f32.mrb[0].mxu0
        %v1956 = vadd.f32 0.0, %v1955
        %v1957 = vpop.f32.mrb[0].mxu0
        %v1958 = vpop.f32.mrb[0].mxu0
        %v1959 = vadd.f32 0.0, %v1958
        %v1960 = vpop.f32.mrb[0].mxu0
        %1961 = vmatprep.mubr.bf16.mxu0 0
        %1962 = vmatmul.mubr.bf16.gmra.mrb[0].mxu0 %v1784
        %v1963 = vpop.f32.mrb[0].mxu0
        %v1964 = vadd.f32 0.0, %v1963
        %v1965 = vpop.f32.mrb[0].mxu0
        %v1966 = vpop.f32.mrb[0].mxu0
        %v1967 = vadd.f32 0.0, %v1966
        %v1968 = vpop.f32.mrb[0].mxu0
        %1969 = vdwg.mxu0
        %v1970 = vmul.f32 %v1844, %v1044
        %v1971 = vmul.f32 %v1847, %v1045
        %v1972 = vmul.f32 %v1852, %v1046
        %v1973 = vmul.f32 %v1855, %v1047
        %v1974 = vmul.f32 %v1860, %v1048
        %v1975 = vmul.f32 %v1863, %v1049
        %v1976 = vmul.f32 %v1868, %v1050
        %v1977 = vmul.f32 %v1871, %v1051
        %v1978 = vmul.f32 %v1876, %v1052
        %v1979 = vmul.f32 %v1879, %v1053
        %v1980 = vmul.f32 %v1884, %v1054
        %v1981 = vmul.f32 %v1887, %v1055
        %v1982 = vmul.f32 %v1892, %v1056
        %v1983 = vmul.f32 %v1895, %v1057
        %v1984 = vmul.f32 %v1900, %v1058
        %v1985 = vmul.f32 %v1903, %v1059
        %v1986 = vmul.f32 %v1908, %v1044
        %v1987 = vmul.f32 %v1911, %v1045
        %v1988 = vmul.f32 %v1916, %v1046
        %v1989 = vmul.f32 %v1919, %v1047
        %v1990 = vmul.f32 %v1924, %v1048
        %v1991 = vmul.f32 %v1927, %v1049
        %v1992 = vmul.f32 %v1932, %v1050
        %v1993 = vmul.f32 %v1935, %v1051
        %v1994 = vmul.f32 %v1940, %v1052
        %v1995 = vmul.f32 %v1943, %v1053
        %v1996 = vmul.f32 %v1948, %v1054
        %v1997 = vmul.f32 %v1951, %v1055
        %v1998 = vmul.f32 %v1956, %v1056
        %v1999 = vmul.f32 %v1959, %v1057
        %v2000 = vmul.f32 %v1964, %v1058
        %v2001 = vmul.f32 %v1967, %v1059
        %v2002 = vpack.c.bf16 %v1971, %v1970
        %v2003 = vpack.c.bf16 %v1973, %v1972
        %v2004 = vpack.c.bf16 %v1975, %v1974
        %v2005 = vpack.c.bf16 %v1977, %v1976
        %v2006 = vpack.c.bf16 %v1979, %v1978
        %v2007 = vpack.c.bf16 %v1981, %v1980
        %v2008 = vpack.c.bf16 %v1983, %v1982
        %v2009 = vpack.c.bf16 %v1985, %v1984
        %v2010 = vpack.c.bf16 %v1987, %v1986
        %v2011 = vpack.c.bf16 %v1989, %v1988
        %v2012 = vpack.c.bf16 %v1991, %v1990
        %v2013 = vpack.c.bf16 %v1993, %v1992
        %v2014 = vpack.c.bf16 %v1995, %v1994
        %v2015 = vpack.c.bf16 %v1997, %v1996
        %v2016 = vpack.c.bf16 %v1999, %v1998
        %v2017 = vpack.c.bf16 %v2001, %v2000
        %v2034 = vunpack.c.l.b16 %v1124
        %v2035 = vunpack.c.l.b16 %v1125
        %v2036 = vunpack.c.l.b16 %v1126
        %v2037 = vunpack.c.l.b16 %v1127
        %v2038 = vunpack.c.l.b16 %v1128
        %v2039 = vunpack.c.l.b16 %v1129
        %v2040 = vunpack.c.l.b16 %v1130
        %v2041 = vunpack.c.l.b16 %v1131
        %v2042 = vunpack.c.l.b16 %v1132
        %v2043 = vunpack.c.l.b16 %v1133
        %v2044 = vunpack.c.l.b16 %v1134
        %v2045 = vunpack.c.l.b16 %v1135
        %v2046 = vunpack.c.l.b16 %v1136
        %v2047 = vunpack.c.l.b16 %v1137
        %v2048 = vunpack.c.l.b16 %v1138
        %v2049 = vunpack.c.l.b16 %v1139
        %v2050 = vpack.c.b16 %v2035, %v2034
        %v2051 = vpack.c.b16 %v2037, %v2036
        %v2052 = vpack.c.b16 %v2039, %v2038
        %v2053 = vpack.c.b16 %v2041, %v2040
        %v2054 = vpack.c.b16 %v2043, %v2042
        %v2055 = vpack.c.b16 %v2045, %v2044
        %v2056 = vpack.c.b16 %v2047, %v2046
        %v2057 = vpack.c.b16 %v2049, %v2048
        %2066 = vmatprep.subr.bf16.mxu0 0
        %2067 = vmatpush1.bf16.msra.mxu0 %v2050
        %2068 = vmatprep.subr.bf16.mxu0 0
        %2069 = vmatpush1.bf16.msra.mxu0 %v2051
        %2070 = vmatprep.subr.bf16.mxu0 0
        %2071 = vmatpush1.bf16.msra.mxu0 %v2052
        %2072 = vmatprep.subr.bf16.mxu0 0
        %2073 = vmatpush1.bf16.msra.mxu0 %v2053
        %2074 = vmatprep.subr.bf16.mxu0 0
        %2075 = vmatpush1.bf16.msra.mxu0 %v2054
        %2076 = vmatprep.subr.bf16.mxu0 0
        %2077 = vmatpush1.bf16.msra.mxu0 %v2055
        %2078 = vmatprep.subr.bf16.mxu0 0
        %2079 = vmatpush1.bf16.msra.mxu0 %v2056
        %2080 = vmatprep.subr.bf16.mxu0 0
        %2081 = vmatpush1.bf16.msra.mxu0 %v2057
        %2082 = vmatprep.subr.bf16.mxu0 0
        %2083 = vmatpush1.bf16.msra.mxu0 0
        %2084 = vmatprep.subr.bf16.mxu0 0
        %2085 = vmatpush1.bf16.msra.mxu0 0
        %2086 = vmatprep.subr.bf16.mxu0 0
        %2087 = vmatpush1.bf16.msra.mxu0 0
        %2088 = vmatprep.subr.bf16.mxu0 0
        %2089 = vmatpush1.bf16.msra.mxu0 0
        %2090 = vmatprep.subr.bf16.mxu0 0
        %2091 = vmatpush1.bf16.msra.mxu0 0
        %2092 = vmatprep.subr.bf16.mxu0 0
        %2093 = vmatpush1.bf16.msra.mxu0 0
        %2094 = vmatprep.subr.bf16.mxu0 0
        %2095 = vmatpush1.bf16.msra.mxu0 0
        %2096 = vmatprep.subr.bf16.mxu0 0
        %2097 = vmatpush1.bf16.msra.mxu0 0
        %2098 = vmatprep.mubr.bf16.mxu0 0
        %2099 = vmatmul.mubr.bf16.gmra.mrb[0].mxu0 %v2002
        %v2100 = vpop.f32.mrb[0].mxu0
        %v2101 = vadd.f32 0.0, %v2100
        %v2102 = vpop.f32.mrb[0].mxu0
        %v2103 = vpop.f32.mrb[0].mxu0
        %v2104 = vadd.f32 0.0, %v2103
        %v2105 = vpop.f32.mrb[0].mxu0
        %2106 = vmatprep.mubr.bf16.mxu0 0
        %2107 = vmatmul.mubr.bf16.gmra.mrb[0].mxu0 %v2003
        %v2108 = vpop.f32.mrb[0].mxu0
        %v2109 = vadd.f32 0.0, %v2108
        %v2110 = vpop.f32.mrb[0].mxu0
        %v2111 = vpop.f32.mrb[0].mxu0
        %v2112 = vadd.f32 0.0, %v2111
        %v2113 = vpop.f32.mrb[0].mxu0
        %2114 = vmatprep.mubr.bf16.mxu0 0
        %2115 = vmatmul.mubr.bf16.gmra.mrb[0].mxu0 %v2004
        %v2116 = vpop.f32.mrb[0].mxu0
        %v2117 = vadd.f32 0.0, %v2116
        %v2118 = vpop.f32.mrb[0].mxu0
        %v2119 = vpop.f32.mrb[0].mxu0
        %v2120 = vadd.f32 0.0, %v2119
        %v2121 = vpop.f32.mrb[0].mxu0
        %2122 = vmatprep.mubr.bf16.mxu0 0
        %2123 = vmatmul.mubr.bf16.gmra.mrb[0].mxu0 %v2005
        %v2124 = vpop.f32.mrb[0].mxu0
        %v2125 = vadd.f32 0.0, %v2124
        %v2126 = vpop.f32.mrb[0].mxu0
        %v2127 = vpop.f32.mrb[0].mxu0
        %v2128 = vadd.f32 0.0, %v2127
        %v2129 = vpop.f32.mrb[0].mxu0
        %2130 = vmatprep.mubr.bf16.mxu0 0
        %2131 = vmatmul.mubr.bf16.gmra.mrb[0].mxu0 %v2006
        %v2132 = vpop.f32.mrb[0].mxu0
        %v2133 = vadd.f32 0.0, %v2132
        %v2134 = vpop.f32.mrb[0].mxu0
        %v2135 = vpop.f32.mrb[0].mxu0
        %v2136 = vadd.f32 0.0, %v2135
        %v2137 = vpop.f32.mrb[0].mxu0
        %2138 = vmatprep.mubr.bf16.mxu0 0
        %2139 = vmatmul.mubr.bf16.gmra.mrb[0].mxu0 %v2007
        %v2140 = vpop.f32.mrb[0].mxu0
        %v2141 = vadd.f32 0.0, %v2140
        %v2142 = vpop.f32.mrb[0].mxu0
        %v2143 = vpop.f32.mrb[0].mxu0
        %v2144 = vadd.f32 0.0, %v2143
        %v2145 = vpop.f32.mrb[0].mxu0
        %2146 = vmatprep.mubr.bf16.mxu0 0
        %2147 = vmatmul.mubr.bf16.gmra.mrb[0].mxu0 %v2008
        %v2148 = vpop.f32.mrb[0].mxu0
        %v2149 = vadd.f32 0.0, %v2148
        %v2150 = vpop.f32.mrb[0].mxu0
        %v2151 = vpop.f32.mrb[0].mxu0
        %v2152 = vadd.f32 0.0, %v2151
        %v2153 = vpop.f32.mrb[0].mxu0
        %2154 = vmatprep.mubr.bf16.mxu0 0
        %2155 = vmatmul.mubr.bf16.gmra.mrb[0].mxu0 %v2009
        %v2156 = vpop.f32.mrb[0].mxu0
        %v2157 = vadd.f32 0.0, %v2156
        %v2158 = vpop.f32.mrb[0].mxu0
        %v2159 = vpop.f32.mrb[0].mxu0
        %v2160 = vadd.f32 0.0, %v2159
        %v2161 = vpop.f32.mrb[0].mxu0
        %2162 = vmatprep.mubr.bf16.mxu0 0
        %2163 = vmatmul.mubr.bf16.gmra.mrb[0].mxu0 %v2010
        %v2164 = vpop.f32.mrb[0].mxu0
        %v2165 = vadd.f32 0.0, %v2164
        %v2166 = vpop.f32.mrb[0].mxu0
        %v2167 = vpop.f32.mrb[0].mxu0
        %v2168 = vadd.f32 0.0, %v2167
        %v2169 = vpop.f32.mrb[0].mxu0
        %2170 = vmatprep.mubr.bf16.mxu0 0
        %2171 = vmatmul.mubr.bf16.gmra.mrb[0].mxu0 %v2011
        %v2172 = vpop.f32.mrb[0].mxu0
        %v2173 = vadd.f32 0.0, %v2172
        %v2174 = vpop.f32.mrb[0].mxu0
        %v2175 = vpop.f32.mrb[0].mxu0
        %v2176 = vadd.f32 0.0, %v2175
        %v2177 = vpop.f32.mrb[0].mxu0
        %2178 = vmatprep.mubr.bf16.mxu0 0
        %2179 = vmatmul.mubr.bf16.gmra.mrb[0].mxu0 %v2012
        %v2180 = vpop.f32.mrb[0].mxu0
        %v2181 = vadd.f32 0.0, %v2180
        %v2182 = vpop.f32.mrb[0].mxu0
        %v2183 = vpop.f32.mrb[0].mxu0
        %v2184 = vadd.f32 0.0, %v2183
        %v2185 = vpop.f32.mrb[0].mxu0
        %2186 = vmatprep.mubr.bf16.mxu0 0
        %2187 = vmatmul.mubr.bf16.gmra.mrb[0].mxu0 %v2013
        %v2188 = vpop.f32.mrb[0].mxu0
        %v2189 = vadd.f32 0.0, %v2188
        %v2190 = vpop.f32.mrb[0].mxu0
        %v2191 = vpop.f32.mrb[0].mxu0
        %v2192 = vadd.f32 0.0, %v2191
        %v2193 = vpop.f32.mrb[0].mxu0
        %2194 = vmatprep.mubr.bf16.mxu0 0
        %2195 = vmatmul.mubr.bf16.gmra.mrb[0].mxu0 %v2014
        %v2196 = vpop.f32.mrb[0].mxu0
        %v2197 = vadd.f32 0.0, %v2196
        %v2198 = vpop.f32.mrb[0].mxu0
        %v2199 = vpop.f32.mrb[0].mxu0
        %v2200 = vadd.f32 0.0, %v2199
        %v2201 = vpop.f32.mrb[0].mxu0
        %2202 = vmatprep.mubr.bf16.mxu0 0
        %2203 = vmatmul.mubr.bf16.gmra.mrb[0].mxu0 %v2015
        %v2204 = vpop.f32.mrb[0].mxu0
        %v2205 = vadd.f32 0.0, %v2204
        %v2206 = vpop.f32.mrb[0].mxu0
        %v2207 = vpop.f32.mrb[0].mxu0
        %v2208 = vadd.f32 0.0, %v2207
        %v2209 = vpop.f32.mrb[0].mxu0
        %2210 = vmatprep.mubr.bf16.mxu0 0
        %2211 = vmatmul.mubr.bf16.gmra.mrb[0].mxu0 %v2016
        %v2212 = vpop.f32.mrb[0].mxu0
        %v2213 = vadd.f32 0.0, %v2212
        %v2214 = vpop.f32.mrb[0].mxu0
        %v2215 = vpop.f32.mrb[0].mxu0
        %v2216 = vadd.f32 0.0, %v2215
        %v2217 = vpop.f32.mrb[0].mxu0
        %2218 = vmatprep.mubr.bf16.mxu0 0
        %2219 = vmatmul.mubr.bf16.gmra.mrb[0].mxu0 %v2017
        %v2220 = vpop.f32.mrb[0].mxu0
        %v2221 = vadd.f32 0.0, %v2220
        %v2222 = vpop.f32.mrb[0].mxu0
        %v2223 = vpop.f32.mrb[0].mxu0
        %v2224 = vadd.f32 0.0, %v2223
        %v2225 = vpop.f32.mrb[0].mxu0
        %2226 = vdwg.mxu0
        %2227 = vmatprep.subr.bf16.mxu0 0
        %2228 = vmatpush1.bf16.xpose.msra.mxu0 %v1801
        %2229 = vmatprep.subr.bf16.mxu0 0
        %2230 = vmatpush1.bf16.xpose.msra.mxu0 %v1802
        %2231 = vmatprep.subr.bf16.mxu0 0
        %2232 = vmatpush1.bf16.xpose.msra.mxu0 %v1803
        %2233 = vmatprep.subr.bf16.mxu0 0
        %2234 = vmatpush1.bf16.xpose.msra.mxu0 %v1804
        %2235 = vmatprep.subr.bf16.mxu0 0
        %2236 = vmatpush1.bf16.xpose.msra.mxu0 %v1805
        %2237 = vmatprep.subr.bf16.mxu0 0
        %2238 = vmatpush1.bf16.xpose.msra.mxu0 %v1806
        %2239 = vmatprep.subr.bf16.mxu0 0
        %2240 = vmatpush1.bf16.xpose.msra.mxu0 %v1807
        %2241 = vmatprep.subr.bf16.mxu0 0
        %2242 = vmatpush1.bf16.xpose.msra.mxu0 %v1808
        %2243 = vmatprep.subr.bf16.mxu0 0
        %2244 = vmatpush1.bf16.xpose.msra.mxu0 0
        %2245 = vmatprep.subr.bf16.mxu0 0
        %2246 = vmatpush1.bf16.xpose.msra.mxu0 0
        %2247 = vmatprep.subr.bf16.mxu0 0
        %2248 = vmatpush1.bf16.xpose.msra.mxu0 0
        %2249 = vmatprep.subr.bf16.mxu0 0
        %2250 = vmatpush1.bf16.xpose.msra.mxu0 0
        %2251 = vmatprep.subr.bf16.mxu0 0
        %2252 = vmatpush1.bf16.xpose.msra.mxu0 0
        %2253 = vmatprep.subr.bf16.mxu0 0
        %2254 = vmatpush1.bf16.xpose.msra.mxu0 0
        %2255 = vmatprep.subr.bf16.mxu0 0
        %2256 = vmatpush1.bf16.xpose.msra.mxu0 0
        %2257 = vmatprep.subr.bf16.mxu0 0
        %2258 = vmatpush1.bf16.xpose.msra.mxu0 0
        %2259 = vmatprep.mubr.bf16.mxu0 0
        %2260 = vmatmul.mubr.bf16.gmra.mrb[0].mxu0 %v1769
        %v2261 = vpop.f32.mrb[0].mxu0
        %v2262 = vadd.f32 %v2101, %v2261
        %v2263 = vpop.f32.mrb[0].mxu0
        %v2264 = vpop.f32.mrb[0].mxu0
        %v2265 = vadd.f32 %v2104, %v2264
        %v2266 = vpop.f32.mrb[0].mxu0
        %2267 = vmatprep.mubr.bf16.mxu0 0
        %2268 = vmatmul.mubr.bf16.gmra.mrb[0].mxu0 %v1770
        %v2269 = vpop.f32.mrb[0].mxu0
        %v2270 = vadd.f32 %v2109, %v2269
        %v2271 = vpop.f32.mrb[0].mxu0
        %v2272 = vpop.f32.mrb[0].mxu0
        %v2273 = vadd.f32 %v2112, %v2272
        %v2274 = vpop.f32.mrb[0].mxu0
        %2275 = vmatprep.mubr.bf16.mxu0 0
        %2276 = vmatmul.mubr.bf16.gmra.mrb[0].mxu0 %v1771
        %v2277 = vpop.f32.mrb[0].mxu0
        %v2278 = vadd.f32 %v2117, %v2277
        %v2279 = vpop.f32.mrb[0].mxu0
        %v2280 = vpop.f32.mrb[0].mxu0
        %v2281 = vadd.f32 %v2120, %v2280
        %v2282 = vpop.f32.mrb[0].mxu0
        %2283 = vmatprep.mubr.bf16.mxu0 0
        %2284 = vmatmul.mubr.bf16.gmra.mrb[0].mxu0 %v1772
        %v2285 = vpop.f32.mrb[0].mxu0
        %v2286 = vadd.f32 %v2125, %v2285
        %v2287 = vpop.f32.mrb[0].mxu0
        %v2288 = vpop.f32.mrb[0].mxu0
        %v2289 = vadd.f32 %v2128, %v2288
        %v2290 = vpop.f32.mrb[0].mxu0
        %2291 = vmatprep.mubr.bf16.mxu0 0
        %2292 = vmatmul.mubr.bf16.gmra.mrb[0].mxu0 %v1773
        %v2293 = vpop.f32.mrb[0].mxu0
        %v2294 = vadd.f32 %v2133, %v2293
        %v2295 = vpop.f32.mrb[0].mxu0
        %v2296 = vpop.f32.mrb[0].mxu0
        %v2297 = vadd.f32 %v2136, %v2296
        %v2298 = vpop.f32.mrb[0].mxu0
        %2299 = vmatprep.mubr.bf16.mxu0 0
        %2300 = vmatmul.mubr.bf16.gmra.mrb[0].mxu0 %v1774
        %v2301 = vpop.f32.mrb[0].mxu0
        %v2302 = vadd.f32 %v2141, %v2301
        %v2303 = vpop.f32.mrb[0].mxu0
        %v2304 = vpop.f32.mrb[0].mxu0
        %v2305 = vadd.f32 %v2144, %v2304
        %v2306 = vpop.f32.mrb[0].mxu0
        %2307 = vmatprep.mubr.bf16.mxu0 0
        %2308 = vmatmul.mubr.bf16.gmra.mrb[0].mxu0 %v1775
        %v2309 = vpop.f32.mrb[0].mxu0
        %v2310 = vadd.f32 %v2149, %v2309
        %v2311 = vpop.f32.mrb[0].mxu0
        %v2312 = vpop.f32.mrb[0].mxu0
        %v2313 = vadd.f32 %v2152, %v2312
        %v2314 = vpop.f32.mrb[0].mxu0
        %2315 = vmatprep.mubr.bf16.mxu0 0
        %2316 = vmatmul.mubr.bf16.gmra.mrb[0].mxu0 %v1776
        %v2317 = vpop.f32.mrb[0].mxu0
        %v2318 = vadd.f32 %v2157, %v2317
        %v2319 = vpop.f32.mrb[0].mxu0
        %v2320 = vpop.f32.mrb[0].mxu0
        %v2321 = vadd.f32 %v2160, %v2320
        %v2322 = vpop.f32.mrb[0].mxu0
        %2323 = vmatprep.mubr.bf16.mxu0 0
        %2324 = vmatmul.mubr.bf16.gmra.mrb[0].mxu0 %v1777
        %v2325 = vpop.f32.mrb[0].mxu0
        %v2326 = vadd.f32 %v2165, %v2325
        %v2327 = vpop.f32.mrb[0].mxu0
        %v2328 = vpop.f32.mrb[0].mxu0
        %v2329 = vadd.f32 %v2168, %v2328
        %v2330 = vpop.f32.mrb[0].mxu0
        %2331 = vmatprep.mubr.bf16.mxu0 0
        %2332 = vmatmul.mubr.bf16.gmra.mrb[0].mxu0 %v1778
        %v2333 = vpop.f32.mrb[0].mxu0
        %v2334 = vadd.f32 %v2173, %v2333
        %v2335 = vpop.f32.mrb[0].mxu0
        %v2336 = vpop.f32.mrb[0].mxu0
        %v2337 = vadd.f32 %v2176, %v2336
        %v2338 = vpop.f32.mrb[0].mxu0
        %2339 = vmatprep.mubr.bf16.mxu0 0
        %2340 = vmatmul.mubr.bf16.gmra.mrb[0].mxu0 %v1779
        %v2341 = vpop.f32.mrb[0].mxu0
        %v2342 = vadd.f32 %v2181, %v2341
        %v2343 = vpop.f32.mrb[0].mxu0
        %v2344 = vpop.f32.mrb[0].mxu0
        %v2345 = vadd.f32 %v2184, %v2344
        %v2346 = vpop.f32.mrb[0].mxu0
        %2347 = vmatprep.mubr.bf16.mxu0 0
        %2348 = vmatmul.mubr.bf16.gmra.mrb[0].mxu0 %v1780
        %v2349 = vpop.f32.mrb[0].mxu0
        %v2350 = vadd.f32 %v2189, %v2349
        %v2351 = vpop.f32.mrb[0].mxu0
        %v2352 = vpop.f32.mrb[0].mxu0
        %v2353 = vadd.f32 %v2192, %v2352
        %v2354 = vpop.f32.mrb[0].mxu0
        %2355 = vmatprep.mubr.bf16.mxu0 0
        %2356 = vmatmul.mubr.bf16.gmra.mrb[0].mxu0 %v1781
        %v2357 = vpop.f32.mrb[0].mxu0
        %v2358 = vadd.f32 %v2197, %v2357
        %v2359 = vpop.f32.mrb[0].mxu0
        %v2360 = vpop.f32.mrb[0].mxu0
        %v2361 = vadd.f32 %v2200, %v2360
        %v2362 = vpop.f32.mrb[0].mxu0
        %2363 = vmatprep.mubr.bf16.mxu0 0
        %2364 = vmatmul.mubr.bf16.gmra.mrb[0].mxu0 %v1782
        %v2365 = vpop.f32.mrb[0].mxu0
        %v2366 = vadd.f32 %v2205, %v2365
        %v2367 = vpop.f32.mrb[0].mxu0
        %v2368 = vpop.f32.mrb[0].mxu0
        %v2369 = vadd.f32 %v2208, %v2368
        %v2370 = vpop.f32.mrb[0].mxu0
        %2371 = vmatprep.mubr.bf16.mxu0 0
        %2372 = vmatmul.mubr.bf16.gmra.mrb[0].mxu0 %v1783
        %v2373 = vpop.f32.mrb[0].mxu0
        %v2374 = vadd.f32 %v2213, %v2373
        %v2375 = vpop.f32.mrb[0].mxu0
        %v2376 = vpop.f32.mrb[0].mxu0
        %v2377 = vadd.f32 %v2216, %v2376
        %v2378 = vpop.f32.mrb[0].mxu0
        %2379 = vmatprep.mubr.bf16.mxu0 0
        %2380 = vmatmul.mubr.bf16.gmra.mrb[0].mxu0 %v1784
        %v2381 = vpop.f32.mrb[0].mxu0
        %v2382 = vadd.f32 %v2221, %v2381
        %v2383 = vpop.f32.mrb[0].mxu0
        %v2384 = vpop.f32.mrb[0].mxu0
        %v2385 = vadd.f32 %v2224, %v2384
        %v2386 = vpop.f32.mrb[0].mxu0
        %2387 = vdwg.mxu0
        %2388 = vxpose.xlu0.c.b16.start [1/8] %v2050, 128
        %2389 = vxpose.xlu0.c.b16.cont [2/8] %v2051, 128
        %2390 = vxpose.xlu0.c.b16.cont [3/8] %v2052, 128
        %2391 = vxpose.xlu0.c.b16.cont [4/8] %v2053, 128
        %2392 = vxpose.xlu0.c.b16.cont [5/8] %v2054, 128
        %2393 = vxpose.xlu0.c.b16.cont [6/8] %v2055, 128
        %2394 = vxpose.xlu0.c.b16.cont [7/8] %v2056, 128
        %2395 = vxpose.xlu0.c.b16.end [8/8] %v2057, 128
        %v2396 = vpop.trf.xlu0
        %v2397 = vpop.trf.xlu0
        %v2398 = vpop.trf.xlu0
        %v2399 = vpop.trf.xlu0
        %v2400 = vpop.trf.xlu0
        %v2401 = vpop.trf.xlu0
        %v2402 = vpop.trf.xlu0
        %v2403 = vpop.trf.xlu0
        %2404 = vmatprep.subr.bf16.mxu0 0
        %2405 = vmatpush1.bf16.msra.mxu0 %v1585
        %2406 = vmatprep.subr.bf16.mxu0 0
        %2407 = vmatpush1.bf16.msra.mxu0 %v1586
        %2408 = vmatprep.subr.bf16.mxu0 0
        %2409 = vmatpush1.bf16.msra.mxu0 %v1587
        %2410 = vmatprep.subr.bf16.mxu0 0
        %2411 = vmatpush1.bf16.msra.mxu0 %v1588
        %2412 = vmatprep.subr.bf16.mxu0 0
        %2413 = vmatpush1.bf16.msra.mxu0 %v1589
        %2414 = vmatprep.subr.bf16.mxu0 0
        %2415 = vmatpush1.bf16.msra.mxu0 %v1590
        %2416 = vmatprep.subr.bf16.mxu0 0
        %2417 = vmatpush1.bf16.msra.mxu0 %v1591
        %2418 = vmatprep.subr.bf16.mxu0 0
        %2419 = vmatpush1.bf16.msra.mxu0 %v1592
        %2420 = vmatprep.subr.bf16.mxu0 0
        %2421 = vmatpush1.bf16.msra.mxu0 0
        %2422 = vmatprep.subr.bf16.mxu0 0
        %2423 = vmatpush1.bf16.msra.mxu0 0
        %2424 = vmatprep.subr.bf16.mxu0 0
        %2425 = vmatpush1.bf16.msra.mxu0 0
        %2426 = vmatprep.subr.bf16.mxu0 0
        %2427 = vmatpush1.bf16.msra.mxu0 0
        %2428 = vmatprep.subr.bf16.mxu0 0
        %2429 = vmatpush1.bf16.msra.mxu0 0
        %2430 = vmatprep.subr.bf16.mxu0 0
        %2431 = vmatpush1.bf16.msra.mxu0 0
        %2432 = vmatprep.subr.bf16.mxu0 0
        %2433 = vmatpush1.bf16.msra.mxu0 0
        %2434 = vmatprep.subr.bf16.mxu0 0
        %2435 = vmatpush1.bf16.msra.mxu0 0
        %2436 = vmatprep.mubr.bf16.mxu0 0
        %2437 = vmatmul.mubr.bf16.gmra.mrb[0].mxu0 %v2396
        %v2438 = vpop.f32.mrb[0].mxu0
        %v2439 = vadd.f32 0.0, %v2438
        %v2440 = vpop.f32.mrb[0].mxu0
        %v2441 = vpop.f32.mrb[0].mxu0
        %v2442 = vadd.f32 0.0, %v2441
        %v2443 = vpop.f32.mrb[0].mxu0
        %2444 = vmatprep.mubr.bf16.mxu0 0
        %2445 = vmatmul.mubr.bf16.gmra.mrb[0].mxu0 %v2397
        %v2446 = vpop.f32.mrb[0].mxu0
        %v2447 = vadd.f32 0.0, %v2446
        %v2448 = vpop.f32.mrb[0].mxu0
        %v2449 = vpop.f32.mrb[0].mxu0
        %v2450 = vadd.f32 0.0, %v2449
        %v2451 = vpop.f32.mrb[0].mxu0
        %2452 = vmatprep.mubr.bf16.mxu0 0
        %2453 = vmatmul.mubr.bf16.gmra.mrb[0].mxu0 %v2398
        %v2454 = vpop.f32.mrb[0].mxu0
        %v2455 = vadd.f32 0.0, %v2454
        %v2456 = vpop.f32.mrb[0].mxu0
        %v2457 = vpop.f32.mrb[0].mxu0
        %v2458 = vadd.f32 0.0, %v2457
        %v2459 = vpop.f32.mrb[0].mxu0
        %2460 = vmatprep.mubr.bf16.mxu0 0
        %2461 = vmatmul.mubr.bf16.gmra.mrb[0].mxu0 %v2399
        %v2462 = vpop.f32.mrb[0].mxu0
        %v2463 = vadd.f32 0.0, %v2462
        %v2464 = vpop.f32.mrb[0].mxu0
        %v2465 = vpop.f32.mrb[0].mxu0
        %v2466 = vadd.f32 0.0, %v2465
        %v2467 = vpop.f32.mrb[0].mxu0
        %2468 = vmatprep.mubr.bf16.mxu0 0
        %2469 = vmatmul.mubr.bf16.gmra.mrb[0].mxu0 %v2400
        %v2470 = vpop.f32.mrb[0].mxu0
        %v2471 = vadd.f32 0.0, %v2470
        %v2472 = vpop.f32.mrb[0].mxu0
        %v2473 = vpop.f32.mrb[0].mxu0
        %v2474 = vadd.f32 0.0, %v2473
        %v2475 = vpop.f32.mrb[0].mxu0
        %2476 = vmatprep.mubr.bf16.mxu0 0
        %2477 = vmatmul.mubr.bf16.gmra.mrb[0].mxu0 %v2401
        %v2478 = vpop.f32.mrb[0].mxu0
        %v2479 = vadd.f32 0.0, %v2478
        %v2480 = vpop.f32.mrb[0].mxu0
        %v2481 = vpop.f32.mrb[0].mxu0
        %v2482 = vadd.f32 0.0, %v2481
        %v2483 = vpop.f32.mrb[0].mxu0
        %2484 = vmatprep.mubr.bf16.mxu0 0
        %2485 = vmatmul.mubr.bf16.gmra.mrb[0].mxu0 %v2402
        %v2486 = vpop.f32.mrb[0].mxu0
        %v2487 = vadd.f32 0.0, %v2486
        %v2488 = vpop.f32.mrb[0].mxu0
        %v2489 = vpop.f32.mrb[0].mxu0
        %v2490 = vadd.f32 0.0, %v2489
        %v2491 = vpop.f32.mrb[0].mxu0
        %2492 = vmatprep.mubr.bf16.mxu0 0
        %2493 = vmatmul.mubr.bf16.gmra.mrb[0].mxu0 %v2403
        %v2494 = vpop.f32.mrb[0].mxu0
        %v2495 = vadd.f32 0.0, %v2494
        %v2496 = vpop.f32.mrb[0].mxu0
        %v2497 = vpop.f32.mrb[0].mxu0
        %v2498 = vadd.f32 0.0, %v2497
        %v2499 = vpop.f32.mrb[0].mxu0
        %2500 = vdwg.mxu0
        %v2501 = vmul.f32 %v1785, %v1568
        %v2502 = vmul.f32 %v1786, %v1568
        %v2503 = vmul.f32 %v1787, %v1568
        %v2504 = vmul.f32 %v1788, %v1568
        %v2505 = vmul.f32 %v1789, %v1568
        %v2506 = vmul.f32 %v1790, %v1568
        %v2507 = vmul.f32 %v1791, %v1568
        %v2508 = vmul.f32 %v1792, %v1568
        %v2509 = vmul.f32 %v1793, %v1568
        %v2510 = vmul.f32 %v1794, %v1568
        %v2511 = vmul.f32 %v1795, %v1568
        %v2512 = vmul.f32 %v1796, %v1568
        %v2513 = vmul.f32 %v1797, %v1568
        %v2514 = vmul.f32 %v1798, %v1568
        %v2515 = vmul.f32 %v1799, %v1568
        %v2516 = vmul.f32 %v1800, %v1568
        %v2517 = vadd.f32 %v2501, %v2439
        %v2518 = vadd.f32 %v2502, %v2442
        %v2519 = vadd.f32 %v2503, %v2447
        %v2520 = vadd.f32 %v2504, %v2450
        %v2521 = vadd.f32 %v2505, %v2455
        %v2522 = vadd.f32 %v2506, %v2458
        %v2523 = vadd.f32 %v2507, %v2463
        %v2524 = vadd.f32 %v2508, %v2466
        %v2525 = vadd.f32 %v2509, %v2471
        %v2526 = vadd.f32 %v2510, %v2474
        %v2527 = vadd.f32 %v2511, %v2479
        %v2528 = vadd.f32 %v2512, %v2482
        %v2529 = vadd.f32 %v2513, %v2487
        %v2530 = vadd.f32 %v2514, %v2490
        %v2531 = vadd.f32 %v2515, %v2495
        %v2532 = vadd.f32 %v2516, %v2498
        %2533 = vst [vmem:[#allocation2] sm:$0xff] %v2517
        %2534 = vst [vmem:[#allocation2 + $0x8] sm:$0xff] %v2518
        %2535 = vst [vmem:[#allocation2 + $0x10] sm:$0xff] %v2519
        %2536 = vst [vmem:[#allocation2 + $0x18] sm:$0xff] %v2520
        %2537 = vst [vmem:[#allocation2 + $0x20] sm:$0xff] %v2521
        %2538 = vst [vmem:[#allocation2 + $0x28] sm:$0xff] %v2522
        %2539 = vst [vmem:[#allocation2 + $0x30] sm:$0xff] %v2523
        %2540 = vst [vmem:[#allocation2 + $0x38] sm:$0xff] %v2524
        %2541 = vst [vmem:[#allocation2 + $0x40] sm:$0xff] %v2525
        %2542 = vst [vmem:[#allocation2 + $0x48] sm:$0xff] %v2526
        %2543 = vst [vmem:[#allocation2 + $0x50] sm:$0xff] %v2527
        %2544 = vst [vmem:[#allocation2 + $0x58] sm:$0xff] %v2528
        %2545 = vst [vmem:[#allocation2 + $0x60] sm:$0xff] %v2529
        %2546 = vst [vmem:[#allocation2 + $0x68] sm:$0xff] %v2530
        %2547 = vst [vmem:[#allocation2 + $0x70] sm:$0xff] %v2531
        %2548 = vst [vmem:[#allocation2 + $0x78] sm:$0xff] %v2532
        %v2549 = vmul.f32 %v2262, %v2262
        %v2550 = vmul.f32 %v2265, %v2265
        %v2551 = vmul.f32 %v2270, %v2270
        %v2552 = vmul.f32 %v2273, %v2273
        %v2553 = vmul.f32 %v2278, %v2278
        %v2554 = vmul.f32 %v2281, %v2281
        %v2555 = vmul.f32 %v2286, %v2286
        %v2556 = vmul.f32 %v2289, %v2289
        %v2557 = vmul.f32 %v2294, %v2294
        %v2558 = vmul.f32 %v2297, %v2297
        %v2559 = vmul.f32 %v2302, %v2302
        %v2560 = vmul.f32 %v2305, %v2305
        %v2561 = vmul.f32 %v2310, %v2310
        %v2562 = vmul.f32 %v2313, %v2313
        %v2563 = vmul.f32 %v2318, %v2318
        %v2564 = vmul.f32 %v2321, %v2321
        %v2565 = vmul.f32 %v2326, %v2326
        %v2566 = vmul.f32 %v2329, %v2329
        %v2567 = vmul.f32 %v2334, %v2334
        %v2568 = vmul.f32 %v2337, %v2337
        %v2569 = vmul.f32 %v2342, %v2342
        %v2570 = vmul.f32 %v2345, %v2345
        %v2571 = vmul.f32 %v2350, %v2350
        %v2572 = vmul.f32 %v2353, %v2353
        %v2573 = vmul.f32 %v2358, %v2358
        %v2574 = vmul.f32 %v2361, %v2361
        %v2575 = vmul.f32 %v2366, %v2366
        %v2576 = vmul.f32 %v2369, %v2369
        %v2577 = vmul.f32 %v2374, %v2374
        %v2578 = vmul.f32 %v2377, %v2377
        %v2579 = vmul.f32 %v2382, %v2382
        %v2580 = vmul.f32 %v2385, %v2385
        %2581 = vadd.xlane.f32.xlu0 %v2549
        %v2582 = vpop.xlane.xlu0 %2581
        %2583 = vadd.xlane.f32.xlu0 %v2550
        %v2584 = vpop.xlane.xlu0 %2583
        %2585 = vadd.xlane.f32.xlu0 %v2551
        %v2586 = vpop.xlane.xlu0 %2585
        %2587 = vadd.xlane.f32.xlu0 %v2552
        %v2588 = vpop.xlane.xlu0 %2587
        %2589 = vadd.xlane.f32.xlu0 %v2553
        %v2590 = vpop.xlane.xlu0 %2589
        %2591 = vadd.xlane.f32.xlu0 %v2554
        %v2592 = vpop.xlane.xlu0 %2591
        %2593 = vadd.xlane.f32.xlu0 %v2555
        %v2594 = vpop.xlane.xlu0 %2593
        %2595 = vadd.xlane.f32.xlu0 %v2556
        %v2596 = vpop.xlane.xlu0 %2595
        %2597 = vadd.xlane.f32.xlu0 %v2557
        %v2598 = vpop.xlane.xlu0 %2597
        %2599 = vadd.xlane.f32.xlu0 %v2558
        %v2600 = vpop.xlane.xlu0 %2599
        %2601 = vadd.xlane.f32.xlu0 %v2559
        %v2602 = vpop.xlane.xlu0 %2601
        %2603 = vadd.xlane.f32.xlu0 %v2560
        %v2604 = vpop.xlane.xlu0 %2603
        %2605 = vadd.xlane.f32.xlu0 %v2561
        %v2606 = vpop.xlane.xlu0 %2605
        %2607 = vadd.xlane.f32.xlu0 %v2562
        %v2608 = vpop.xlane.xlu0 %2607
        %2609 = vadd.xlane.f32.xlu0 %v2563
        %v2610 = vpop.xlane.xlu0 %2609
        %2611 = vadd.xlane.f32.xlu0 %v2564
        %v2612 = vpop.xlane.xlu0 %2611
        %2613 = vadd.xlane.f32.xlu0 %v2565
        %v2614 = vpop.xlane.xlu0 %2613
        %2615 = vadd.xlane.f32.xlu0 %v2566
        %v2616 = vpop.xlane.xlu0 %2615
        %2617 = vadd.xlane.f32.xlu0 %v2567
        %v2618 = vpop.xlane.xlu0 %2617
        %2619 = vadd.xlane.f32.xlu0 %v2568
        %v2620 = vpop.xlane.xlu0 %2619
        %2621 = vadd.xlane.f32.xlu0 %v2569
        %v2622 = vpop.xlane.xlu0 %2621
        %2623 = vadd.xlane.f32.xlu0 %v2570
        %v2624 = vpop.xlane.xlu0 %2623
        %2625 = vadd.xlane.f32.xlu0 %v2571
        %v2626 = vpop.xlane.xlu0 %2625
        %2627 = vadd.xlane.f32.xlu0 %v2572
        %v2628 = vpop.xlane.xlu0 %2627
        %2629 = vadd.xlane.f32.xlu0 %v2573
        %v2630 = vpop.xlane.xlu0 %2629
        %2631 = vadd.xlane.f32.xlu0 %v2574
        %v2632 = vpop.xlane.xlu0 %2631
        %2633 = vadd.xlane.f32.xlu0 %v2575
        %v2634 = vpop.xlane.xlu0 %2633
        %2635 = vadd.xlane.f32.xlu0 %v2576
        %v2636 = vpop.xlane.xlu0 %2635
        %2637 = vadd.xlane.f32.xlu0 %v2577
        %v2638 = vpop.xlane.xlu0 %2637
        %2639 = vadd.xlane.f32.xlu0 %v2578
        %v2640 = vpop.xlane.xlu0 %2639
        %2641 = vadd.xlane.f32.xlu0 %v2579
        %v2642 = vpop.xlane.xlu0 %2641
        %2643 = vadd.xlane.f32.xlu0 %v2580
        %v2644 = vpop.xlane.xlu0 %2643
        %v2645 = vrcp.pop 128.0
        %v2646 = vmul.f32 %v2582, %v2645
        %v2647 = vmul.f32 %v2584, %v2645
        %v2648 = vmul.f32 %v2586, %v2645
        %v2649 = vmul.f32 %v2588, %v2645
        %v2650 = vmul.f32 %v2590, %v2645
        %v2651 = vmul.f32 %v2592, %v2645
        %v2652 = vmul.f32 %v2594, %v2645
        %v2653 = vmul.f32 %v2596, %v2645
        %v2654 = vmul.f32 %v2598, %v2645
        %v2655 = vmul.f32 %v2600, %v2645
        %v2656 = vmul.f32 %v2602, %v2645
        %v2657 = vmul.f32 %v2604, %v2645
        %v2658 = vmul.f32 %v2606, %v2645
        %v2659 = vmul.f32 %v2608, %v2645
        %v2660 = vmul.f32 %v2610, %v2645
        %v2661 = vmul.f32 %v2612, %v2645
        %v2662 = vmul.f32 %v2614, %v2645
        %v2663 = vmul.f32 %v2616, %v2645
        %v2664 = vmul.f32 %v2618, %v2645
        %v2665 = vmul.f32 %v2620, %v2645
        %v2666 = vmul.f32 %v2622, %v2645
        %v2667 = vmul.f32 %v2624, %v2645
        %v2668 = vmul.f32 %v2626, %v2645
        %v2669 = vmul.f32 %v2628, %v2645
        %v2670 = vmul.f32 %v2630, %v2645
        %v2671 = vmul.f32 %v2632, %v2645
        %v2672 = vmul.f32 %v2634, %v2645
        %v2673 = vmul.f32 %v2636, %v2645
        %v2674 = vmul.f32 %v2638, %v2645
        %v2675 = vmul.f32 %v2640, %v2645
        %v2676 = vmul.f32 %v2642, %v2645
        %v2677 = vmul.f32 %v2644, %v2645
        %v2678 = vadd.f32 %v2646, 1e-06
        %v2679 = vadd.f32 %v2647, 1e-06
        %v2680 = vadd.f32 %v2648, 1e-06
        %v2681 = vadd.f32 %v2649, 1e-06
        %v2682 = vadd.f32 %v2650, 1e-06
        %v2683 = vadd.f32 %v2651, 1e-06
        %v2684 = vadd.f32 %v2652, 1e-06
        %v2685 = vadd.f32 %v2653, 1e-06
        %v2686 = vadd.f32 %v2654, 1e-06
        %v2687 = vadd.f32 %v2655, 1e-06
        %v2688 = vadd.f32 %v2656, 1e-06
        %v2689 = vadd.f32 %v2657, 1e-06
        %v2690 = vadd.f32 %v2658, 1e-06
        %v2691 = vadd.f32 %v2659, 1e-06
        %v2692 = vadd.f32 %v2660, 1e-06
        %v2693 = vadd.f32 %v2661, 1e-06
        %v2694 = vadd.f32 %v2662, 1e-06
        %v2695 = vadd.f32 %v2663, 1e-06
        %v2696 = vadd.f32 %v2664, 1e-06
        %v2697 = vadd.f32 %v2665, 1e-06
        %v2698 = vadd.f32 %v2666, 1e-06
        %v2699 = vadd.f32 %v2667, 1e-06
        %v2700 = vadd.f32 %v2668, 1e-06
        %v2701 = vadd.f32 %v2669, 1e-06
        %v2702 = vadd.f32 %v2670, 1e-06
        %v2703 = vadd.f32 %v2671, 1e-06
        %v2704 = vadd.f32 %v2672, 1e-06
        %v2705 = vadd.f32 %v2673, 1e-06
        %v2706 = vadd.f32 %v2674, 1e-06
        %v2707 = vadd.f32 %v2675, 1e-06
        %v2708 = vadd.f32 %v2676, 1e-06
        %v2709 = vadd.f32 %v2677, 1e-06
        %v2710 = vrsqrt.pop %v2678
        %v2711 = vrsqrt.pop %v2679
        %v2712 = vrsqrt.pop %v2680
        %v2713 = vrsqrt.pop %v2681
        %v2714 = vrsqrt.pop %v2682
        %v2715 = vrsqrt.pop %v2683
        %v2716 = vrsqrt.pop %v2684
        %v2717 = vrsqrt.pop %v2685
        %v2718 = vrsqrt.pop %v2686
        %v2719 = vrsqrt.pop %v2687
        %v2720 = vrsqrt.pop %v2688
        %v2721 = vrsqrt.pop %v2689
        %v2722 = vrsqrt.pop %v2690
        %v2723 = vrsqrt.pop %v2691
        %v2724 = vrsqrt.pop %v2692
        %v2725 = vrsqrt.pop %v2693
        %v2726 = vrsqrt.pop %v2694
        %v2727 = vrsqrt.pop %v2695
        %v2728 = vrsqrt.pop %v2696
        %v2729 = vrsqrt.pop %v2697
        %v2730 = vrsqrt.pop %v2698
        %v2731 = vrsqrt.pop %v2699
        %v2732 = vrsqrt.pop %v2700
        %v2733 = vrsqrt.pop %v2701
        %v2734 = vrsqrt.pop %v2702
        %v2735 = vrsqrt.pop %v2703
        %v2736 = vrsqrt.pop %v2704
        %v2737 = vrsqrt.pop %v2705
        %v2738 = vrsqrt.pop %v2706
        %v2739 = vrsqrt.pop %v2707
        %v2740 = vrsqrt.pop %v2708
        %v2741 = vrsqrt.pop %v2709
        %v2742 = vmul.f32 %v2262, %v2710
        %v2743 = vmul.f32 %v2265, %v2711
        %v2744 = vmul.f32 %v2270, %v2712
        %v2745 = vmul.f32 %v2273, %v2713
        %v2746 = vmul.f32 %v2278, %v2714
        %v2747 = vmul.f32 %v2281, %v2715
        %v2748 = vmul.f32 %v2286, %v2716
        %v2749 = vmul.f32 %v2289, %v2717
        %v2750 = vmul.f32 %v2294, %v2718
        %v2751 = vmul.f32 %v2297, %v2719
        %v2752 = vmul.f32 %v2302, %v2720
        %v2753 = vmul.f32 %v2305, %v2721
        %v2754 = vmul.f32 %v2310, %v2722
        %v2755 = vmul.f32 %v2313, %v2723
        %v2756 = vmul.f32 %v2318, %v2724
        %v2757 = vmul.f32 %v2321, %v2725
        %v2758 = vmul.f32 %v2326, %v2726
        %v2759 = vmul.f32 %v2329, %v2727
        %v2760 = vmul.f32 %v2334, %v2728
        %v2761 = vmul.f32 %v2337, %v2729
        %v2762 = vmul.f32 %v2342, %v2730
        %v2763 = vmul.f32 %v2345, %v2731
        %v2764 = vmul.f32 %v2350, %v2732
        %v2765 = vmul.f32 %v2353, %v2733
        %v2766 = vmul.f32 %v2358, %v2734
        %v2767 = vmul.f32 %v2361, %v2735
        %v2768 = vmul.f32 %v2366, %v2736
        %v2769 = vmul.f32 %v2369, %v2737
        %v2770 = vmul.f32 %v2374, %v2738
        %v2771 = vmul.f32 %v2377, %v2739
        %v2772 = vmul.f32 %v2382, %v2740
        %v2773 = vmul.f32 %v2385, %v2741
        %v2774 = vpack.c.bf16 %v2743, %v2742
        %v2775 = vpack.c.bf16 %v2745, %v2744
        %v2776 = vpack.c.bf16 %v2747, %v2746
        %v2777 = vpack.c.bf16 %v2749, %v2748
        %v2778 = vpack.c.bf16 %v2751, %v2750
        %v2779 = vpack.c.bf16 %v2753, %v2752
        %v2780 = vpack.c.bf16 %v2755, %v2754
        %v2781 = vpack.c.bf16 %v2757, %v2756
        %2782 = vst [vmem:[%s964] sm:$0xff] %v2774
        %2783 = vst [vmem:[%s964 + $0x10] sm:$0xff] %v2775
        %2784 = vst [vmem:[%s964 + $0x20] sm:$0xff] %v2776
        %2785 = vst [vmem:[%s964 + $0x30] sm:$0xff] %v2777
        %2786 = vst [vmem:[%s964 + $0x40] sm:$0xff] %v2778
        %2787 = vst [vmem:[%s964 + $0x50] sm:$0xff] %v2779
        %2788 = vst [vmem:[%s964 + $0x60] sm:$0xff] %v2780
        %2789 = vst [vmem:[%s964 + $0x70] sm:$0xff] %v2781
        %v2790 = vpack.c.bf16 %v2759, %v2758
        %v2791 = vpack.c.bf16 %v2761, %v2760
        %v2792 = vpack.c.bf16 %v2763, %v2762
        %v2793 = vpack.c.bf16 %v2765, %v2764
        %v2794 = vpack.c.bf16 %v2767, %v2766
        %v2795 = vpack.c.bf16 %v2769, %v2768
        %v2796 = vpack.c.bf16 %v2771, %v2770
        %v2797 = vpack.c.bf16 %v2773, %v2772
        %2798 = vst [vmem:[%s964 + $0x8] sm:$0xff] %v2790
        %2799 = vst [vmem:[%s964 + $0x18] sm:$0xff] %v2791
        %2800 = vst [vmem:[%s964 + $0x28] sm:$0xff] %v2792
        %2801 = vst [vmem:[%s964 + $0x38] sm:$0xff] %v2793
        %2802 = vst [vmem:[%s964 + $0x48] sm:$0xff] %v2794
        %2803 = vst [vmem:[%s964 + $0x58] sm:$0xff] %v2795
        %2804 = vst [vmem:[%s964 + $0x68] sm:$0xff] %v2796
        %2805 = vst [vmem:[%s964 + $0x78] sm:$0xff] %v2797
        %v2806 = vld [vmem:[%s910 + $0x80] sm:$0xff]
        %v2807 = vld [vmem:[%s910 + $0x88] sm:$0xff]
        %v2808 = vld [vmem:[%s910 + $0x90] sm:$0xff]
        %v2809 = vld [vmem:[%s910 + $0x98] sm:$0xff]
        %v2810 = vld [vmem:[%s910 + $0xa0] sm:$0xff]
        %v2811 = vld [vmem:[%s910 + $0xa8] sm:$0xff]
        %v2812 = vld [vmem:[%s910 + $0xb0] sm:$0xff]
        %v2813 = vld [vmem:[%s910 + $0xb8] sm:$0xff]
        %v2814 = vld [vmem:[%s910 + $0xc0] sm:$0xff]
        %v2815 = vld [vmem:[%s910 + $0xc8] sm:$0xff]
        %v2816 = vld [vmem:[%s910 + $0xd0] sm:$0xff]
        %v2817 = vld [vmem:[%s910 + $0xd8] sm:$0xff]
        %v2818 = vld [vmem:[%s910 + $0xe0] sm:$0xff]
        %v2819 = vld [vmem:[%s910 + $0xe8] sm:$0xff]
        %v2820 = vld [vmem:[%s910 + $0xf0] sm:$0xff]
        %v2821 = vld [vmem:[%s910 + $0xf8] sm:$0xff]
        %v2822 = vld [vmem:[%s917 + $0x40] sm:$0xf]
        %v2823 = vld [vmem:[%s917 + $0x44] sm:$0xf]
        %v2824 = vld [vmem:[%s917 + $0x48] sm:$0xf]
        %v2825 = vld [vmem:[%s917 + $0x4c] sm:$0xf]
        %v2826 = vld [vmem:[%s917 + $0x50] sm:$0xf]
        %v2827 = vld [vmem:[%s917 + $0x54] sm:$0xf]
        %v2828 = vld [vmem:[%s917 + $0x58] sm:$0xf]
        %v2829 = vld [vmem:[%s917 + $0x5c] sm:$0xf]
        %v2830 = vld [vmem:[%s917 + $0x60] sm:$0xf]
        %v2831 = vld [vmem:[%s917 + $0x64] sm:$0xf]
        %v2832 = vld [vmem:[%s917 + $0x68] sm:$0xf]
        %v2833 = vld [vmem:[%s917 + $0x6c] sm:$0xf]
        %v2834 = vld [vmem:[%s917 + $0x70] sm:$0xf]
        %v2835 = vld [vmem:[%s917 + $0x74] sm:$0xf]
        %v2836 = vld [vmem:[%s917 + $0x78] sm:$0xf]
        %v2837 = vld [vmem:[%s917 + $0x7c] sm:$0xf]
        %v2838 = vunpack.c.l.bf16 %v2822
        %v2839 = vunpack.c.l.bf16 %v2823
        %v2840 = vunpack.c.l.bf16 %v2824
        %v2841 = vunpack.c.l.bf16 %v2825
        %v2842 = vunpack.c.l.bf16 %v2826
        %v2843 = vunpack.c.l.bf16 %v2827
        %v2844 = vunpack.c.l.bf16 %v2828
        %v2845 = vunpack.c.l.bf16 %v2829
        %v2846 = vunpack.c.l.bf16 %v2830
        %v2847 = vunpack.c.l.bf16 %v2831
        %v2848 = vunpack.c.l.bf16 %v2832
        %v2849 = vunpack.c.l.bf16 %v2833
        %v2850 = vunpack.c.l.bf16 %v2834
        %v2851 = vunpack.c.l.bf16 %v2835
        %v2852 = vunpack.c.l.bf16 %v2836
        %v2853 = vunpack.c.l.bf16 %v2837
        %v2854 = vmax.f32 %v2838, 0.0
        %v2855 = vmax.f32 %v2839, 0.0
        %v2856 = vmax.f32 %v2840, 0.0
        %v2857 = vmax.f32 %v2841, 0.0
        %v2858 = vmax.f32 %v2842, 0.0
        %v2859 = vmax.f32 %v2843, 0.0
        %v2860 = vmax.f32 %v2844, 0.0
        %v2861 = vmax.f32 %v2845, 0.0
        %v2862 = vmax.f32 %v2846, 0.0
        %v2863 = vmax.f32 %v2847, 0.0
        %v2864 = vmax.f32 %v2848, 0.0
        %v2865 = vmax.f32 %v2849, 0.0
        %v2866 = vmax.f32 %v2850, 0.0
        %v2867 = vmax.f32 %v2851, 0.0
        %v2868 = vmax.f32 %v2852, 0.0
        %v2869 = vmax.f32 %v2853, 0.0
        %v2870 = vld [vmem:[%s924 + $0x40] sm:$0xf]
        %v2871 = vld [vmem:[%s924 + $0x44] sm:$0xf]
        %v2872 = vld [vmem:[%s924 + $0x48] sm:$0xf]
        %v2873 = vld [vmem:[%s924 + $0x4c] sm:$0xf]
        %v2874 = vld [vmem:[%s924 + $0x50] sm:$0xf]
        %v2875 = vld [vmem:[%s924 + $0x54] sm:$0xf]
        %v2876 = vld [vmem:[%s924 + $0x58] sm:$0xf]
        %v2877 = vld [vmem:[%s924 + $0x5c] sm:$0xf]
        %v2878 = vld [vmem:[%s924 + $0x60] sm:$0xf]
        %v2879 = vld [vmem:[%s924 + $0x64] sm:$0xf]
        %v2880 = vld [vmem:[%s924 + $0x68] sm:$0xf]
        %v2881 = vld [vmem:[%s924 + $0x6c] sm:$0xf]
        %v2882 = vld [vmem:[%s924 + $0x70] sm:$0xf]
        %v2883 = vld [vmem:[%s924 + $0x74] sm:$0xf]
        %v2884 = vld [vmem:[%s924 + $0x78] sm:$0xf]
        %v2885 = vld [vmem:[%s924 + $0x7c] sm:$0xf]
        %v2886 = vld [vmem:[%s931 + $0x40] sm:$0xf]
        %v2887 = vld [vmem:[%s931 + $0x44] sm:$0xf]
        %v2888 = vld [vmem:[%s931 + $0x48] sm:$0xf]
        %v2889 = vld [vmem:[%s931 + $0x4c] sm:$0xf]
        %v2890 = vld [vmem:[%s931 + $0x50] sm:$0xf]
        %v2891 = vld [vmem:[%s931 + $0x54] sm:$0xf]
        %v2892 = vld [vmem:[%s931 + $0x58] sm:$0xf]
        %v2893 = vld [vmem:[%s931 + $0x5c] sm:$0xf]
        %v2894 = vld [vmem:[%s931 + $0x60] sm:$0xf]
        %v2895 = vld [vmem:[%s931 + $0x64] sm:$0xf]
        %v2896 = vld [vmem:[%s931 + $0x68] sm:$0xf]
        %v2897 = vld [vmem:[%s931 + $0x6c] sm:$0xf]
        %v2898 = vld [vmem:[%s931 + $0x70] sm:$0xf]
        %v2899 = vld [vmem:[%s931 + $0x74] sm:$0xf]
        %v2900 = vld [vmem:[%s931 + $0x78] sm:$0xf]
        %v2901 = vld [vmem:[%s931 + $0x7c] sm:$0xf]
        %v2902 = vunpack.c.l.bf16 %v2886
        %v2903 = vunpack.c.l.bf16 %v2887
        %v2904 = vunpack.c.l.bf16 %v2888
        %v2905 = vunpack.c.l.bf16 %v2889
        %v2906 = vunpack.c.l.bf16 %v2890
        %v2907 = vunpack.c.l.bf16 %v2891
        %v2908 = vunpack.c.l.bf16 %v2892
        %v2909 = vunpack.c.l.bf16 %v2893
        %v2910 = vunpack.c.l.bf16 %v2894
        %v2911 = vunpack.c.l.bf16 %v2895
        %v2912 = vunpack.c.l.bf16 %v2896
        %v2913 = vunpack.c.l.bf16 %v2897
        %v2914 = vunpack.c.l.bf16 %v2898
        %v2915 = vunpack.c.l.bf16 %v2899
        %v2916 = vunpack.c.l.bf16 %v2900
        %v2917 = vunpack.c.l.bf16 %v2901
        %v2918 = vmin.f32 %v2902, 0.0
        %v2919 = vmin.f32 %v2903, 0.0
        %v2920 = vmin.f32 %v2904, 0.0
        %v2921 = vmin.f32 %v2905, 0.0
        %v2922 = vmin.f32 %v2906, 0.0
        %v2923 = vmin.f32 %v2907, 0.0
        %v2924 = vmin.f32 %v2908, 0.0
        %v2925 = vmin.f32 %v2909, 0.0
        %v2926 = vmin.f32 %v2910, 0.0
        %v2927 = vmin.f32 %v2911, 0.0
        %v2928 = vmin.f32 %v2912, 0.0
        %v2929 = vmin.f32 %v2913, 0.0
        %v2930 = vmin.f32 %v2914, 0.0
        %v2931 = vmin.f32 %v2915, 0.0
        %v2932 = vmin.f32 %v2916, 0.0
        %v2933 = vmin.f32 %v2917, 0.0
        %v2934 = vand.u32 2147483647, %v2902
        %v2935 = vand.u32 2147483647, %v2903
        %v2936 = vand.u32 2147483647, %v2904
        %v2937 = vand.u32 2147483647, %v2905
        %v2938 = vand.u32 2147483647, %v2906
        %v2939 = vand.u32 2147483647, %v2907
        %v2940 = vand.u32 2147483647, %v2908
        %v2941 = vand.u32 2147483647, %v2909
        %v2942 = vand.u32 2147483647, %v2910
        %v2943 = vand.u32 2147483647, %v2911
        %v2944 = vand.u32 2147483647, %v2912
        %v2945 = vand.u32 2147483647, %v2913
        %v2946 = vand.u32 2147483647, %v2914
        %v2947 = vand.u32 2147483647, %v2915
        %v2948 = vand.u32 2147483647, %v2916
        %v2949 = vand.u32 2147483647, %v2917
        %v2950 = vsub.f32 0.0, %v2934
        %v2951 = vsub.f32 0.0, %v2935
        %v2952 = vsub.f32 0.0, %v2936
        %v2953 = vsub.f32 0.0, %v2937
        %v2954 = vsub.f32 0.0, %v2938
        %v2955 = vsub.f32 0.0, %v2939
        %v2956 = vsub.f32 0.0, %v2940
        %v2957 = vsub.f32 0.0, %v2941
        %v2958 = vsub.f32 0.0, %v2942
        %v2959 = vsub.f32 0.0, %v2943
        %v2960 = vsub.f32 0.0, %v2944
        %v2961 = vsub.f32 0.0, %v2945
        %v2962 = vsub.f32 0.0, %v2946
        %v2963 = vsub.f32 0.0, %v2947
        %v2964 = vsub.f32 0.0, %v2948
        %v2965 = vsub.f32 0.0, %v2949
        %v2966 = vmul.f32 %v2950, 1.442695
        %v2967 = vpow.pop %v2966
        %v2968 = vmul.f32 %v2951, 1.442695
        %v2969 = vpow.pop %v2968
        %v2970 = vmul.f32 %v2952, 1.442695
        %v2971 = vpow.pop %v2970
        %v2972 = vmul.f32 %v2953, 1.442695
        %v2973 = vpow.pop %v2972
        %v2974 = vmul.f32 %v2954, 1.442695
        %v2975 = vpow.pop %v2974
        %v2976 = vmul.f32 %v2955, 1.442695
        %v2977 = vpow.pop %v2976
        %v2978 = vmul.f32 %v2956, 1.442695
        %v2979 = vpow.pop %v2978
        %v2980 = vmul.f32 %v2957, 1.442695
        %v2981 = vpow.pop %v2980
        %v2982 = vmul.f32 %v2958, 1.442695
        %v2983 = vpow.pop %v2982
        %v2984 = vmul.f32 %v2959, 1.442695
        %v2985 = vpow.pop %v2984
        %v2986 = vmul.f32 %v2960, 1.442695
        %v2987 = vpow.pop %v2986
        %v2988 = vmul.f32 %v2961, 1.442695
        %v2989 = vpow.pop %v2988
        %v2990 = vmul.f32 %v2962, 1.442695
        %v2991 = vpow.pop %v2990
        %v2992 = vmul.f32 %v2963, 1.442695
        %v2993 = vpow.pop %v2992
        %v2994 = vmul.f32 %v2964, 1.442695
        %v2995 = vpow.pop %v2994
        %v2996 = vmul.f32 %v2965, 1.442695
        %v2997 = vpow.pop %v2996
        %v2998 = vadd.f32 %v2967, 1.0
        %v2999 = vadd.f32 %v2969, 1.0
        %v3000 = vadd.f32 %v2971, 1.0
        %v3001 = vadd.f32 %v2973, 1.0
        %v3002 = vadd.f32 %v2975, 1.0
        %v3003 = vadd.f32 %v2977, 1.0
        %v3004 = vadd.f32 %v2979, 1.0
        %v3005 = vadd.f32 %v2981, 1.0
        %v3006 = vadd.f32 %v2983, 1.0
        %v3007 = vadd.f32 %v2985, 1.0
        %v3008 = vadd.f32 %v2987, 1.0
        %v3009 = vadd.f32 %v2989, 1.0
        %v3010 = vadd.f32 %v2991, 1.0
        %v3011 = vadd.f32 %v2993, 1.0
        %v3012 = vadd.f32 %v2995, 1.0
        %v3013 = vadd.f32 %v2997, 1.0
        %v3014 = vlog2.pop %v2998
        %v3015 = vmul.f32 %v3014, 0.6931472
        %v3016 = vlog2.pop %v2999
        %v3017 = vmul.f32 %v3016, 0.6931472
        %v3018 = vlog2.pop %v3000
        %v3019 = vmul.f32 %v3018, 0.6931472
        %v3020 = vlog2.pop %v3001
        %v3021 = vmul.f32 %v3020, 0.6931472
        %v3022 = vlog2.pop %v3002
        %v3023 = vmul.f32 %v3022, 0.6931472
        %v3024 = vlog2.pop %v3003
        %v3025 = vmul.f32 %v3024, 0.6931472
        %v3026 = vlog2.pop %v3004
        %v3027 = vmul.f32 %v3026, 0.6931472
        %v3028 = vlog2.pop %v3005
        %v3029 = vmul.f32 %v3028, 0.6931472
        %v3030 = vlog2.pop %v3006
        %v3031 = vmul.f32 %v3030, 0.6931472
        %v3032 = vlog2.pop %v3007
        %v3033 = vmul.f32 %v3032, 0.6931472
        %v3034 = vlog2.pop %v3008
        %v3035 = vmul.f32 %v3034, 0.6931472
        %v3036 = vlog2.pop %v3009
        %v3037 = vmul.f32 %v3036, 0.6931472
        %v3038 = vlog2.pop %v3010
        %v3039 = vmul.f32 %v3038, 0.6931472
        %v3040 = vlog2.pop %v3011
        %v3041 = vmul.f32 %v3040, 0.6931472
        %v3042 = vlog2.pop %v3012
        %v3043 = vmul.f32 %v3042, 0.6931472
        %v3044 = vlog2.pop %v3013
        %v3045 = vmul.f32 %v3044, 0.6931472
        %v3046 = vsub.f32 %v2918, %v3015
        %v3047 = vsub.f32 %v2919, %v3017
        %v3048 = vsub.f32 %v2920, %v3019
        %v3049 = vsub.f32 %v2921, %v3021
        %v3050 = vsub.f32 %v2922, %v3023
        %v3051 = vsub.f32 %v2923, %v3025
        %v3052 = vsub.f32 %v2924, %v3027
        %v3053 = vsub.f32 %v2925, %v3029
        %v3054 = vsub.f32 %v2926, %v3031
        %v3055 = vsub.f32 %v2927, %v3033
        %v3056 = vsub.f32 %v2928, %v3035
        %v3057 = vsub.f32 %v2929, %v3037
        %v3058 = vsub.f32 %v2930, %v3039
        %v3059 = vsub.f32 %v2931, %v3041
        %v3060 = vsub.f32 %v2932, %v3043
        %v3061 = vsub.f32 %v2933, %v3045
        %v3062 = vmul.f32 %v3046, 0.0625
        %v3063 = vmul.f32 %v3047, 0.0625
        %v3064 = vmul.f32 %v3048, 0.0625
        %v3065 = vmul.f32 %v3049, 0.0625
        %v3066 = vmul.f32 %v3050, 0.0625
        %v3067 = vmul.f32 %v3051, 0.0625
        %v3068 = vmul.f32 %v3052, 0.0625
        %v3069 = vmul.f32 %v3053, 0.0625
        %v3070 = vmul.f32 %v3054, 0.0625
        %v3071 = vmul.f32 %v3055, 0.0625
        %v3072 = vmul.f32 %v3056, 0.0625
        %v3073 = vmul.f32 %v3057, 0.0625
        %v3074 = vmul.f32 %v3058, 0.0625
        %v3075 = vmul.f32 %v3059, 0.0625
        %v3076 = vmul.f32 %v3060, 0.0625
        %v3077 = vmul.f32 %v3061, 0.0625
        %3078 = vmatprep.subr.mxu0 0.0
        %3079 = vmatpush1.msra.mxu0 %v3062
        %3080 = vmatprep.subr.mxu0 0.0
        %3081 = vmatpush1.msra.mxu0 %v3063
        %3082 = vmatprep.subr.mxu0 0.0
        %3083 = vmatpush1.msra.mxu0 %v3064
        %3084 = vmatprep.subr.mxu0 0.0
        %3085 = vmatpush1.msra.mxu0 %v3065
        %3086 = vmatprep.subr.mxu0 0.0
        %3087 = vmatpush1.msra.mxu0 %v3066
        %3088 = vmatprep.subr.mxu0 0.0
        %3089 = vmatpush1.msra.mxu0 %v3067
        %3090 = vmatprep.subr.mxu0 0.0
        %3091 = vmatpush1.msra.mxu0 %v3068
        %3092 = vmatprep.subr.mxu0 0.0
        %3093 = vmatpush1.msra.mxu0 %v3069
        %3094 = vmatprep.subr.mxu0 0.0
        %3095 = vmatpush1.msra.mxu0 %v3070
        %3096 = vmatprep.subr.mxu0 0.0
        %3097 = vmatpush1.msra.mxu0 %v3071
        %3098 = vmatprep.subr.mxu0 0.0
        %3099 = vmatpush1.msra.mxu0 %v3072
        %3100 = vmatprep.subr.mxu0 0.0
        %3101 = vmatpush1.msra.mxu0 %v3073
        %3102 = vmatprep.subr.mxu0 0.0
        %3103 = vmatpush1.msra.mxu0 %v3074
        %3104 = vmatprep.subr.mxu0 0.0
        %3105 = vmatpush1.msra.mxu0 %v3075
        %3106 = vmatprep.subr.mxu0 0.0
        %3107 = vmatpush1.msra.mxu0 %v3076
        %3108 = vmatprep.subr.mxu0 0.0
        %3109 = vmatpush1.msra.mxu0 %v3077
        %3110 = vmatprep.subr.mxu0 0.0
        %3111 = vmatpush1.msra.mxu0 0.0
        %3112 = vmatprep.subr.mxu0 0.0
        %3113 = vmatpush1.msra.mxu0 0.0
        %3114 = vmatprep.subr.mxu0 0.0
        %3115 = vmatpush1.msra.mxu0 0.0
        %3116 = vmatprep.subr.mxu0 0.0
        %3117 = vmatpush1.msra.mxu0 0.0
        %3118 = vmatprep.subr.mxu0 0.0
        %3119 = vmatpush1.msra.mxu0 0.0
        %3120 = vmatprep.subr.mxu0 0.0
        %3121 = vmatpush1.msra.mxu0 0.0
        %3122 = vmatprep.subr.mxu0 0.0
        %3123 = vmatpush1.msra.mxu0 0.0
        %3124 = vmatprep.subr.mxu0 0.0
        %3125 = vmatpush1.msra.mxu0 0.0
        %3126 = vmatprep.subr.mxu0 0.0
        %3127 = vmatpush1.msra.mxu0 0.0
        %3128 = vmatprep.subr.mxu0 0.0
        %3129 = vmatpush1.msra.mxu0 0.0
        %3130 = vmatprep.subr.mxu0 0.0
        %3131 = vmatpush1.msra.mxu0 0.0
        %3132 = vmatprep.subr.mxu0 0.0
        %3133 = vmatpush1.msra.mxu0 0.0
        %3134 = vmatprep.subr.mxu0 0.0
        %3135 = vmatpush1.msra.mxu0 0.0
        %3136 = vmatprep.subr.mxu0 0.0
        %3137 = vmatpush1.msra.mxu0 0.0
        %3138 = vmatprep.subr.mxu0 0.0
        %3139 = vmatpush1.msra.mxu0 0.0
        %3140 = vmatprep.subr.mxu0 0.0
        %3141 = vmatpush1.msra.mxu0 0.0
        %3142 = vmatprep.mubr.f32.mxu0 0.0
        %3143 = vmatmul.mubr.f32.gmra.mrb[0].mxu0 %v1044
        %v3144 = vpop.f32.mrb[0].mxu0
        %v3145 = vadd.f32 0.0, %v3144
        %v3146 = vpop.f32.mrb[0].mxu0
        %3147 = vmatprep.mubr.f32.mxu0 0.0
        %3148 = vmatmul.mubr.f32.gmra.mrb[0].mxu0 %v1045
        %v3149 = vpop.f32.mrb[0].mxu0
        %v3150 = vadd.f32 0.0, %v3149
        %v3151 = vpop.f32.mrb[0].mxu0
        %3152 = vmatprep.mubr.f32.mxu0 0.0
        %3153 = vmatmul.mubr.f32.gmra.mrb[0].mxu0 %v1046
        %v3154 = vpop.f32.mrb[0].mxu0
        %v3155 = vadd.f32 0.0, %v3154
        %v3156 = vpop.f32.mrb[0].mxu0
        %3157 = vmatprep.mubr.f32.mxu0 0.0
        %3158 = vmatmul.mubr.f32.gmra.mrb[0].mxu0 %v1047
        %v3159 = vpop.f32.mrb[0].mxu0
        %v3160 = vadd.f32 0.0, %v3159
        %v3161 = vpop.f32.mrb[0].mxu0
        %3162 = vmatprep.mubr.f32.mxu0 0.0
        %3163 = vmatmul.mubr.f32.gmra.mrb[0].mxu0 %v1048
        %v3164 = vpop.f32.mrb[0].mxu0
        %v3165 = vadd.f32 0.0, %v3164
        %v3166 = vpop.f32.mrb[0].mxu0
        %3167 = vmatprep.mubr.f32.mxu0 0.0
        %3168 = vmatmul.mubr.f32.gmra.mrb[0].mxu0 %v1049
        %v3169 = vpop.f32.mrb[0].mxu0
        %v3170 = vadd.f32 0.0, %v3169
        %v3171 = vpop.f32.mrb[0].mxu0
        %3172 = vmatprep.mubr.f32.mxu0 0.0
        %3173 = vmatmul.mubr.f32.gmra.mrb[0].mxu0 %v1050
        %v3174 = vpop.f32.mrb[0].mxu0
        %v3175 = vadd.f32 0.0, %v3174
        %v3176 = vpop.f32.mrb[0].mxu0
        %3177 = vmatprep.mubr.f32.mxu0 0.0
        %3178 = vmatmul.mubr.f32.gmra.mrb[0].mxu0 %v1051
        %v3179 = vpop.f32.mrb[0].mxu0
        %v3180 = vadd.f32 0.0, %v3179
        %v3181 = vpop.f32.mrb[0].mxu0
        %3182 = vmatprep.mubr.f32.mxu0 0.0
        %3183 = vmatmul.mubr.f32.gmra.mrb[0].mxu0 %v1052
        %v3184 = vpop.f32.mrb[0].mxu0
        %v3185 = vadd.f32 0.0, %v3184
        %v3186 = vpop.f32.mrb[0].mxu0
        %3187 = vmatprep.mubr.f32.mxu0 0.0
        %3188 = vmatmul.mubr.f32.gmra.mrb[0].mxu0 %v1053
        %v3189 = vpop.f32.mrb[0].mxu0
        %v3190 = vadd.f32 0.0, %v3189
        %v3191 = vpop.f32.mrb[0].mxu0
        %3192 = vmatprep.mubr.f32.mxu0 0.0
        %3193 = vmatmul.mubr.f32.gmra.mrb[0].mxu0 %v1054
        %v3194 = vpop.f32.mrb[0].mxu0
        %v3195 = vadd.f32 0.0, %v3194
        %v3196 = vpop.f32.mrb[0].mxu0
        %3197 = vmatprep.mubr.f32.mxu0 0.0
        %3198 = vmatmul.mubr.f32.gmra.mrb[0].mxu0 %v1055
        %v3199 = vpop.f32.mrb[0].mxu0
        %v3200 = vadd.f32 0.0, %v3199
        %v3201 = vpop.f32.mrb[0].mxu0
        %3202 = vmatprep.mubr.f32.mxu0 0.0
        %3203 = vmatmul.mubr.f32.gmra.mrb[0].mxu0 %v1056
        %v3204 = vpop.f32.mrb[0].mxu0
        %v3205 = vadd.f32 0.0, %v3204
        %v3206 = vpop.f32.mrb[0].mxu0
        %3207 = vmatprep.mubr.f32.mxu0 0.0
        %3208 = vmatmul.mubr.f32.gmra.mrb[0].mxu0 %v1057
        %v3209 = vpop.f32.mrb[0].mxu0
        %v3210 = vadd.f32 0.0, %v3209
        %v3211 = vpop.f32.mrb[0].mxu0
        %3212 = vmatprep.mubr.f32.mxu0 0.0
        %3213 = vmatmul.mubr.f32.gmra.mrb[0].mxu0 %v1058
        %v3214 = vpop.f32.mrb[0].mxu0
        %v3215 = vadd.f32 0.0, %v3214
        %v3216 = vpop.f32.mrb[0].mxu0
        %3217 = vmatprep.mubr.f32.mxu0 0.0
        %3218 = vmatmul.mubr.f32.gmra.mrb[0].mxu0 %v1059
        %v3219 = vpop.f32.mrb[0].mxu0
        %v3220 = vadd.f32 0.0, %v3219
        %v3221 = vpop.f32.mrb[0].mxu0
        %3222 = vdwg.mxu0
        %v3223 = vmax.f32 %v3145, -60.0
        %v3224 = vmax.f32 %v3150, -60.0
        %v3225 = vmax.f32 %v3155, -60.0
        %v3226 = vmax.f32 %v3160, -60.0
        %v3227 = vmax.f32 %v3165, -60.0
        %v3228 = vmax.f32 %v3170, -60.0
        %v3229 = vmax.f32 %v3175, -60.0
        %v3230 = vmax.f32 %v3180, -60.0
        %v3231 = vmax.f32 %v3185, -60.0
        %v3232 = vmax.f32 %v3190, -60.0
        %v3233 = vmax.f32 %v3195, -60.0
        %v3234 = vmax.f32 %v3200, -60.0
        %v3235 = vmax.f32 %v3205, -60.0
        %v3236 = vmax.f32 %v3210, -60.0
        %v3237 = vmax.f32 %v3215, -60.0
        %v3238 = vmax.f32 %v3220, -60.0
        %v3239 = vmul.f32 %v3223, 1.442695
        %v3240 = vpow.pop %v3239
        %v3241 = vmul.f32 %v3224, 1.442695
        %v3242 = vpow.pop %v3241
        %v3243 = vmul.f32 %v3225, 1.442695
        %v3244 = vpow.pop %v3243
        %v3245 = vmul.f32 %v3226, 1.442695
        %v3246 = vpow.pop %v3245
        %v3247 = vmul.f32 %v3227, 1.442695
        %v3248 = vpow.pop %v3247
        %v3249 = vmul.f32 %v3228, 1.442695
        %v3250 = vpow.pop %v3249
        %v3251 = vmul.f32 %v3229, 1.442695
        %v3252 = vpow.pop %v3251
        %v3253 = vmul.f32 %v3230, 1.442695
        %v3254 = vpow.pop %v3253
        %v3255 = vmul.f32 %v3231, 1.442695
        %v3256 = vpow.pop %v3255
        %v3257 = vmul.f32 %v3232, 1.442695
        %v3258 = vpow.pop %v3257
        %v3259 = vmul.f32 %v3233, 1.442695
        %v3260 = vpow.pop %v3259
        %v3261 = vmul.f32 %v3234, 1.442695
        %v3262 = vpow.pop %v3261
        %v3263 = vmul.f32 %v3235, 1.442695
        %v3264 = vpow.pop %v3263
        %v3265 = vmul.f32 %v3236, 1.442695
        %v3266 = vpow.pop %v3265
        %v3267 = vmul.f32 %v3237, 1.442695
        %v3268 = vpow.pop %v3267
        %v3269 = vmul.f32 %v3238, 1.442695
        %v3270 = vpow.pop %v3269
        %v3271 = vrcp.pop %v3240
        %v3272 = vrcp.pop %v3242
        %v3273 = vrcp.pop %v3244
        %v3274 = vrcp.pop %v3246
        %v3275 = vrcp.pop %v3248
        %v3276 = vrcp.pop %v3250
        %v3277 = vrcp.pop %v3252
        %v3278 = vrcp.pop %v3254
        %v3279 = vrcp.pop %v3256
        %v3280 = vrcp.pop %v3258
        %v3281 = vrcp.pop %v3260
        %v3282 = vrcp.pop %v3262
        %v3283 = vrcp.pop %v3264
        %v3284 = vrcp.pop %v3266
        %v3285 = vrcp.pop %v3268
        %v3286 = vrcp.pop %v3270
        %v3287 = vmul.f32 %v2854, %v3271
        %v3288 = vmul.f32 %v2855, %v3272
        %v3289 = vmul.f32 %v2856, %v3273
        %v3290 = vmul.f32 %v2857, %v3274
        %v3291 = vmul.f32 %v2858, %v3275
        %v3292 = vmul.f32 %v2859, %v3276
        %v3293 = vmul.f32 %v2860, %v3277
        %v3294 = vmul.f32 %v2861, %v3278
        %v3295 = vmul.f32 %v2862, %v3279
        %v3296 = vmul.f32 %v2863, %v3280
        %v3297 = vmul.f32 %v2864, %v3281
        %v3298 = vmul.f32 %v2865, %v3282
        %v3299 = vmul.f32 %v2866, %v3283
        %v3300 = vmul.f32 %v2867, %v3284
        %v3301 = vmul.f32 %v2868, %v3285
        %v3302 = vmul.f32 %v2869, %v3286
        %v3303 = vpack.c.bf16 %v3288, %v3287
        %v3304 = vpack.c.bf16 %v3290, %v3289
        %v3305 = vpack.c.bf16 %v3292, %v3291
        %v3306 = vpack.c.bf16 %v3294, %v3293
        %v3307 = vpack.c.bf16 %v3296, %v3295
        %v3308 = vpack.c.bf16 %v3298, %v3297
        %v3309 = vpack.c.bf16 %v3300, %v3299
        %v3310 = vpack.c.bf16 %v3302, %v3301
        %v3311 = vlaneseq
        %v3312 = vshrl.u32 %v3311, 7
        %v3313 = vsub.s32 7, %v3312
        %v3314 = vrot.slane %v3270, %v3313
        %v3315 = vmul.f32 %v3287, %v3314
        %v3316 = vmul.f32 %v3288, %v3314
        %v3317 = vmul.f32 %v3289, %v3314
        %v3318 = vmul.f32 %v3290, %v3314
        %v3319 = vmul.f32 %v3291, %v3314
        %v3320 = vmul.f32 %v3292, %v3314
        %v3321 = vmul.f32 %v3293, %v3314
        %v3322 = vmul.f32 %v3294, %v3314
        %v3323 = vmul.f32 %v3295, %v3314
        %v3324 = vmul.f32 %v3296, %v3314
        %v3325 = vmul.f32 %v3297, %v3314
        %v3326 = vmul.f32 %v3298, %v3314
        %v3327 = vmul.f32 %v3299, %v3314
        %v3328 = vmul.f32 %v3300, %v3314
        %v3329 = vmul.f32 %v3301, %v3314
        %v3330 = vmul.f32 %v3302, %v3314
        %v3331 = vpack.c.bf16 %v3316, %v3315
        %v3332 = vpack.c.bf16 %v3318, %v3317
        %v3333 = vpack.c.bf16 %v3320, %v3319
        %v3334 = vpack.c.bf16 %v3322, %v3321
        %v3335 = vpack.c.bf16 %v3324, %v3323
        %v3336 = vpack.c.bf16 %v3326, %v3325
        %v3337 = vpack.c.bf16 %v3328, %v3327
        %v3338 = vpack.c.bf16 %v3330, %v3329
        %v3339 = vunpack.c.l.bf16 %v2806
        %v3340 = vunpack.c.l.bf16 %v2807
        %v3341 = vunpack.c.l.bf16 %v2808
        %v3342 = vunpack.c.l.bf16 %v2809
        %v3343 = vunpack.c.l.bf16 %v2810
        %v3344 = vunpack.c.l.bf16 %v2811
        %v3345 = vunpack.c.l.bf16 %v2812
        %v3346 = vunpack.c.l.bf16 %v2813
        %v3347 = vunpack.c.l.bf16 %v2814
        %v3348 = vunpack.c.l.bf16 %v2815
        %v3349 = vunpack.c.l.bf16 %v2816
        %v3350 = vunpack.c.l.bf16 %v2817
        %v3351 = vunpack.c.l.bf16 %v2818
        %v3352 = vunpack.c.l.bf16 %v2819
        %v3353 = vunpack.c.l.bf16 %v2820
        %v3354 = vunpack.c.l.bf16 %v2821
        %v3355 = vmax.f32 %v3339, 0.0
        %v3356 = vmax.f32 %v3340, 0.0
        %v3357 = vmax.f32 %v3341, 0.0
        %v3358 = vmax.f32 %v3342, 0.0
        %v3359 = vmax.f32 %v3343, 0.0
        %v3360 = vmax.f32 %v3344, 0.0
        %v3361 = vmax.f32 %v3345, 0.0
        %v3362 = vmax.f32 %v3346, 0.0
        %v3363 = vmax.f32 %v3347, 0.0
        %v3364 = vmax.f32 %v3348, 0.0
        %v3365 = vmax.f32 %v3349, 0.0
        %v3366 = vmax.f32 %v3350, 0.0
        %v3367 = vmax.f32 %v3351, 0.0
        %v3368 = vmax.f32 %v3352, 0.0
        %v3369 = vmax.f32 %v3353, 0.0
        %v3370 = vmax.f32 %v3354, 0.0
        %v3371 = vmul.f32 %v3355, 0.088388346
        %v3372 = vmul.f32 %v3356, 0.088388346
        %v3373 = vmul.f32 %v3357, 0.088388346
        %v3374 = vmul.f32 %v3358, 0.088388346
        %v3375 = vmul.f32 %v3359, 0.088388346
        %v3376 = vmul.f32 %v3360, 0.088388346
        %v3377 = vmul.f32 %v3361, 0.088388346
        %v3378 = vmul.f32 %v3362, 0.088388346
        %v3379 = vmul.f32 %v3363, 0.088388346
        %v3380 = vmul.f32 %v3364, 0.088388346
        %v3381 = vmul.f32 %v3365, 0.088388346
        %v3382 = vmul.f32 %v3366, 0.088388346
        %v3383 = vmul.f32 %v3367, 0.088388346
        %v3384 = vmul.f32 %v3368, 0.088388346
        %v3385 = vmul.f32 %v3369, 0.088388346
        %v3386 = vmul.f32 %v3370, 0.088388346
        %v3387 = vmul.f32 %v3371, %v3240
        %v3388 = vmul.f32 %v3372, %v3242
        %v3389 = vmul.f32 %v3373, %v3244
        %v3390 = vmul.f32 %v3374, %v3246
        %v3391 = vmul.f32 %v3375, %v3248
        %v3392 = vmul.f32 %v3376, %v3250
        %v3393 = vmul.f32 %v3377, %v3252
        %v3394 = vmul.f32 %v3378, %v3254
        %v3395 = vmul.f32 %v3379, %v3256
        %v3396 = vmul.f32 %v3380, %v3258
        %v3397 = vmul.f32 %v3381, %v3260
        %v3398 = vmul.f32 %v3382, %v3262
        %v3399 = vmul.f32 %v3383, %v3264
        %v3400 = vmul.f32 %v3384, %v3266
        %v3401 = vmul.f32 %v3385, %v3268
        %v3402 = vmul.f32 %v3386, %v3270
        %v3419 = vrot.slane %v2806, 4
        %v3420 = vrot.slane %v2807, 4
        %v3421 = vrot.slane %v2808, 4
        %v3422 = vrot.slane %v2809, 4
        %v3423 = vrot.slane %v2810, 4
        %v3424 = vrot.slane %v2811, 4
        %v3425 = vrot.slane %v2812, 4
        %v3426 = vrot.slane %v2813, 4
        %v3427 = vrot.slane %v2814, 4
        %v3428 = vrot.slane %v2815, 4
        %v3429 = vrot.slane %v2816, 4
        %v3430 = vrot.slane %v2817, 4
        %v3431 = vrot.slane %v2818, 4
        %v3432 = vrot.slane %v2819, 4
        %v3433 = vrot.slane %v2820, 4
        %v3434 = vrot.slane %v2821, 4
        %v3451 = vunpack.c.l.bf16 %v3419
        %v3452 = vunpack.c.l.bf16 %v3420
        %v3453 = vunpack.c.l.bf16 %v3421
        %v3454 = vunpack.c.l.bf16 %v3422
        %v3455 = vunpack.c.l.bf16 %v3423
        %v3456 = vunpack.c.l.bf16 %v3424
        %v3457 = vunpack.c.l.bf16 %v3425
        %v3458 = vunpack.c.l.bf16 %v3426
        %v3459 = vunpack.c.l.bf16 %v3427
        %v3460 = vunpack.c.l.bf16 %v3428
        %v3461 = vunpack.c.l.bf16 %v3429
        %v3462 = vunpack.c.l.bf16 %v3430
        %v3463 = vunpack.c.l.bf16 %v3431
        %v3464 = vunpack.c.l.bf16 %v3432
        %v3465 = vunpack.c.l.bf16 %v3433
        %v3466 = vunpack.c.l.bf16 %v3434
        %v3467 = vmax.f32 %v3451, 0.0
        %v3468 = vmax.f32 %v3452, 0.0
        %v3469 = vmax.f32 %v3453, 0.0
        %v3470 = vmax.f32 %v3454, 0.0
        %v3471 = vmax.f32 %v3455, 0.0
        %v3472 = vmax.f32 %v3456, 0.0
        %v3473 = vmax.f32 %v3457, 0.0
        %v3474 = vmax.f32 %v3458, 0.0
        %v3475 = vmax.f32 %v3459, 0.0
        %v3476 = vmax.f32 %v3460, 0.0
        %v3477 = vmax.f32 %v3461, 0.0
        %v3478 = vmax.f32 %v3462, 0.0
        %v3479 = vmax.f32 %v3463, 0.0
        %v3480 = vmax.f32 %v3464, 0.0
        %v3481 = vmax.f32 %v3465, 0.0
        %v3482 = vmax.f32 %v3466, 0.0
        %v3483 = vmul.f32 %v3467, 0.088388346
        %v3484 = vmul.f32 %v3468, 0.088388346
        %v3485 = vmul.f32 %v3469, 0.088388346
        %v3486 = vmul.f32 %v3470, 0.088388346
        %v3487 = vmul.f32 %v3471, 0.088388346
        %v3488 = vmul.f32 %v3472, 0.088388346
        %v3489 = vmul.f32 %v3473, 0.088388346
        %v3490 = vmul.f32 %v3474, 0.088388346
        %v3491 = vmul.f32 %v3475, 0.088388346
        %v3492 = vmul.f32 %v3476, 0.088388346
        %v3493 = vmul.f32 %v3477, 0.088388346
        %v3494 = vmul.f32 %v3478, 0.088388346
        %v3495 = vmul.f32 %v3479, 0.088388346
        %v3496 = vmul.f32 %v3480, 0.088388346
        %v3497 = vmul.f32 %v3481, 0.088388346
        %v3498 = vmul.f32 %v3482, 0.088388346
        %v3499 = vmul.f32 %v3483, %v3240
        %v3500 = vmul.f32 %v3484, %v3242
        %v3501 = vmul.f32 %v3485, %v3244
        %v3502 = vmul.f32 %v3486, %v3246
        %v3503 = vmul.f32 %v3487, %v3248
        %v3504 = vmul.f32 %v3488, %v3250
        %v3505 = vmul.f32 %v3489, %v3252
        %v3506 = vmul.f32 %v3490, %v3254
        %v3507 = vmul.f32 %v3491, %v3256
        %v3508 = vmul.f32 %v3492, %v3258
        %v3509 = vmul.f32 %v3493, %v3260
        %v3510 = vmul.f32 %v3494, %v3262
        %v3511 = vmul.f32 %v3495, %v3264
        %v3512 = vmul.f32 %v3496, %v3266
        %v3513 = vmul.f32 %v3497, %v3268
        %v3514 = vmul.f32 %v3498, %v3270
        %v3515 = vpack.c.bf16 %v3388, %v3387
        %v3516 = vpack.c.bf16 %v3390, %v3389
        %v3517 = vpack.c.bf16 %v3392, %v3391
        %v3518 = vpack.c.bf16 %v3394, %v3393
        %v3519 = vpack.c.bf16 %v3396, %v3395
        %v3520 = vpack.c.bf16 %v3398, %v3397
        %v3521 = vpack.c.bf16 %v3400, %v3399
        %v3522 = vpack.c.bf16 %v3402, %v3401
        %v3523 = vpack.c.bf16 %v3500, %v3499
        %v3524 = vpack.c.bf16 %v3502, %v3501
        %v3525 = vpack.c.bf16 %v3504, %v3503
        %v3526 = vpack.c.bf16 %v3506, %v3505
        %v3527 = vpack.c.bf16 %v3508, %v3507
        %v3528 = vpack.c.bf16 %v3510, %v3509
        %v3529 = vpack.c.bf16 %v3512, %v3511
        %v3530 = vpack.c.bf16 %v3514, %v3513
        %v3531 = vld [vmem:[#allocation2] sm:$0xff]
        %v3532 = vld [vmem:[#allocation2 + $0x8] sm:$0xff]
        %v3533 = vld [vmem:[#allocation2 + $0x10] sm:$0xff]
        %v3534 = vld [vmem:[#allocation2 + $0x18] sm:$0xff]
        %v3535 = vld [vmem:[#allocation2 + $0x20] sm:$0xff]
        %v3536 = vld [vmem:[#allocation2 + $0x28] sm:$0xff]
        %v3537 = vld [vmem:[#allocation2 + $0x30] sm:$0xff]
        %v3538 = vld [vmem:[#allocation2 + $0x38] sm:$0xff]
        %v3539 = vld [vmem:[#allocation2 + $0x40] sm:$0xff]
        %v3540 = vld [vmem:[#allocation2 + $0x48] sm:$0xff]
        %v3541 = vld [vmem:[#allocation2 + $0x50] sm:$0xff]
        %v3542 = vld [vmem:[#allocation2 + $0x58] sm:$0xff]
        %v3543 = vld [vmem:[#allocation2 + $0x60] sm:$0xff]
        %v3544 = vld [vmem:[#allocation2 + $0x68] sm:$0xff]
        %v3545 = vld [vmem:[#allocation2 + $0x70] sm:$0xff]
        %v3546 = vld [vmem:[#allocation2 + $0x78] sm:$0xff]
        %v3547 = vpack.c.bf16 %v3532, %v3531
        %v3548 = vpack.c.bf16 %v3534, %v3533
        %v3549 = vpack.c.bf16 %v3536, %v3535
        %v3550 = vpack.c.bf16 %v3538, %v3537
        %v3551 = vpack.c.bf16 %v3540, %v3539
        %v3552 = vpack.c.bf16 %v3542, %v3541
        %v3553 = vpack.c.bf16 %v3544, %v3543
        %v3554 = vpack.c.bf16 %v3546, %v3545
        %3555 = vmatprep.subr.bf16.mxu0 0
        %3556 = vmatpush1.bf16.xpose.msra.mxu0 %v3303
        %3557 = vmatprep.subr.bf16.mxu0 0
        %3558 = vmatpush1.bf16.xpose.msra.mxu0 %v3304
        %3559 = vmatprep.subr.bf16.mxu0 0
        %3560 = vmatpush1.bf16.xpose.msra.mxu0 %v3305
        %3561 = vmatprep.subr.bf16.mxu0 0
        %3562 = vmatpush1.bf16.xpose.msra.mxu0 %v3306
        %3563 = vmatprep.subr.bf16.mxu0 0
        %3564 = vmatpush1.bf16.xpose.msra.mxu0 %v3307
        %3565 = vmatprep.subr.bf16.mxu0 0
        %3566 = vmatpush1.bf16.xpose.msra.mxu0 %v3308
        %3567 = vmatprep.subr.bf16.mxu0 0
        %3568 = vmatpush1.bf16.xpose.msra.mxu0 %v3309
        %3569 = vmatprep.subr.bf16.mxu0 0
        %3570 = vmatpush1.bf16.xpose.msra.mxu0 %v3310
        %3571 = vmatprep.subr.bf16.mxu0 0
        %3572 = vmatpush1.bf16.xpose.msra.mxu0 0
        %3573 = vmatprep.subr.bf16.mxu0 0
        %3574 = vmatpush1.bf16.xpose.msra.mxu0 0
        %3575 = vmatprep.subr.bf16.mxu0 0
        %3576 = vmatpush1.bf16.xpose.msra.mxu0 0
        %3577 = vmatprep.subr.bf16.mxu0 0
        %3578 = vmatpush1.bf16.xpose.msra.mxu0 0
        %3579 = vmatprep.subr.bf16.mxu0 0
        %3580 = vmatpush1.bf16.xpose.msra.mxu0 0
        %3581 = vmatprep.subr.bf16.mxu0 0
        %3582 = vmatpush1.bf16.xpose.msra.mxu0 0
        %3583 = vmatprep.subr.bf16.mxu0 0
        %3584 = vmatpush1.bf16.xpose.msra.mxu0 0
        %3585 = vmatprep.subr.bf16.mxu0 0
        %3586 = vmatpush1.bf16.xpose.msra.mxu0 0
        %3587 = vmatprep.mubr.bf16.mxu0 0
        %3588 = vmatmul.mubr.bf16.gmra.mrb[0].mxu0 %v3515
        %v3589 = vpop.f32.mrb[0].mxu0
        %v3590 = vadd.f32 0.0, %v3589
        %v3591 = vpop.f32.mrb[0].mxu0
        %v3592 = vpop.f32.mrb[0].mxu0
        %v3593 = vadd.f32 0.0, %v3592
        %v3594 = vpop.f32.mrb[0].mxu0
        %3595 = vmatprep.mubr.bf16.mxu0 0
        %3596 = vmatmul.mubr.bf16.gmra.mrb[0].mxu0 %v3516
        %v3597 = vpop.f32.mrb[0].mxu0
        %v3598 = vadd.f32 0.0, %v3597
        %v3599 = vpop.f32.mrb[0].mxu0
        %v3600 = vpop.f32.mrb[0].mxu0
        %v3601 = vadd.f32 0.0, %v3600
        %v3602 = vpop.f32.mrb[0].mxu0
        %3603 = vmatprep.mubr.bf16.mxu0 0
        %3604 = vmatmul.mubr.bf16.gmra.mrb[0].mxu0 %v3517
        %v3605 = vpop.f32.mrb[0].mxu0
        %v3606 = vadd.f32 0.0, %v3605
        %v3607 = vpop.f32.mrb[0].mxu0
        %v3608 = vpop.f32.mrb[0].mxu0
        %v3609 = vadd.f32 0.0, %v3608
        %v3610 = vpop.f32.mrb[0].mxu0
        %3611 = vmatprep.mubr.bf16.mxu0 0
        %3612 = vmatmul.mubr.bf16.gmra.mrb[0].mxu0 %v3518
        %v3613 = vpop.f32.mrb[0].mxu0
        %v3614 = vadd.f32 0.0, %v3613
        %v3615 = vpop.f32.mrb[0].mxu0
        %v3616 = vpop.f32.mrb[0].mxu0
        %v3617 = vadd.f32 0.0, %v3616
        %v3618 = vpop.f32.mrb[0].mxu0
        %3619 = vmatprep.mubr.bf16.mxu0 0
        %3620 = vmatmul.mubr.bf16.gmra.mrb[0].mxu0 %v3519
        %v3621 = vpop.f32.mrb[0].mxu0
        %v3622 = vadd.f32 0.0, %v3621
        %v3623 = vpop.f32.mrb[0].mxu0
        %v3624 = vpop.f32.mrb[0].mxu0
        %v3625 = vadd.f32 0.0, %v3624
        %v3626 = vpop.f32.mrb[0].mxu0
        %3627 = vmatprep.mubr.bf16.mxu0 0
        %3628 = vmatmul.mubr.bf16.gmra.mrb[0].mxu0 %v3520
        %v3629 = vpop.f32.mrb[0].mxu0
        %v3630 = vadd.f32 0.0, %v3629
        %v3631 = vpop.f32.mrb[0].mxu0
        %v3632 = vpop.f32.mrb[0].mxu0
        %v3633 = vadd.f32 0.0, %v3632
        %v3634 = vpop.f32.mrb[0].mxu0
        %3635 = vmatprep.mubr.bf16.mxu0 0
        %3636 = vmatmul.mubr.bf16.gmra.mrb[0].mxu0 %v3521
        %v3637 = vpop.f32.mrb[0].mxu0
        %v3638 = vadd.f32 0.0, %v3637
        %v3639 = vpop.f32.mrb[0].mxu0
        %v3640 = vpop.f32.mrb[0].mxu0
        %v3641 = vadd.f32 0.0, %v3640
        %v3642 = vpop.f32.mrb[0].mxu0
        %3643 = vmatprep.mubr.bf16.mxu0 0
        %3644 = vmatmul.mubr.bf16.gmra.mrb[0].mxu0 %v3522
        %v3645 = vpop.f32.mrb[0].mxu0
        %v3646 = vadd.f32 0.0, %v3645
        %v3647 = vpop.f32.mrb[0].mxu0
        %v3648 = vpop.f32.mrb[0].mxu0
        %v3649 = vadd.f32 0.0, %v3648
        %v3650 = vpop.f32.mrb[0].mxu0
        %3651 = vmatprep.mubr.bf16.mxu0 0
        %3652 = vmatmul.mubr.bf16.gmra.mrb[0].mxu0 %v3523
        %v3653 = vpop.f32.mrb[0].mxu0
        %v3654 = vadd.f32 0.0, %v3653
        %v3655 = vpop.f32.mrb[0].mxu0
        %v3656 = vpop.f32.mrb[0].mxu0
        %v3657 = vadd.f32 0.0, %v3656
        %v3658 = vpop.f32.mrb[0].mxu0
        %3659 = vmatprep.mubr.bf16.mxu0 0
        %3660 = vmatmul.mubr.bf16.gmra.mrb[0].mxu0 %v3524
        %v3661 = vpop.f32.mrb[0].mxu0
        %v3662 = vadd.f32 0.0, %v3661
        %v3663 = vpop.f32.mrb[0].mxu0
        %v3664 = vpop.f32.mrb[0].mxu0
        %v3665 = vadd.f32 0.0, %v3664
        %v3666 = vpop.f32.mrb[0].mxu0
        %3667 = vmatprep.mubr.bf16.mxu0 0
        %3668 = vmatmul.mubr.bf16.gmra.mrb[0].mxu0 %v3525
        %v3669 = vpop.f32.mrb[0].mxu0
        %v3670 = vadd.f32 0.0, %v3669
        %v3671 = vpop.f32.mrb[0].mxu0
        %v3672 = vpop.f32.mrb[0].mxu0
        %v3673 = vadd.f32 0.0, %v3672
        %v3674 = vpop.f32.mrb[0].mxu0
        %3675 = vmatprep.mubr.bf16.mxu0 0
        %3676 = vmatmul.mubr.bf16.gmra.mrb[0].mxu0 %v3526
        %v3677 = vpop.f32.mrb[0].mxu0
        %v3678 = vadd.f32 0.0, %v3677
        %v3679 = vpop.f32.mrb[0].mxu0
        %v3680 = vpop.f32.mrb[0].mxu0
        %v3681 = vadd.f32 0.0, %v3680
        %v3682 = vpop.f32.mrb[0].mxu0
        %3683 = vmatprep.mubr.bf16.mxu0 0
        %3684 = vmatmul.mubr.bf16.gmra.mrb[0].mxu0 %v3527
        %v3685 = vpop.f32.mrb[0].mxu0
        %v3686 = vadd.f32 0.0, %v3685
        %v3687 = vpop.f32.mrb[0].mxu0
        %v3688 = vpop.f32.mrb[0].mxu0
        %v3689 = vadd.f32 0.0, %v3688
        %v3690 = vpop.f32.mrb[0].mxu0
        %3691 = vmatprep.mubr.bf16.mxu0 0
        %3692 = vmatmul.mubr.bf16.gmra.mrb[0].mxu0 %v3528
        %v3693 = vpop.f32.mrb[0].mxu0
        %v3694 = vadd.f32 0.0, %v3693
        %v3695 = vpop.f32.mrb[0].mxu0
        %v3696 = vpop.f32.mrb[0].mxu0
        %v3697 = vadd.f32 0.0, %v3696
        %v3698 = vpop.f32.mrb[0].mxu0
        %3699 = vmatprep.mubr.bf16.mxu0 0
        %3700 = vmatmul.mubr.bf16.gmra.mrb[0].mxu0 %v3529
        %v3701 = vpop.f32.mrb[0].mxu0
        %v3702 = vadd.f32 0.0, %v3701
        %v3703 = vpop.f32.mrb[0].mxu0
        %v3704 = vpop.f32.mrb[0].mxu0
        %v3705 = vadd.f32 0.0, %v3704
        %v3706 = vpop.f32.mrb[0].mxu0
        %3707 = vmatprep.mubr.bf16.mxu0 0
        %3708 = vmatmul.mubr.bf16.gmra.mrb[0].mxu0 %v3530
        %v3709 = vpop.f32.mrb[0].mxu0
        %v3710 = vadd.f32 0.0, %v3709
        %v3711 = vpop.f32.mrb[0].mxu0
        %v3712 = vpop.f32.mrb[0].mxu0
        %v3713 = vadd.f32 0.0, %v3712
        %v3714 = vpop.f32.mrb[0].mxu0
        %3715 = vdwg.mxu0
        %v3716 = vmul.f32 %v3590, %v1044
        %v3717 = vmul.f32 %v3593, %v1045
        %v3718 = vmul.f32 %v3598, %v1046
        %v3719 = vmul.f32 %v3601, %v1047
        %v3720 = vmul.f32 %v3606, %v1048
        %v3721 = vmul.f32 %v3609, %v1049
        %v3722 = vmul.f32 %v3614, %v1050
        %v3723 = vmul.f32 %v3617, %v1051
        %v3724 = vmul.f32 %v3622, %v1052
        %v3725 = vmul.f32 %v3625, %v1053
        %v3726 = vmul.f32 %v3630, %v1054
        %v3727 = vmul.f32 %v3633, %v1055
        %v3728 = vmul.f32 %v3638, %v1056
        %v3729 = vmul.f32 %v3641, %v1057
        %v3730 = vmul.f32 %v3646, %v1058
        %v3731 = vmul.f32 %v3649, %v1059
        %v3732 = vmul.f32 %v3654, %v1044
        %v3733 = vmul.f32 %v3657, %v1045
        %v3734 = vmul.f32 %v3662, %v1046
        %v3735 = vmul.f32 %v3665, %v1047
        %v3736 = vmul.f32 %v3670, %v1048
        %v3737 = vmul.f32 %v3673, %v1049
        %v3738 = vmul.f32 %v3678, %v1050
        %v3739 = vmul.f32 %v3681, %v1051
        %v3740 = vmul.f32 %v3686, %v1052
        %v3741 = vmul.f32 %v3689, %v1053
        %v3742 = vmul.f32 %v3694, %v1054
        %v3743 = vmul.f32 %v3697, %v1055
        %v3744 = vmul.f32 %v3702, %v1056
        %v3745 = vmul.f32 %v3705, %v1057
        %v3746 = vmul.f32 %v3710, %v1058
        %v3747 = vmul.f32 %v3713, %v1059
        %v3748 = vpack.c.bf16 %v3717, %v3716
        %v3749 = vpack.c.bf16 %v3719, %v3718
        %v3750 = vpack.c.bf16 %v3721, %v3720
        %v3751 = vpack.c.bf16 %v3723, %v3722
        %v3752 = vpack.c.bf16 %v3725, %v3724
        %v3753 = vpack.c.bf16 %v3727, %v3726
        %v3754 = vpack.c.bf16 %v3729, %v3728
        %v3755 = vpack.c.bf16 %v3731, %v3730
        %v3756 = vpack.c.bf16 %v3733, %v3732
        %v3757 = vpack.c.bf16 %v3735, %v3734
        %v3758 = vpack.c.bf16 %v3737, %v3736
        %v3759 = vpack.c.bf16 %v3739, %v3738
        %v3760 = vpack.c.bf16 %v3741, %v3740
        %v3761 = vpack.c.bf16 %v3743, %v3742
        %v3762 = vpack.c.bf16 %v3745, %v3744
        %v3763 = vpack.c.bf16 %v3747, %v3746
        %v3780 = vunpack.c.l.b16 %v2870
        %v3781 = vunpack.c.l.b16 %v2871
        %v3782 = vunpack.c.l.b16 %v2872
        %v3783 = vunpack.c.l.b16 %v2873
        %v3784 = vunpack.c.l.b16 %v2874
        %v3785 = vunpack.c.l.b16 %v2875
        %v3786 = vunpack.c.l.b16 %v2876
        %v3787 = vunpack.c.l.b16 %v2877
        %v3788 = vunpack.c.l.b16 %v2878
        %v3789 = vunpack.c.l.b16 %v2879
        %v3790 = vunpack.c.l.b16 %v2880
        %v3791 = vunpack.c.l.b16 %v2881
        %v3792 = vunpack.c.l.b16 %v2882
        %v3793 = vunpack.c.l.b16 %v2883
        %v3794 = vunpack.c.l.b16 %v2884
        %v3795 = vunpack.c.l.b16 %v2885
        %v3796 = vpack.c.b16 %v3781, %v3780
        %v3797 = vpack.c.b16 %v3783, %v3782
        %v3798 = vpack.c.b16 %v3785, %v3784
        %v3799 = vpack.c.b16 %v3787, %v3786
        %v3800 = vpack.c.b16 %v3789, %v3788
        %v3801 = vpack.c.b16 %v3791, %v3790
        %v3802 = vpack.c.b16 %v3793, %v3792
        %v3803 = vpack.c.b16 %v3795, %v3794
        %3812 = vmatprep.subr.bf16.mxu0 0
        %3813 = vmatpush1.bf16.msra.mxu0 %v3796
        %3814 = vmatprep.subr.bf16.mxu0 0
        %3815 = vmatpush1.bf16.msra.mxu0 %v3797
        %3816 = vmatprep.subr.bf16.mxu0 0
        %3817 = vmatpush1.bf16.msra.mxu0 %v3798
        %3818 = vmatprep.subr.bf16.mxu0 0
        %3819 = vmatpush1.bf16.msra.mxu0 %v3799
        %3820 = vmatprep.subr.bf16.mxu0 0
        %3821 = vmatpush1.bf16.msra.mxu0 %v3800
        %3822 = vmatprep.subr.bf16.mxu0 0
        %3823 = vmatpush1.bf16.msra.mxu0 %v3801
        %3824 = vmatprep.subr.bf16.mxu0 0
        %3825 = vmatpush1.bf16.msra.mxu0 %v3802
        %3826 = vmatprep.subr.bf16.mxu0 0
        %3827 = vmatpush1.bf16.msra.mxu0 %v3803
        %3828 = vmatprep.subr.bf16.mxu0 0
        %3829 = vmatpush1.bf16.msra.mxu0 0
        %3830 = vmatprep.subr.bf16.mxu0 0
        %3831 = vmatpush1.bf16.msra.mxu0 0
        %3832 = vmatprep.subr.bf16.mxu0 0
        %3833 = vmatpush1.bf16.msra.mxu0 0
        %3834 = vmatprep.subr.bf16.mxu0 0
        %3835 = vmatpush1.bf16.msra.mxu0 0
        %3836 = vmatprep.subr.bf16.mxu0 0
        %3837 = vmatpush1.bf16.msra.mxu0 0
        %3838 = vmatprep.subr.bf16.mxu0 0
        %3839 = vmatpush1.bf16.msra.mxu0 0
        %3840 = vmatprep.subr.bf16.mxu0 0
        %3841 = vmatpush1.bf16.msra.mxu0 0
        %3842 = vmatprep.subr.bf16.mxu0 0
        %3843 = vmatpush1.bf16.msra.mxu0 0
        %3844 = vmatprep.mubr.bf16.mxu0 0
        %3845 = vmatmul.mubr.bf16.gmra.mrb[0].mxu0 %v3748
        %v3846 = vpop.f32.mrb[0].mxu0
        %v3847 = vadd.f32 0.0, %v3846
        %v3848 = vpop.f32.mrb[0].mxu0
        %v3849 = vpop.f32.mrb[0].mxu0
        %v3850 = vadd.f32 0.0, %v3849
        %v3851 = vpop.f32.mrb[0].mxu0
        %3852 = vmatprep.mubr.bf16.mxu0 0
        %3853 = vmatmul.mubr.bf16.gmra.mrb[0].mxu0 %v3749
        %v3854 = vpop.f32.mrb[0].mxu0
        %v3855 = vadd.f32 0.0, %v3854
        %v3856 = vpop.f32.mrb[0].mxu0
        %v3857 = vpop.f32.mrb[0].mxu0
        %v3858 = vadd.f32 0.0, %v3857
        %v3859 = vpop.f32.mrb[0].mxu0
        %3860 = vmatprep.mubr.bf16.mxu0 0
        %3861 = vmatmul.mubr.bf16.gmra.mrb[0].mxu0 %v3750
        %v3862 = vpop.f32.mrb[0].mxu0
        %v3863 = vadd.f32 0.0, %v3862
        %v3864 = vpop.f32.mrb[0].mxu0
        %v3865 = vpop.f32.mrb[0].mxu0
        %v3866 = vadd.f32 0.0, %v3865
        %v3867 = vpop.f32.mrb[0].mxu0
        %3868 = vmatprep.mubr.bf16.mxu0 0
        %3869 = vmatmul.mubr.bf16.gmra.mrb[0].mxu0 %v3751
        %v3870 = vpop.f32.mrb[0].mxu0
        %v3871 = vadd.f32 0.0, %v3870
        %v3872 = vpop.f32.mrb[0].mxu0
        %v3873 = vpop.f32.mrb[0].mxu0
        %v3874 = vadd.f32 0.0, %v3873
        %v3875 = vpop.f32.mrb[0].mxu0
        %3876 = vmatprep.mubr.bf16.mxu0 0
        %3877 = vmatmul.mubr.bf16.gmra.mrb[0].mxu0 %v3752
        %v3878 = vpop.f32.mrb[0].mxu0
        %v3879 = vadd.f32 0.0, %v3878
        %v3880 = vpop.f32.mrb[0].mxu0
        %v3881 = vpop.f32.mrb[0].mxu0
        %v3882 = vadd.f32 0.0, %v3881
        %v3883 = vpop.f32.mrb[0].mxu0
        %3884 = vmatprep.mubr.bf16.mxu0 0
        %3885 = vmatmul.mubr.bf16.gmra.mrb[0].mxu0 %v3753
        %v3886 = vpop.f32.mrb[0].mxu0
        %v3887 = vadd.f32 0.0, %v3886
        %v3888 = vpop.f32.mrb[0].mxu0
        %v3889 = vpop.f32.mrb[0].mxu0
        %v3890 = vadd.f32 0.0, %v3889
        %v3891 = vpop.f32.mrb[0].mxu0
        %3892 = vmatprep.mubr.bf16.mxu0 0
        %3893 = vmatmul.mubr.bf16.gmra.mrb[0].mxu0 %v3754
        %v3894 = vpop.f32.mrb[0].mxu0
        %v3895 = vadd.f32 0.0, %v3894
        %v3896 = vpop.f32.mrb[0].mxu0
        %v3897 = vpop.f32.mrb[0].mxu0
        %v3898 = vadd.f32 0.0, %v3897
        %v3899 = vpop.f32.mrb[0].mxu0
        %3900 = vmatprep.mubr.bf16.mxu0 0
        %3901 = vmatmul.mubr.bf16.gmra.mrb[0].mxu0 %v3755
        %v3902 = vpop.f32.mrb[0].mxu0
        %v3903 = vadd.f32 0.0, %v3902
        %v3904 = vpop.f32.mrb[0].mxu0
        %v3905 = vpop.f32.mrb[0].mxu0
        %v3906 = vadd.f32 0.0, %v3905
        %v3907 = vpop.f32.mrb[0].mxu0
        %3908 = vmatprep.mubr.bf16.mxu0 0
        %3909 = vmatmul.mubr.bf16.gmra.mrb[0].mxu0 %v3756
        %v3910 = vpop.f32.mrb[0].mxu0
        %v3911 = vadd.f32 0.0, %v3910
        %v3912 = vpop.f32.mrb[0].mxu0
        %v3913 = vpop.f32.mrb[0].mxu0
        %v3914 = vadd.f32 0.0, %v3913
        %v3915 = vpop.f32.mrb[0].mxu0
        %3916 = vmatprep.mubr.bf16.mxu0 0
        %3917 = vmatmul.mubr.bf16.gmra.mrb[0].mxu0 %v3757
        %v3918 = vpop.f32.mrb[0].mxu0
        %v3919 = vadd.f32 0.0, %v3918
        %v3920 = vpop.f32.mrb[0].mxu0
        %v3921 = vpop.f32.mrb[0].mxu0
        %v3922 = vadd.f32 0.0, %v3921
        %v3923 = vpop.f32.mrb[0].mxu0
        %3924 = vmatprep.mubr.bf16.mxu0 0
        %3925 = vmatmul.mubr.bf16.gmra.mrb[0].mxu0 %v3758
        %v3926 = vpop.f32.mrb[0].mxu0
        %v3927 = vadd.f32 0.0, %v3926
        %v3928 = vpop.f32.mrb[0].mxu0
        %v3929 = vpop.f32.mrb[0].mxu0
        %v3930 = vadd.f32 0.0, %v3929
        %v3931 = vpop.f32.mrb[0].mxu0
        %3932 = vmatprep.mubr.bf16.mxu0 0
        %3933 = vmatmul.mubr.bf16.gmra.mrb[0].mxu0 %v3759
        %v3934 = vpop.f32.mrb[0].mxu0
        %v3935 = vadd.f32 0.0, %v3934
        %v3936 = vpop.f32.mrb[0].mxu0
        %v3937 = vpop.f32.mrb[0].mxu0
        %v3938 = vadd.f32 0.0, %v3937
        %v3939 = vpop.f32.mrb[0].mxu0
        %3940 = vmatprep.mubr.bf16.mxu0 0
        %3941 = vmatmul.mubr.bf16.gmra.mrb[0].mxu0 %v3760
        %v3942 = vpop.f32.mrb[0].mxu0
        %v3943 = vadd.f32 0.0, %v3942
        %v3944 = vpop.f32.mrb[0].mxu0
        %v3945 = vpop.f32.mrb[0].mxu0
        %v3946 = vadd.f32 0.0, %v3945
        %v3947 = vpop.f32.mrb[0].mxu0
        %3948 = vmatprep.mubr.bf16.mxu0 0
        %3949 = vmatmul.mubr.bf16.gmra.mrb[0].mxu0 %v3761
        %v3950 = vpop.f32.mrb[0].mxu0
        %v3951 = vadd.f32 0.0, %v3950
        %v3952 = vpop.f32.mrb[0].mxu0
        %v3953 = vpop.f32.mrb[0].mxu0
        %v3954 = vadd.f32 0.0, %v3953
        %v3955 = vpop.f32.mrb[0].mxu0
        %3956 = vmatprep.mubr.bf16.mxu0 0
        %3957 = vmatmul.mubr.bf16.gmra.mrb[0].mxu0 %v3762
        %v3958 = vpop.f32.mrb[0].mxu0
        %v3959 = vadd.f32 0.0, %v3958
        %v3960 = vpop.f32.mrb[0].mxu0
        %v3961 = vpop.f32.mrb[0].mxu0
        %v3962 = vadd.f32 0.0, %v3961
        %v3963 = vpop.f32.mrb[0].mxu0
        %3964 = vmatprep.mubr.bf16.mxu0 0
        %3965 = vmatmul.mubr.bf16.gmra.mrb[0].mxu0 %v3763
        %v3966 = vpop.f32.mrb[0].mxu0
        %v3967 = vadd.f32 0.0, %v3966
        %v3968 = vpop.f32.mrb[0].mxu0
        %v3969 = vpop.f32.mrb[0].mxu0
        %v3970 = vadd.f32 0.0, %v3969
        %v3971 = vpop.f32.mrb[0].mxu0
        %3972 = vdwg.mxu0
        %3973 = vmatprep.subr.bf16.mxu0 0
        %3974 = vmatpush1.bf16.xpose.msra.mxu0 %v3547
        %3975 = vmatprep.subr.bf16.mxu0 0
        %3976 = vmatpush1.bf16.xpose.msra.mxu0 %v3548
        %3977 = vmatprep.subr.bf16.mxu0 0
        %3978 = vmatpush1.bf16.xpose.msra.mxu0 %v3549
        %3979 = vmatprep.subr.bf16.mxu0 0
        %3980 = vmatpush1.bf16.xpose.msra.mxu0 %v3550
        %3981 = vmatprep.subr.bf16.mxu0 0
        %3982 = vmatpush1.bf16.xpose.msra.mxu0 %v3551
        %3983 = vmatprep.subr.bf16.mxu0 0
        %3984 = vmatpush1.bf16.xpose.msra.mxu0 %v3552
        %3985 = vmatprep.subr.bf16.mxu0 0
        %3986 = vmatpush1.bf16.xpose.msra.mxu0 %v3553
        %3987 = vmatprep.subr.bf16.mxu0 0
        %3988 = vmatpush1.bf16.xpose.msra.mxu0 %v3554
        %3989 = vmatprep.subr.bf16.mxu0 0
        %3990 = vmatpush1.bf16.xpose.msra.mxu0 0
        %3991 = vmatprep.subr.bf16.mxu0 0
        %3992 = vmatpush1.bf16.xpose.msra.mxu0 0
        %3993 = vmatprep.subr.bf16.mxu0 0
        %3994 = vmatpush1.bf16.xpose.msra.mxu0 0
        %3995 = vmatprep.subr.bf16.mxu0 0
        %3996 = vmatpush1.bf16.xpose.msra.mxu0 0
        %3997 = vmatprep.subr.bf16.mxu0 0
        %3998 = vmatpush1.bf16.xpose.msra.mxu0 0
        %3999 = vmatprep.subr.bf16.mxu0 0
        %4000 = vmatpush1.bf16.xpose.msra.mxu0 0
        %4001 = vmatprep.subr.bf16.mxu0 0
        %4002 = vmatpush1.bf16.xpose.msra.mxu0 0
        %4003 = vmatprep.subr.bf16.mxu0 0
        %4004 = vmatpush1.bf16.xpose.msra.mxu0 0
        %4005 = vmatprep.mubr.bf16.mxu0 0
        %4006 = vmatmul.mubr.bf16.gmra.mrb[0].mxu0 %v3515
        %v4007 = vpop.f32.mrb[0].mxu0
        %v4008 = vadd.f32 %v3847, %v4007
        %v4009 = vpop.f32.mrb[0].mxu0
        %v4010 = vpop.f32.mrb[0].mxu0
        %v4011 = vadd.f32 %v3850, %v4010
        %v4012 = vpop.f32.mrb[0].mxu0
        %4013 = vmatprep.mubr.bf16.mxu0 0
        %4014 = vmatmul.mubr.bf16.gmra.mrb[0].mxu0 %v3516
        %v4015 = vpop.f32.mrb[0].mxu0
        %v4016 = vadd.f32 %v3855, %v4015
        %v4017 = vpop.f32.mrb[0].mxu0
        %v4018 = vpop.f32.mrb[0].mxu0
        %v4019 = vadd.f32 %v3858, %v4018
        %v4020 = vpop.f32.mrb[0].mxu0
        %4021 = vmatprep.mubr.bf16.mxu0 0
        %4022 = vmatmul.mubr.bf16.gmra.mrb[0].mxu0 %v3517
        %v4023 = vpop.f32.mrb[0].mxu0
        %v4024 = vadd.f32 %v3863, %v4023
        %v4025 = vpop.f32.mrb[0].mxu0
        %v4026 = vpop.f32.mrb[0].mxu0
        %v4027 = vadd.f32 %v3866, %v4026
        %v4028 = vpop.f32.mrb[0].mxu0
        %4029 = vmatprep.mubr.bf16.mxu0 0
        %4030 = vmatmul.mubr.bf16.gmra.mrb[0].mxu0 %v3518
        %v4031 = vpop.f32.mrb[0].mxu0
        %v4032 = vadd.f32 %v3871, %v4031
        %v4033 = vpop.f32.mrb[0].mxu0
        %v4034 = vpop.f32.mrb[0].mxu0
        %v4035 = vadd.f32 %v3874, %v4034
        %v4036 = vpop.f32.mrb[0].mxu0
        %4037 = vmatprep.mubr.bf16.mxu0 0
        %4038 = vmatmul.mubr.bf16.gmra.mrb[0].mxu0 %v3519
        %v4039 = vpop.f32.mrb[0].mxu0
        %v4040 = vadd.f32 %v3879, %v4039
        %v4041 = vpop.f32.mrb[0].mxu0
        %v4042 = vpop.f32.mrb[0].mxu0
        %v4043 = vadd.f32 %v3882, %v4042
        %v4044 = vpop.f32.mrb[0].mxu0
        %4045 = vmatprep.mubr.bf16.mxu0 0
        %4046 = vmatmul.mubr.bf16.gmra.mrb[0].mxu0 %v3520
        %v4047 = vpop.f32.mrb[0].mxu0
        %v4048 = vadd.f32 %v3887, %v4047
        %v4049 = vpop.f32.mrb[0].mxu0
        %v4050 = vpop.f32.mrb[0].mxu0
        %v4051 = vadd.f32 %v3890, %v4050
        %v4052 = vpop.f32.mrb[0].mxu0
        %4053 = vmatprep.mubr.bf16.mxu0 0
        %4054 = vmatmul.mubr.bf16.gmra.mrb[0].mxu0 %v3521
        %v4055 = vpop.f32.mrb[0].mxu0
        %v4056 = vadd.f32 %v3895, %v4055
        %v4057 = vpop.f32.mrb[0].mxu0
        %v4058 = vpop.f32.mrb[0].mxu0
        %v4059 = vadd.f32 %v3898, %v4058
        %v4060 = vpop.f32.mrb[0].mxu0
        %4061 = vmatprep.mubr.bf16.mxu0 0
        %4062 = vmatmul.mubr.bf16.gmra.mrb[0].mxu0 %v3522
        %v4063 = vpop.f32.mrb[0].mxu0
        %v4064 = vadd.f32 %v3903, %v4063
        %v4065 = vpop.f32.mrb[0].mxu0
        %v4066 = vpop.f32.mrb[0].mxu0
        %v4067 = vadd.f32 %v3906, %v4066
        %v4068 = vpop.f32.mrb[0].mxu0
        %4069 = vmatprep.mubr.bf16.mxu0 0
        %4070 = vmatmul.mubr.bf16.gmra.mrb[0].mxu0 %v3523
        %v4071 = vpop.f32.mrb[0].mxu0
        %v4072 = vadd.f32 %v3911, %v4071
        %v4073 = vpop.f32.mrb[0].mxu0
        %v4074 = vpop.f32.mrb[0].mxu0
        %v4075 = vadd.f32 %v3914, %v4074
        %v4076 = vpop.f32.mrb[0].mxu0
        %4077 = vmatprep.mubr.bf16.mxu0 0
        %4078 = vmatmul.mubr.bf16.gmra.mrb[0].mxu0 %v3524
        %v4079 = vpop.f32.mrb[0].mxu0
        %v4080 = vadd.f32 %v3919, %v4079
        %v4081 = vpop.f32.mrb[0].mxu0
        %v4082 = vpop.f32.mrb[0].mxu0
        %v4083 = vadd.f32 %v3922, %v4082
        %v4084 = vpop.f32.mrb[0].mxu0
        %4085 = vmatprep.mubr.bf16.mxu0 0
        %4086 = vmatmul.mubr.bf16.gmra.mrb[0].mxu0 %v3525
        %v4087 = vpop.f32.mrb[0].mxu0
        %v4088 = vadd.f32 %v3927, %v4087
        %v4089 = vpop.f32.mrb[0].mxu0
        %v4090 = vpop.f32.mrb[0].mxu0
        %v4091 = vadd.f32 %v3930, %v4090
        %v4092 = vpop.f32.mrb[0].mxu0
        %4093 = vmatprep.mubr.bf16.mxu0 0
        %4094 = vmatmul.mubr.bf16.gmra.mrb[0].mxu0 %v3526
        %v4095 = vpop.f32.mrb[0].mxu0
        %v4096 = vadd.f32 %v3935, %v4095
        %v4097 = vpop.f32.mrb[0].mxu0
        %v4098 = vpop.f32.mrb[0].mxu0
        %v4099 = vadd.f32 %v3938, %v4098
        %v4100 = vpop.f32.mrb[0].mxu0
        %4101 = vmatprep.mubr.bf16.mxu0 0
        %4102 = vmatmul.mubr.bf16.gmra.mrb[0].mxu0 %v3527
        %v4103 = vpop.f32.mrb[0].mxu0
        %v4104 = vadd.f32 %v3943, %v4103
        %v4105 = vpop.f32.mrb[0].mxu0
        %v4106 = vpop.f32.mrb[0].mxu0
        %v4107 = vadd.f32 %v3946, %v4106
        %v4108 = vpop.f32.mrb[0].mxu0
        %4109 = vmatprep.mubr.bf16.mxu0 0
        %4110 = vmatmul.mubr.bf16.gmra.mrb[0].mxu0 %v3528
        %v4111 = vpop.f32.mrb[0].mxu0
        %v4112 = vadd.f32 %v3951, %v4111
        %v4113 = vpop.f32.mrb[0].mxu0
        %v4114 = vpop.f32.mrb[0].mxu0
        %v4115 = vadd.f32 %v3954, %v4114
        %v4116 = vpop.f32.mrb[0].mxu0
        %4117 = vmatprep.mubr.bf16.mxu0 0
        %4118 = vmatmul.mubr.bf16.gmra.mrb[0].mxu0 %v3529
        %v4119 = vpop.f32.mrb[0].mxu0
        %v4120 = vadd.f32 %v3959, %v4119
        %v4121 = vpop.f32.mrb[0].mxu0
        %v4122 = vpop.f32.mrb[0].mxu0
        %v4123 = vadd.f32 %v3962, %v4122
        %v4124 = vpop.f32.mrb[0].mxu0
        %4125 = vmatprep.mubr.bf16.mxu0 0
        %4126 = vmatmul.mubr.bf16.gmra.mrb[0].mxu0 %v3530
        %v4127 = vpop.f32.mrb[0].mxu0
        %v4128 = vadd.f32 %v3967, %v4127
        %v4129 = vpop.f32.mrb[0].mxu0
        %v4130 = vpop.f32.mrb[0].mxu0
        %v4131 = vadd.f32 %v3970, %v4130
        %v4132 = vpop.f32.mrb[0].mxu0
        %4133 = vdwg.mxu0
        %4134 = vxpose.xlu0.c.b16.start [1/8] %v3796, 128
        %4135 = vxpose.xlu0.c.b16.cont [2/8] %v3797, 128
        %4136 = vxpose.xlu0.c.b16.cont [3/8] %v3798, 128
        %4137 = vxpose.xlu0.c.b16.cont [4/8] %v3799, 128
        %4138 = vxpose.xlu0.c.b16.cont [5/8] %v3800, 128
        %4139 = vxpose.xlu0.c.b16.cont [6/8] %v3801, 128
        %4140 = vxpose.xlu0.c.b16.cont [7/8] %v3802, 128
        %4141 = vxpose.xlu0.c.b16.end [8/8] %v3803, 128
        %v4142 = vpop.trf.xlu0
        %v4143 = vpop.trf.xlu0
        %v4144 = vpop.trf.xlu0
        %v4145 = vpop.trf.xlu0
        %v4146 = vpop.trf.xlu0
        %v4147 = vpop.trf.xlu0
        %v4148 = vpop.trf.xlu0
        %v4149 = vpop.trf.xlu0
        %4150 = vmatprep.subr.bf16.mxu0 0
        %4151 = vmatpush1.bf16.msra.mxu0 %v3331
        %4152 = vmatprep.subr.bf16.mxu0 0
        %4153 = vmatpush1.bf16.msra.mxu0 %v3332
        %4154 = vmatprep.subr.bf16.mxu0 0
        %4155 = vmatpush1.bf16.msra.mxu0 %v3333
        %4156 = vmatprep.subr.bf16.mxu0 0
        %4157 = vmatpush1.bf16.msra.mxu0 %v3334
        %4158 = vmatprep.subr.bf16.mxu0 0
        %4159 = vmatpush1.bf16.msra.mxu0 %v3335
        %4160 = vmatprep.subr.bf16.mxu0 0
        %4161 = vmatpush1.bf16.msra.mxu0 %v3336
        %4162 = vmatprep.subr.bf16.mxu0 0
        %4163 = vmatpush1.bf16.msra.mxu0 %v3337
        %4164 = vmatprep.subr.bf16.mxu0 0
        %4165 = vmatpush1.bf16.msra.mxu0 %v3338
        %4166 = vmatprep.subr.bf16.mxu0 0
        %4167 = vmatpush1.bf16.msra.mxu0 0
        %4168 = vmatprep.subr.bf16.mxu0 0
        %4169 = vmatpush1.bf16.msra.mxu0 0
        %4170 = vmatprep.subr.bf16.mxu0 0
        %4171 = vmatpush1.bf16.msra.mxu0 0
        %4172 = vmatprep.subr.bf16.mxu0 0
        %4173 = vmatpush1.bf16.msra.mxu0 0
        %4174 = vmatprep.subr.bf16.mxu0 0
        %4175 = vmatpush1.bf16.msra.mxu0 0
        %4176 = vmatprep.subr.bf16.mxu0 0
        %4177 = vmatpush1.bf16.msra.mxu0 0
        %4178 = vmatprep.subr.bf16.mxu0 0
        %4179 = vmatpush1.bf16.msra.mxu0 0
        %4180 = vmatprep.subr.bf16.mxu0 0
        %4181 = vmatpush1.bf16.msra.mxu0 0
        %4182 = vmatprep.mubr.bf16.mxu0 0
        %4183 = vmatmul.mubr.bf16.gmra.mrb[0].mxu0 %v4142
        %v4184 = vpop.f32.mrb[0].mxu0
        %v4185 = vadd.f32 0.0, %v4184
        %v4186 = vpop.f32.mrb[0].mxu0
        %v4187 = vpop.f32.mrb[0].mxu0
        %v4188 = vadd.f32 0.0, %v4187
        %v4189 = vpop.f32.mrb[0].mxu0
        %4190 = vmatprep.mubr.bf16.mxu0 0
        %4191 = vmatmul.mubr.bf16.gmra.mrb[0].mxu0 %v4143
        %v4192 = vpop.f32.mrb[0].mxu0
        %v4193 = vadd.f32 0.0, %v4192
        %v4194 = vpop.f32.mrb[0].mxu0
        %v4195 = vpop.f32.mrb[0].mxu0
        %v4196 = vadd.f32 0.0, %v4195
        %v4197 = vpop.f32.mrb[0].mxu0
        %4198 = vmatprep.mubr.bf16.mxu0 0
        %4199 = vmatmul.mubr.bf16.gmra.mrb[0].mxu0 %v4144
        %v4200 = vpop.f32.mrb[0].mxu0
        %v4201 = vadd.f32 0.0, %v4200
        %v4202 = vpop.f32.mrb[0].mxu0
        %v4203 = vpop.f32.mrb[0].mxu0
        %v4204 = vadd.f32 0.0, %v4203
        %v4205 = vpop.f32.mrb[0].mxu0
        %4206 = vmatprep.mubr.bf16.mxu0 0
        %4207 = vmatmul.mubr.bf16.gmra.mrb[0].mxu0 %v4145
        %v4208 = vpop.f32.mrb[0].mxu0
        %v4209 = vadd.f32 0.0, %v4208
        %v4210 = vpop.f32.mrb[0].mxu0
        %v4211 = vpop.f32.mrb[0].mxu0
        %v4212 = vadd.f32 0.0, %v4211
        %v4213 = vpop.f32.mrb[0].mxu0
        %4214 = vmatprep.mubr.bf16.mxu0 0
        %4215 = vmatmul.mubr.bf16.gmra.mrb[0].mxu0 %v4146
        %v4216 = vpop.f32.mrb[0].mxu0
        %v4217 = vadd.f32 0.0, %v4216
        %v4218 = vpop.f32.mrb[0].mxu0
        %v4219 = vpop.f32.mrb[0].mxu0
        %v4220 = vadd.f32 0.0, %v4219
        %v4221 = vpop.f32.mrb[0].mxu0
        %4222 = vmatprep.mubr.bf16.mxu0 0
        %4223 = vmatmul.mubr.bf16.gmra.mrb[0].mxu0 %v4147
        %v4224 = vpop.f32.mrb[0].mxu0
        %v4225 = vadd.f32 0.0, %v4224
        %v4226 = vpop.f32.mrb[0].mxu0
        %v4227 = vpop.f32.mrb[0].mxu0
        %v4228 = vadd.f32 0.0, %v4227
        %v4229 = vpop.f32.mrb[0].mxu0
        %4230 = vmatprep.mubr.bf16.mxu0 0
        %4231 = vmatmul.mubr.bf16.gmra.mrb[0].mxu0 %v4148
        %v4232 = vpop.f32.mrb[0].mxu0
        %v4233 = vadd.f32 0.0, %v4232
        %v4234 = vpop.f32.mrb[0].mxu0
        %v4235 = vpop.f32.mrb[0].mxu0
        %v4236 = vadd.f32 0.0, %v4235
        %v4237 = vpop.f32.mrb[0].mxu0
        %4238 = vmatprep.mubr.bf16.mxu0 0
        %4239 = vmatmul.mubr.bf16.gmra.mrb[0].mxu0 %v4149
        %v4240 = vpop.f32.mrb[0].mxu0
        %v4241 = vadd.f32 0.0, %v4240
        %v4242 = vpop.f32.mrb[0].mxu0
        %v4243 = vpop.f32.mrb[0].mxu0
        %v4244 = vadd.f32 0.0, %v4243
        %v4245 = vpop.f32.mrb[0].mxu0
        %4246 = vdwg.mxu0
        %v4247 = vmul.f32 %v3531, %v3314
        %v4248 = vmul.f32 %v3532, %v3314
        %v4249 = vmul.f32 %v3533, %v3314
        %v4250 = vmul.f32 %v3534, %v3314
        %v4251 = vmul.f32 %v3535, %v3314
        %v4252 = vmul.f32 %v3536, %v3314
        %v4253 = vmul.f32 %v3537, %v3314
        %v4254 = vmul.f32 %v3538, %v3314
        %v4255 = vmul.f32 %v3539, %v3314
        %v4256 = vmul.f32 %v3540, %v3314
        %v4257 = vmul.f32 %v3541, %v3314
        %v4258 = vmul.f32 %v3542, %v3314
        %v4259 = vmul.f32 %v3543, %v3314
        %v4260 = vmul.f32 %v3544, %v3314
        %v4261 = vmul.f32 %v3545, %v3314
        %v4262 = vmul.f32 %v3546, %v3314
        %v4263 = vadd.f32 %v4247, %v4185
        %v4264 = vadd.f32 %v4248, %v4188
        %v4265 = vadd.f32 %v4249, %v4193
        %v4266 = vadd.f32 %v4250, %v4196
        %v4267 = vadd.f32 %v4251, %v4201
        %v4268 = vadd.f32 %v4252, %v4204
        %v4269 = vadd.f32 %v4253, %v4209
        %v4270 = vadd.f32 %v4254, %v4212
        %v4271 = vadd.f32 %v4255, %v4217
        %v4272 = vadd.f32 %v4256, %v4220
        %v4273 = vadd.f32 %v4257, %v4225
        %v4274 = vadd.f32 %v4258, %v4228
        %v4275 = vadd.f32 %v4259, %v4233
        %v4276 = vadd.f32 %v4260, %v4236
        %v4277 = vadd.f32 %v4261, %v4241
        %v4278 = vadd.f32 %v4262, %v4244
        %4279 = vst [vmem:[#allocation2] sm:$0xff] %v4263
        %4280 = vst [vmem:[#allocation2 + $0x8] sm:$0xff] %v4264
        %4281 = vst [vmem:[#allocation2 + $0x10] sm:$0xff] %v4265
        %4282 = vst [vmem:[#allocation2 + $0x18] sm:$0xff] %v4266
        %4283 = vst [vmem:[#allocation2 + $0x20] sm:$0xff] %v4267
        %4284 = vst [vmem:[#allocation2 + $0x28] sm:$0xff] %v4268
        %4285 = vst [vmem:[#allocation2 + $0x30] sm:$0xff] %v4269
        %4286 = vst [vmem:[#allocation2 + $0x38] sm:$0xff] %v4270
        %4287 = vst [vmem:[#allocation2 + $0x40] sm:$0xff] %v4271
        %4288 = vst [vmem:[#allocation2 + $0x48] sm:$0xff] %v4272
        %4289 = vst [vmem:[#allocation2 + $0x50] sm:$0xff] %v4273
        %4290 = vst [vmem:[#allocation2 + $0x58] sm:$0xff] %v4274
        %4291 = vst [vmem:[#allocation2 + $0x60] sm:$0xff] %v4275
        %4292 = vst [vmem:[#allocation2 + $0x68] sm:$0xff] %v4276
        %4293 = vst [vmem:[#allocation2 + $0x70] sm:$0xff] %v4277
        %4294 = vst [vmem:[#allocation2 + $0x78] sm:$0xff] %v4278
        %v4295 = vmul.f32 %v4008, %v4008
        %v4296 = vmul.f32 %v4011, %v4011
        %v4297 = vmul.f32 %v4016, %v4016
        %v4298 = vmul.f32 %v4019, %v4019
        %v4299 = vmul.f32 %v4024, %v4024
        %v4300 = vmul.f32 %v4027, %v4027
        %v4301 = vmul.f32 %v4032, %v4032
        %v4302 = vmul.f32 %v4035, %v4035
        %v4303 = vmul.f32 %v4040, %v4040
        %v4304 = vmul.f32 %v4043, %v4043
        %v4305 = vmul.f32 %v4048, %v4048
        %v4306 = vmul.f32 %v4051, %v4051
        %v4307 = vmul.f32 %v4056, %v4056
        %v4308 = vmul.f32 %v4059, %v4059
        %v4309 = vmul.f32 %v4064, %v4064
        %v4310 = vmul.f32 %v4067, %v4067
        %v4311 = vmul.f32 %v4072, %v4072
        %v4312 = vmul.f32 %v4075, %v4075
        %v4313 = vmul.f32 %v4080, %v4080
        %v4314 = vmul.f32 %v4083, %v4083
        %v4315 = vmul.f32 %v4088, %v4088
        %v4316 = vmul.f32 %v4091, %v4091
        %v4317 = vmul.f32 %v4096, %v4096
        %v4318 = vmul.f32 %v4099, %v4099
        %v4319 = vmul.f32 %v4104, %v4104
        %v4320 = vmul.f32 %v4107, %v4107
        %v4321 = vmul.f32 %v4112, %v4112
        %v4322 = vmul.f32 %v4115, %v4115
        %v4323 = vmul.f32 %v4120, %v4120
        %v4324 = vmul.f32 %v4123, %v4123
        %v4325 = vmul.f32 %v4128, %v4128
        %v4326 = vmul.f32 %v4131, %v4131
        %4327 = vadd.xlane.f32.xlu0 %v4295
        %v4328 = vpop.xlane.xlu0 %4327
        %4329 = vadd.xlane.f32.xlu0 %v4296
        %v4330 = vpop.xlane.xlu0 %4329
        %4331 = vadd.xlane.f32.xlu0 %v4297
        %v4332 = vpop.xlane.xlu0 %4331
        %4333 = vadd.xlane.f32.xlu0 %v4298
        %v4334 = vpop.xlane.xlu0 %4333
        %4335 = vadd.xlane.f32.xlu0 %v4299
        %v4336 = vpop.xlane.xlu0 %4335
        %4337 = vadd.xlane.f32.xlu0 %v4300
        %v4338 = vpop.xlane.xlu0 %4337
        %4339 = vadd.xlane.f32.xlu0 %v4301
        %v4340 = vpop.xlane.xlu0 %4339
        %4341 = vadd.xlane.f32.xlu0 %v4302
        %v4342 = vpop.xlane.xlu0 %4341
        %4343 = vadd.xlane.f32.xlu0 %v4303
        %v4344 = vpop.xlane.xlu0 %4343
        %4345 = vadd.xlane.f32.xlu0 %v4304
        %v4346 = vpop.xlane.xlu0 %4345
        %4347 = vadd.xlane.f32.xlu0 %v4305
        %v4348 = vpop.xlane.xlu0 %4347
        %4349 = vadd.xlane.f32.xlu0 %v4306
        %v4350 = vpop.xlane.xlu0 %4349
        %4351 = vadd.xlane.f32.xlu0 %v4307
        %v4352 = vpop.xlane.xlu0 %4351
        %4353 = vadd.xlane.f32.xlu0 %v4308
        %v4354 = vpop.xlane.xlu0 %4353
        %4355 = vadd.xlane.f32.xlu0 %v4309
        %v4356 = vpop.xlane.xlu0 %4355
        %4357 = vadd.xlane.f32.xlu0 %v4310
        %v4358 = vpop.xlane.xlu0 %4357
        %4359 = vadd.xlane.f32.xlu0 %v4311
        %v4360 = vpop.xlane.xlu0 %4359
        %4361 = vadd.xlane.f32.xlu0 %v4312
        %v4362 = vpop.xlane.xlu0 %4361
        %4363 = vadd.xlane.f32.xlu0 %v4313
        %v4364 = vpop.xlane.xlu0 %4363
        %4365 = vadd.xlane.f32.xlu0 %v4314
        %v4366 = vpop.xlane.xlu0 %4365
        %4367 = vadd.xlane.f32.xlu0 %v4315
        %v4368 = vpop.xlane.xlu0 %4367
        %4369 = vadd.xlane.f32.xlu0 %v4316
        %v4370 = vpop.xlane.xlu0 %4369
        %4371 = vadd.xlane.f32.xlu0 %v4317
        %v4372 = vpop.xlane.xlu0 %4371
        %4373 = vadd.xlane.f32.xlu0 %v4318
        %v4374 = vpop.xlane.xlu0 %4373
        %4375 = vadd.xlane.f32.xlu0 %v4319
        %v4376 = vpop.xlane.xlu0 %4375
        %4377 = vadd.xlane.f32.xlu0 %v4320
        %v4378 = vpop.xlane.xlu0 %4377
        %4379 = vadd.xlane.f32.xlu0 %v4321
        %v4380 = vpop.xlane.xlu0 %4379
        %4381 = vadd.xlane.f32.xlu0 %v4322
        %v4382 = vpop.xlane.xlu0 %4381
        %4383 = vadd.xlane.f32.xlu0 %v4323
        %v4384 = vpop.xlane.xlu0 %4383
        %4385 = vadd.xlane.f32.xlu0 %v4324
        %v4386 = vpop.xlane.xlu0 %4385
        %4387 = vadd.xlane.f32.xlu0 %v4325
        %v4388 = vpop.xlane.xlu0 %4387
        %4389 = vadd.xlane.f32.xlu0 %v4326
        %v4390 = vpop.xlane.xlu0 %4389
        %v4391 = vmul.f32 %v4328, %v2645
        %v4392 = vmul.f32 %v4330, %v2645
        %v4393 = vmul.f32 %v4332, %v2645
        %v4394 = vmul.f32 %v4334, %v2645
        %v4395 = vmul.f32 %v4336, %v2645
        %v4396 = vmul.f32 %v4338, %v2645
        %v4397 = vmul.f32 %v4340, %v2645
        %v4398 = vmul.f32 %v4342, %v2645
        %v4399 = vmul.f32 %v4344, %v2645
        %v4400 = vmul.f32 %v4346, %v2645
        %v4401 = vmul.f32 %v4348, %v2645
        %v4402 = vmul.f32 %v4350, %v2645
        %v4403 = vmul.f32 %v4352, %v2645
        %v4404 = vmul.f32 %v4354, %v2645
        %v4405 = vmul.f32 %v4356, %v2645
        %v4406 = vmul.f32 %v4358, %v2645
        %v4407 = vmul.f32 %v4360, %v2645
        %v4408 = vmul.f32 %v4362, %v2645
        %v4409 = vmul.f32 %v4364, %v2645
        %v4410 = vmul.f32 %v4366, %v2645
        %v4411 = vmul.f32 %v4368, %v2645
        %v4412 = vmul.f32 %v4370, %v2645
        %v4413 = vmul.f32 %v4372, %v2645
        %v4414 = vmul.f32 %v4374, %v2645
        %v4415 = vmul.f32 %v4376, %v2645
        %v4416 = vmul.f32 %v4378, %v2645
        %v4417 = vmul.f32 %v4380, %v2645
        %v4418 = vmul.f32 %v4382, %v2645
        %v4419 = vmul.f32 %v4384, %v2645
        %v4420 = vmul.f32 %v4386, %v2645
        %v4421 = vmul.f32 %v4388, %v2645
        %v4422 = vmul.f32 %v4390, %v2645
        %v4423 = vadd.f32 %v4391, 1e-06
        %v4424 = vadd.f32 %v4392, 1e-06
        %v4425 = vadd.f32 %v4393, 1e-06
        %v4426 = vadd.f32 %v4394, 1e-06
        %v4427 = vadd.f32 %v4395, 1e-06
        %v4428 = vadd.f32 %v4396, 1e-06
        %v4429 = vadd.f32 %v4397, 1e-06
        %v4430 = vadd.f32 %v4398, 1e-06
        %v4431 = vadd.f32 %v4399, 1e-06
        %v4432 = vadd.f32 %v4400, 1e-06
        %v4433 = vadd.f32 %v4401, 1e-06
        %v4434 = vadd.f32 %v4402, 1e-06
        %v4435 = vadd.f32 %v4403, 1e-06
        %v4436 = vadd.f32 %v4404, 1e-06
        %v4437 = vadd.f32 %v4405, 1e-06
        %v4438 = vadd.f32 %v4406, 1e-06
        %v4439 = vadd.f32 %v4407, 1e-06
        %v4440 = vadd.f32 %v4408, 1e-06
        %v4441 = vadd.f32 %v4409, 1e-06
        %v4442 = vadd.f32 %v4410, 1e-06
        %v4443 = vadd.f32 %v4411, 1e-06
        %v4444 = vadd.f32 %v4412, 1e-06
        %v4445 = vadd.f32 %v4413, 1e-06
        %v4446 = vadd.f32 %v4414, 1e-06
        %v4447 = vadd.f32 %v4415, 1e-06
        %v4448 = vadd.f32 %v4416, 1e-06
        %v4449 = vadd.f32 %v4417, 1e-06
        %v4450 = vadd.f32 %v4418, 1e-06
        %v4451 = vadd.f32 %v4419, 1e-06
        %v4452 = vadd.f32 %v4420, 1e-06
        %v4453 = vadd.f32 %v4421, 1e-06
        %v4454 = vadd.f32 %v4422, 1e-06
        %v4455 = vrsqrt.pop %v4423
        %v4456 = vrsqrt.pop %v4424
        %v4457 = vrsqrt.pop %v4425
        %v4458 = vrsqrt.pop %v4426
        %v4459 = vrsqrt.pop %v4427
        %v4460 = vrsqrt.pop %v4428
        %v4461 = vrsqrt.pop %v4429
        %v4462 = vrsqrt.pop %v4430
        %v4463 = vrsqrt.pop %v4431
        %v4464 = vrsqrt.pop %v4432
        %v4465 = vrsqrt.pop %v4433
        %v4466 = vrsqrt.pop %v4434
        %v4467 = vrsqrt.pop %v4435
        %v4468 = vrsqrt.pop %v4436
        %v4469 = vrsqrt.pop %v4437
        %v4470 = vrsqrt.pop %v4438
        %v4471 = vrsqrt.pop %v4439
        %v4472 = vrsqrt.pop %v4440
        %v4473 = vrsqrt.pop %v4441
        %v4474 = vrsqrt.pop %v4442
        %v4475 = vrsqrt.pop %v4443
        %v4476 = vrsqrt.pop %v4444
        %v4477 = vrsqrt.pop %v4445
        %v4478 = vrsqrt.pop %v4446
        %v4479 = vrsqrt.pop %v4447
        %v4480 = vrsqrt.pop %v4448
        %v4481 = vrsqrt.pop %v4449
        %v4482 = vrsqrt.pop %v4450
        %v4483 = vrsqrt.pop %v4451
        %v4484 = vrsqrt.pop %v4452
        %v4485 = vrsqrt.pop %v4453
        %v4486 = vrsqrt.pop %v4454
        %v4487 = vmul.f32 %v4008, %v4455
        %v4488 = vmul.f32 %v4011, %v4456
        %v4489 = vmul.f32 %v4016, %v4457
        %v4490 = vmul.f32 %v4019, %v4458
        %v4491 = vmul.f32 %v4024, %v4459
        %v4492 = vmul.f32 %v4027, %v4460
        %v4493 = vmul.f32 %v4032, %v4461
        %v4494 = vmul.f32 %v4035, %v4462
        %v4495 = vmul.f32 %v4040, %v4463
        %v4496 = vmul.f32 %v4043, %v4464
        %v4497 = vmul.f32 %v4048, %v4465
        %v4498 = vmul.f32 %v4051, %v4466
        %v4499 = vmul.f32 %v4056, %v4467
        %v4500 = vmul.f32 %v4059, %v4468
        %v4501 = vmul.f32 %v4064, %v4469
        %v4502 = vmul.f32 %v4067, %v4470
        %v4503 = vmul.f32 %v4072, %v4471
        %v4504 = vmul.f32 %v4075, %v4472
        %v4505 = vmul.f32 %v4080, %v4473
        %v4506 = vmul.f32 %v4083, %v4474
        %v4507 = vmul.f32 %v4088, %v4475
        %v4508 = vmul.f32 %v4091, %v4476
        %v4509 = vmul.f32 %v4096, %v4477
        %v4510 = vmul.f32 %v4099, %v4478
        %v4511 = vmul.f32 %v4104, %v4479
        %v4512 = vmul.f32 %v4107, %v4480
        %v4513 = vmul.f32 %v4112, %v4481
        %v4514 = vmul.f32 %v4115, %v4482
        %v4515 = vmul.f32 %v4120, %v4483
        %v4516 = vmul.f32 %v4123, %v4484
        %v4517 = vmul.f32 %v4128, %v4485
        %v4518 = vmul.f32 %v4131, %v4486
        %v4519 = vpack.c.bf16 %v4488, %v4487
        %v4520 = vpack.c.bf16 %v4490, %v4489
        %v4521 = vpack.c.bf16 %v4492, %v4491
        %v4522 = vpack.c.bf16 %v4494, %v4493
        %v4523 = vpack.c.bf16 %v4496, %v4495
        %v4524 = vpack.c.bf16 %v4498, %v4497
        %v4525 = vpack.c.bf16 %v4500, %v4499
        %v4526 = vpack.c.bf16 %v4502, %v4501
        %4527 = vst [vmem:[%s964 + $0x80] sm:$0xff] %v4519
        %4528 = vst [vmem:[%s964 + $0x90] sm:$0xff] %v4520
        %4529 = vst [vmem:[%s964 + $0xa0] sm:$0xff] %v4521
        %4530 = vst [vmem:[%s964 + $0xb0] sm:$0xff] %v4522
        %4531 = vst [vmem:[%s964 + $0xc0] sm:$0xff] %v4523
        %4532 = vst [vmem:[%s964 + $0xd0] sm:$0xff] %v4524
        %4533 = vst [vmem:[%s964 + $0xe0] sm:$0xff] %v4525
        %4534 = vst [vmem:[%s964 + $0xf0] sm:$0xff] %v4526
        %v4535 = vpack.c.bf16 %v4504, %v4503
        %v4536 = vpack.c.bf16 %v4506, %v4505
        %v4537 = vpack.c.bf16 %v4508, %v4507
        %v4538 = vpack.c.bf16 %v4510, %v4509
        %v4539 = vpack.c.bf16 %v4512, %v4511
        %v4540 = vpack.c.bf16 %v4514, %v4513
        %v4541 = vpack.c.bf16 %v4516, %v4515
        %v4542 = vpack.c.bf16 %v4518, %v4517
        %4543 = vst [vmem:[%s964 + $0x88] sm:$0xff] %v4535
        %4544 = vst [vmem:[%s964 + $0x98] sm:$0xff] %v4536
        %4545 = vst [vmem:[%s964 + $0xa8] sm:$0xff] %v4537
        %4546 = vst [vmem:[%s964 + $0xb8] sm:$0xff] %v4538
        %4547 = vst [vmem:[%s964 + $0xc8] sm:$0xff] %v4539
        %4548 = vst [vmem:[%s964 + $0xd8] sm:$0xff] %v4540
        %4549 = vst [vmem:[%s964 + $0xe8] sm:$0xff] %v4541
        %4550 = vst [vmem:[%s964 + $0xf8] sm:$0xff] %v4542
        %s4551 = sand.u32 %s166, 1
        %s4552 = sand.u32 %s166, 1
        %s4553 = smul.addr %s4552, 256
        %s4554 = scalar_lea.vmem [#allocation7], %s4553
        // Predicated region
        $region202: #{_lambda_.1} parent=180 // pred_check
          %p4555 = pneg %p176
        $region203: #{_lambda_.1} parent=180 // pred_check_branch
          %4557 = sbr.rel (%p4555) target = $region205
        $region204: #{_lambda_.1} parent=180 // pred_region
          %s4558 = smul.u32 16, %s22
          %s4559 = smul.u32 2, %s21
          %s4560 = smul.addr %s4558, 4
          %s4561 = sadd.s32 %s4559, %s4560
          %s4562 = smul.addr %s20, 128
          %s4563 = sadd.s32 %s4561, %s4562
          %s4564 = smul.addr %s4563, 8
          %s4565 = scalar_lea.vmem %s4, %s4564
          // Predicated region
          $region206: #{_lambda_.1} parent=204 // pred_check
            _
          $region207: #{_lambda_.1} parent=204 // pred_check_branch
            %4567 = sbr.rel (0) target = $region209
          $region208: #{_lambda_.1} parent=204 // pred_region
            // Predicated region
            $region210: #{_lambda_.1} parent=208 // pred_check
              _
            $region211: #{_lambda_.1} parent=208 // pred_check_branch
              %4569 = sbr.rel (0) target = $region213
            $region212: #{_lambda_.1} parent=208 // pred_region
              loop: start=0, step=1, limit=1
              $region214: #{_lambda_.1} parent=212 // loop_pre_header
                _
              $region215: #{_lambda_.1} parent=212 // loop_header
                %s4571 = sphi 0, %s4575
                %p4572 = scmp.ge.s32.totalorder %s4571, 1
                %s4576 = sphi %s4554, %s4554
                %s4577 = sphi %s4565, %s4565
              $region216: #{_lambda_.1} parent=212 // loop_header_branch
                %4574 = sbr.rel (%p4572) target = $region220
              $region217: #{_lambda_.1} parent=212 // loop_body
                %v4578 = vld [vmem:[%s4576] sm:$0xff]
                %4579 = vst [vmem:[%s4577] sm:$0xff] %v4578
                %v4580 = vld [vmem:[%s4576 + $0x8] sm:$0xff]
                %4581 = vst [vmem:[%s4577 + $0x8] sm:$0xff] %v4580
                %v4582 = vld [vmem:[%s4576 + $0x10] sm:$0xff]
                %4583 = vst [vmem:[%s4577 + $0x20] sm:$0xff] %v4582
                %v4584 = vld [vmem:[%s4576 + $0x18] sm:$0xff]
                %4585 = vst [vmem:[%s4577 + $0x28] sm:$0xff] %v4584
                %v4586 = vld [vmem:[%s4576 + $0x20] sm:$0xff]
                %4587 = vst [vmem:[%s4577 + $0x40] sm:$0xff] %v4586
                %v4588 = vld [vmem:[%s4576 + $0x28] sm:$0xff]
                %4589 = vst [vmem:[%s4577 + $0x48] sm:$0xff] %v4588
                %v4590 = vld [vmem:[%s4576 + $0x30] sm:$0xff]
                %4591 = vst [vmem:[%s4577 + $0x60] sm:$0xff] %v4590
                %v4592 = vld [vmem:[%s4576 + $0x38] sm:$0xff]
                %4593 = vst [vmem:[%s4577 + $0x68] sm:$0xff] %v4592
                %v4594 = vld [vmem:[%s4576 + $0x40] sm:$0xff]
                %4595 = vst [vmem:[%s4577 + $0x80] sm:$0xff] %v4594
                %v4596 = vld [vmem:[%s4576 + $0x48] sm:$0xff]
                %4597 = vst [vmem:[%s4577 + $0x88] sm:$0xff] %v4596
                %v4598 = vld [vmem:[%s4576 + $0x50] sm:$0xff]
                %4599 = vst [vmem:[%s4577 + $0xa0] sm:$0xff] %v4598
                %v4600 = vld [vmem:[%s4576 + $0x58] sm:$0xff]
                %4601 = vst [vmem:[%s4577 + $0xa8] sm:$0xff] %v4600
                %v4602 = vld [vmem:[%s4576 + $0x60] sm:$0xff]
                %4603 = vst [vmem:[%s4577 + $0xc0] sm:$0xff] %v4602
                %v4604 = vld [vmem:[%s4576 + $0x68] sm:$0xff]
                %4605 = vst [vmem:[%s4577 + $0xc8] sm:$0xff] %v4604
                %v4606 = vld [vmem:[%s4576 + $0x70] sm:$0xff]
                %4607 = vst [vmem:[%s4577 + $0xe0] sm:$0xff] %v4606
                %v4608 = vld [vmem:[%s4576 + $0x78] sm:$0xff]
                %4609 = vst [vmem:[%s4577 + $0xe8] sm:$0xff] %v4608
                %v4610 = vld [vmem:[%s4576 + $0x80] sm:$0xff]
                %4611 = vst [vmem:[%s4577 + $0x100] sm:$0xff] %v4610
                %v4612 = vld [vmem:[%s4576 + $0x88] sm:$0xff]
                %4613 = vst [vmem:[%s4577 + $0x108] sm:$0xff] %v4612
                %v4614 = vld [vmem:[%s4576 + $0x90] sm:$0xff]
                %4615 = vst [vmem:[%s4577 + $0x120] sm:$0xff] %v4614
                %v4616 = vld [vmem:[%s4576 + $0x98] sm:$0xff]
                %4617 = vst [vmem:[%s4577 + $0x128] sm:$0xff] %v4616
                %v4618 = vld [vmem:[%s4576 + $0xa0] sm:$0xff]
                %4619 = vst [vmem:[%s4577 + $0x140] sm:$0xff] %v4618
                %v4620 = vld [vmem:[%s4576 + $0xa8] sm:$0xff]
                %4621 = vst [vmem:[%s4577 + $0x148] sm:$0xff] %v4620
                %v4622 = vld [vmem:[%s4576 + $0xb0] sm:$0xff]
                %4623 = vst [vmem:[%s4577 + $0x160] sm:$0xff] %v4622
                %v4624 = vld [vmem:[%s4576 + $0xb8] sm:$0xff]
                %4625 = vst [vmem:[%s4577 + $0x168] sm:$0xff] %v4624
                %v4626 = vld [vmem:[%s4576 + $0xc0] sm:$0xff]
                %4627 = vst [vmem:[%s4577 + $0x180] sm:$0xff] %v4626
                %v4628 = vld [vmem:[%s4576 + $0xc8] sm:$0xff]
                %4629 = vst [vmem:[%s4577 + $0x188] sm:$0xff] %v4628
                %v4630 = vld [vmem:[%s4576 + $0xd0] sm:$0xff]
                %4631 = vst [vmem:[%s4577 + $0x1a0] sm:$0xff] %v4630
                %v4632 = vld [vmem:[%s4576 + $0xd8] sm:$0xff]
                %4633 = vst [vmem:[%s4577 + $0x1a8] sm:$0xff] %v4632
                %v4634 = vld [vmem:[%s4576 + $0xe0] sm:$0xff]
                %4635 = vst [vmem:[%s4577 + $0x1c0] sm:$0xff] %v4634
                %v4636 = vld [vmem:[%s4576 + $0xe8] sm:$0xff]
                %4637 = vst [vmem:[%s4577 + $0x1c8] sm:$0xff] %v4636
                %v4638 = vld [vmem:[%s4576 + $0xf0] sm:$0xff]
                %4639 = vst [vmem:[%s4577 + $0x1e0] sm:$0xff] %v4638
                %v4640 = vld [vmem:[%s4576 + $0xf8] sm:$0xff]
                %4641 = vst [vmem:[%s4577 + $0x1e8] sm:$0xff] %v4640
              $region218: #{_lambda_.1} parent=212 // loop_footer
                %s4575 = sadd.s32 1, %s4571
              $region219: #{_lambda_.1} parent=212 // loop_footer_branch
                %4570 = sbr.rel target = $region215
              $region220: #{_lambda_.1} parent=212 // loop_exit
                _
            $region213: #{_lambda_.1} parent=208 // pred_fallthru
              _
            // Predicated region
            $region221: #{_lambda_.1} parent=208 // pred_check
              _
            $region222: #{_lambda_.1} parent=208 // pred_check_branch
              %4643 = sbr.rel target = $region224
            $region223: #{_lambda_.1} parent=208 // pred_region
              _
            $region224: #{_lambda_.1} parent=208 // pred_fallthru
              _
          $region209: #{_lambda_.1} parent=204 // pred_fallthru
            _
          %4644 = vnop
        $region205: #{_lambda_.1} parent=180 // pred_fallthru
          _
      $region181: #{_lambda_.1} parent=5 // pred_fallthru
        _
      %p4645 = scmp.le.s32.totalorder 2, %s10
      // Predicated region
      $region225: #{_lambda_.1} parent=5 // pred_check
        %p4646 = pneg %p4645
      $region226: #{_lambda_.1} parent=5 // pred_check_branch
        %4648 = sbr.rel (%p4646) target = $region228
      $region227: #{_lambda_.1} parent=5 // pred_region
        %s4649 = ssub.s32 %s10, 2
        // Predicated region
        $region229: #{_lambda_.1} parent=227 // pred_check
          %p4650 = pneg %p182
        $region230: #{_lambda_.1} parent=227 // pred_check_branch
          %4652 = sbr.rel (%p4650) target = $region232
        $region231: #{_lambda_.1} parent=227 // pred_region
          %s4653 = sand.u32 %s167, 1
          %s4654 = sand.u32 %s167, 1
          %s4655 = smul.addr %s4654, 256
          %s4656 = scalar_lea.vmem [#allocation7], %s4655
        $region232: #{_lambda_.1} parent=227 // pred_fallthru
          _
      $region228: #{_lambda_.1} parent=5 // pred_fallthru
        _
    $region6: #{_lambda_.1} parent=1 // loop_footer
      %s14 = sadd.s32 1, %s10
    $region7: #{_lambda_.1} parent=1 // loop_footer_branch
      %9 = sbr.rel target = $region3
    $region8: #{_lambda_.1} parent=1 // loop_exit
      _

</llo_original>
